<compile_context>
chip_gen: v7x
topology: tpu7x:2x2x1
jax: 0.10.0
libtpu: 0.0.40
codegen_flags: <defaults>
</compile_context>

<pallas_src>
import functools

import jax
import jax.numpy as jnp
from jax.experimental import pallas as pl
from jax.experimental.pallas import tpu as pltpu


# ----------------------------------------------------------------------------
# small helpers
# ----------------------------------------------------------------------------
def _round_up(n, m):
    return ((n + m - 1) // m) * m


def _tile_rows(n, max_tile):
    """Row tile (multiple of 8, <= max_tile) and padded row count it divides."""
    t = min(max_tile, max(8, _round_up(n, 8)))
    return t, _round_up(n, t)


def _pad_rows(x, npad):
    n = x.shape[0]
    if npad == n:
        return x
    return jnp.pad(x, [(0, npad - n)] + [(0, 0)] * (x.ndim - 1))


def bn_fold(bn, eps=1e-5):
    scale = bn["gamma"] / jnp.sqrt(bn["var"] + eps)
    shift = bn["beta"] - bn["mean"] * scale
    return scale, shift


# ----------------------------------------------------------------------------
# Pallas kernels
# ----------------------------------------------------------------------------
def _linear_gate_kernel(x_ref, w_ref, b_ref, s_ref, t_ref, g_ref, o_ref):
    # y = gated_relu( ((x @ W) + b) * scale + shift ); gate is per output col.
    y = jnp.dot(x_ref[...], w_ref[...], preferred_element_type=jnp.float32)
    y = (y + b_ref[...]) * s_ref[...] + t_ref[...]
    o_ref[...] = jnp.where(g_ref[...] > 0.0, jnp.maximum(y, 0.0), y).astype(o_ref.dtype)


def _linear_res_kernel(x_ref, w_ref, b_ref, s_ref, t_ref, r_ref, o_ref,
                       *, relu_pre, relu_post):
    # y = ((x @ W) + b) * scale + shift ; optional relu ; + residual ; optional relu
    y = jnp.dot(x_ref[...], w_ref[...], preferred_element_type=jnp.float32)
    y = (y + b_ref[...]) * s_ref[...] + t_ref[...]
    if relu_pre:
        y = jnp.maximum(y, 0.0)
    y = y + r_ref[...]
    if relu_post:
        y = jnp.maximum(y, 0.0)
    o_ref[...] = y.astype(o_ref.dtype)


def _gva_kernel(q_ref, k_ref, v_ref, pos_ref, m_ref,
                pw1_ref, pb1_ref, ps_ref, pt_ref, pw2_ref, pb2_ref,
                w1_ref, b1_ref, s1_ref, t1_ref, w2_ref, b2_ref,
                e_ref, s2_ref, t2_ref, o_ref, *, groups):
    # Grouped vector attention core (per row-tile of points), with the
    # positional-bias MLP and the norm2+ReLU epilogue fused in.
    q = q_ref[...]                                   # (tn, C)
    key = k_ref[...]                                 # (tn, S, C)
    val = v_ref[...]                                 # (tn, S, C)
    pos = pos_ref[...]                               # (tn, S, 3)
    tn, S, C = key.shape

    # linear_p_bias: Linear(3,C) + BN + ReLU + Linear(C,C)   (in-kernel)
    p2 = pos.reshape(tn * S, 3)
    h = jnp.dot(p2, pw1_ref[...], preferred_element_type=jnp.float32) + pb1_ref[...]
    h = jnp.maximum(h * ps_ref[...] + pt_ref[...], 0.0)
    peb = jnp.dot(h, pw2_ref[...], preferred_element_type=jnp.float32) + pb2_ref[...]

    # relation_qk (+ pe bias) and weight_encoding: Lin(C,g)+BN+ReLU+Lin(g,g)
    relation = (key - q[:, None, :]).reshape(tn * S, C) + peb
    w = jnp.dot(relation, w1_ref[...], preferred_element_type=jnp.float32) + b1_ref[...]
    w = jnp.maximum(w * s1_ref[...] + t1_ref[...], 0.0)
    w = jnp.dot(w, w2_ref[...], preferred_element_type=jnp.float32) + b2_ref[...]
    w = w.reshape(tn, S, groups)

    # softmax over neighbours (dim=1), then mask invalid neighbours
    w = w - jnp.max(w, axis=1, keepdims=True)
    e = jnp.exp(w)
    w = e / jnp.sum(e, axis=1, keepdims=True)
    w = w * m_ref[...]                               # mask (tn, S, 1)

    # expand per-group weight to per-channel via a 0/1 (g, C) matrix, aggregate
    w_full = jnp.dot(w.reshape(tn * S, groups), e_ref[...],
                     preferred_element_type=jnp.float32).reshape(tn, S, C)
    v_pe = val + peb.reshape(tn, S, C)
    feat = jnp.sum(v_pe * w_full, axis=1)            # (tn, C)

    # fused norm2 affine + ReLU epilogue
    feat = feat * s2_ref[...] + t2_ref[...]
    o_ref[...] = jnp.maximum(feat, 0.0).astype(o_ref.dtype)


# ----------------------------------------------------------------------------
# Pallas wrappers
# ----------------------------------------------------------------------------
def linear_bn_act(x, w, b=None, scale=None, shift=None, gate=None, *, max_tile=512):
    """y = gated_relu(((x @ w) + b) * scale + shift), x: [N, Cin] -> [N, Cout]."""
    N, Cin = x.shape
    Cout = w.shape[1]
    dt = x.dtype
    b = jnp.zeros((Cout,), dt) if b is None else b
    scale = jnp.ones((Cout,), dt) if scale is None else scale
    shift = jnp.zeros((Cout,), dt) if shift is None else shift
    gate = jnp.ones((Cout,), dt) if gate is None else gate
    b, scale, shift, gate = (a.reshape(1, Cout).astype(dt) for a in (b, scale, shift, gate))

    tm, npad = _tile_rows(N, max_tile)
    xp = _pad_rows(x, npad)
    out = pl.pallas_call(
        _linear_gate_kernel,
        out_shape=jax.ShapeDtypeStruct((npad, Cout), dt),
        grid=(npad // tm,),
        in_specs=[
            pl.BlockSpec((tm, Cin), lambda i: (i, 0)),
            pl.BlockSpec((Cin, Cout), lambda i: (0, 0)),
            pl.BlockSpec((1, Cout), lambda i: (0, 0)),
            pl.BlockSpec((1, Cout), lambda i: (0, 0)),
            pl.BlockSpec((1, Cout), lambda i: (0, 0)),
            pl.BlockSpec((1, Cout), lambda i: (0, 0)),
        ],
        out_specs=pl.BlockSpec((tm, Cout), lambda i: (i, 0)),
        compiler_params=pltpu.CompilerParams(dimension_semantics=("parallel",)),
    )(xp, w.astype(dt), b, scale, shift, gate)
    return out[:N]


def linear_bn_add(x, w, b, scale, shift, residual, *, relu_pre, relu_post, max_tile=512):
    """y = [relu]( ((x@w)+b)*scale+shift ) + residual ; [relu] — both fused."""
    N, Cin = x.shape
    Cout = w.shape[1]
    dt = x.dtype
    b = jnp.zeros((Cout,), dt) if b is None else b
    scale = jnp.ones((Cout,), dt) if scale is None else scale
    shift = jnp.zeros((Cout,), dt) if shift is None else shift
    b, scale, shift = (a.reshape(1, Cout).astype(dt) for a in (b, scale, shift))

    tm, npad = _tile_rows(N, max_tile)
    xp = _pad_rows(x, npad)
    rp = _pad_rows(residual.astype(dt), npad)
    out = pl.pallas_call(
        functools.partial(_linear_res_kernel, relu_pre=relu_pre, relu_post=relu_post),
        out_shape=jax.ShapeDtypeStruct((npad, Cout), dt),
        grid=(npad // tm,),
        in_specs=[
            pl.BlockSpec((tm, Cin), lambda i: (i, 0)),
            pl.BlockSpec((Cin, Cout), lambda i: (0, 0)),
            pl.BlockSpec((1, Cout), lambda i: (0, 0)),
            pl.BlockSpec((1, Cout), lambda i: (0, 0)),
            pl.BlockSpec((1, Cout), lambda i: (0, 0)),
            pl.BlockSpec((tm, Cout), lambda i: (i, 0)),
        ],
        out_specs=pl.BlockSpec((tm, Cout), lambda i: (i, 0)),
        compiler_params=pltpu.CompilerParams(dimension_semantics=("parallel",)),
    )(xp, w.astype(dt), b, scale, shift, rp)
    return out[:N]


def gva_attention(q, key_g, val_g, pos, mask,
                  pw1, pb1, ps, pt, pw2, pb2,
                  w1, b1, s1, t1, w2, b2,
                  s2, t2, groups, *, max_tile=128):
    """Grouped vector attention core with fused pe-bias MLP and norm2+ReLU.

    q:[N,C], key_g/val_g:[N,S,C], pos:[N,S,3], mask:[N,S]. Returns [N,C].
    """
    N, S, C = key_g.shape
    g = groups
    gi = C // g
    dt = q.dtype
    # expand[gr, c] = 1 if channel c belongs to group gr   (matches '(g i)')
    expand = ((jnp.arange(C) // gi) == jnp.arange(g)[:, None]).astype(dt)
    pb1, ps, pt, pb2, s2, t2 = (a.reshape(1, C).astype(dt) for a in (pb1, ps, pt, pb2, s2, t2))
    b1, s1, t1, b2 = (a.reshape(1, g).astype(dt) for a in (b1, s1, t1, b2))

    tn, npad = _tile_rows(N, max_tile)
    qp = _pad_rows(q, npad)
    kp = _pad_rows(key_g, npad)
    vp = _pad_rows(val_g, npad)
    pp = _pad_rows(pos, npad)
    mp = _pad_rows(mask[..., None].astype(dt), npad)

    out = pl.pallas_call(
        functools.partial(_gva_kernel, groups=g),
        out_shape=jax.ShapeDtypeStruct((npad, C), dt),
        grid=(npad // tn,),
        in_specs=[
            pl.BlockSpec((tn, C), lambda i: (i, 0)),        # q
            pl.BlockSpec((tn, S, C), lambda i: (i, 0, 0)),  # grouped key
            pl.BlockSpec((tn, S, C), lambda i: (i, 0, 0)),  # grouped value
            pl.BlockSpec((tn, S, 3), lambda i: (i, 0, 0)),  # relative coords
            pl.BlockSpec((tn, S, 1), lambda i: (i, 0, 0)),  # neighbour mask
            pl.BlockSpec((3, C), lambda i: (0, 0)),          # pe W1
            pl.BlockSpec((1, C), lambda i: (0, 0)),          # pe b1
            pl.BlockSpec((1, C), lambda i: (0, 0)),          # pe bn scale
            pl.BlockSpec((1, C), lambda i: (0, 0)),          # pe bn shift
            pl.BlockSpec((C, C), lambda i: (0, 0)),          # pe W2
            pl.BlockSpec((1, C), lambda i: (0, 0)),          # pe b2
            pl.BlockSpec((C, g), lambda i: (0, 0)),          # we W1
            pl.BlockSpec((1, g), lambda i: (0, 0)),          # we b1
            pl.BlockSpec((1, g), lambda i: (0, 0)),          # we bn scale
            pl.BlockSpec((1, g), lambda i: (0, 0)),          # we bn shift
            pl.BlockSpec((g, g), lambda i: (0, 0)),          # we W2
            pl.BlockSpec((1, g), lambda i: (0, 0)),          # we b2
            pl.BlockSpec((g, C), lambda i: (0, 0)),          # group expansion
            pl.BlockSpec((1, C), lambda i: (0, 0)),          # norm2 scale
            pl.BlockSpec((1, C), lambda i: (0, 0)),          # norm2 shift
        ],
        out_specs=pl.BlockSpec((tn, C), lambda i: (i, 0)),
        compiler_params=pltpu.CompilerParams(
            dimension_semantics=("parallel",),
            vmem_limit_bytes=48 * 1024 * 1024),
    )(qp, kp, vp, pp, mp,
      pw1.astype(dt), pb1, ps, pt, pw2.astype(dt), pb2,
      w1.astype(dt), b1, s1, t1, w2.astype(dt), b2,
      expand, s2, t2)
    return out[:N]


# ----------------------------------------------------------------------------
# Module-level glue (plain JAX)
# ----------------------------------------------------------------------------
def knn_query(k, coord, offset):
    # TODO(synk): pointops.knn_query (batched kNN) has no clean Pallas
    # equivalent; dense O(N^2) top_k per segment, fine for small point clouds.
    N = coord.shape[0]
    seg = jnp.searchsorted(offset, jnp.arange(N), side="right")
    d2 = jnp.sum((coord[:, None, :] - coord[None, :, :]) ** 2, axis=-1)
    d2 = jnp.where(seg[:, None] == seg[None, :], d2, jnp.inf)
    vals, idx = jax.lax.top_k(-d2, k)
    # neighbours outside the segment (inf distance) -> index -1 (masked out)
    idx = jnp.where(jnp.isfinite(vals), idx, -1)
    return idx.astype(jnp.int32)


def gva_forward(p, norm2, feat, coord, ref_idx, groups):
    N, C = feat.shape

    # fused q/k/v projection: one x @ (C, 3C) matmul, per-column BN fold + gate
    w_qkv = jnp.concatenate([p["q_w"], p["k_w"], p["v_w"]], axis=1)
    b_qkv = jnp.concatenate([p["q_b"], p["k_b"], p["v_b"]])
    sq, tq = bn_fold(p["q_bn"])
    sk, tk = bn_fold(p["k_bn"])
    ones = jnp.ones((C,), feat.dtype)
    zeros = jnp.zeros((C,), feat.dtype)
    scale = jnp.concatenate([sq, sk, ones])
    shift = jnp.concatenate([tq, tk, zeros])
    gate = jnp.concatenate([ones, ones, zeros])      # relu on q, k; not on v
    qkv = linear_bn_act(feat, w_qkv, b_qkv, scale, shift, gate)
    q, k, v = qkv[:, :C], qkv[:, C:2 * C], qkv[:, 2 * C:]

    # pointops.grouping (index gather) — plain JAX glue.
    # TODO(synk): an in-kernel gather via scalar-prefetched ref_idx would avoid
    # materializing key_g/val_g in HBM; kept as jnp.take for robustness.
    valid = ref_idx >= 0
    idx = jnp.where(valid, ref_idx, 0)
    mask = valid.astype(feat.dtype)                  # (N, S)
    key_g = jnp.take(k, idx, axis=0)                 # (N, S, C)
    val_g = jnp.take(v, idx, axis=0)                 # (N, S, C)
    pos = (jnp.take(coord, idx, axis=0) - coord[:, None, :]) * mask[..., None]

    sp, tp = bn_fold(p["pb_bn"])
    sw, tw = bn_fold(p["we_bn"])
    s2, t2 = bn_fold(norm2)
    return gva_attention(q, key_g, val_g, pos, mask,
                         p["pb_w1"], p["pb_b1"], sp, tp, p["pb_w2"], p["pb_b2"],
                         p["we_w1"], p["we_b1"], sw, tw, p["we_w2"], p["we_b2"],
                         s2, t2, groups)


def block_forward(p, coord, feat, ref_idx, groups):
    identity = feat
    s1, t1 = bn_fold(p["norm1"])
    x = linear_bn_act(feat, p["fc1_w"], None, s1, t1)            # fc1+norm1+ReLU
    x = gva_forward(p["attn"], p["norm2"], x, coord, ref_idx, groups)  # attn+norm2+ReLU
    s3, t3 = bn_fold(p["norm3"])
    # fc3 + norm3 + residual add + ReLU fused (drop_path = Identity)
    return linear_bn_add(x, p["fc3_w"], None, s3, t3, identity,
                         relu_pre=False, relu_post=True)


@functools.partial(jax.jit, static_argnames=("groups", "neighbours"))
def decoder_forward(params, points, skip_points, cluster, *, groups, neighbours):
    coord, feat, offset = points
    skip_coord, skip_feat, skip_offset = skip_points

    # UnpoolWithSkip (backend='map'): proj -> [cluster] -> + proj_skip
    sp, tp = bn_fold(params["up"]["proj_bn"])
    proj = linear_bn_act(feat, params["up"]["proj_w"], params["up"]["proj_b"], sp, tp)
    proj_g = jnp.take(proj, cluster, axis=0)
    ss, ts = bn_fold(params["up"]["proj_skip_bn"])
    feat = linear_bn_add(skip_feat, params["up"]["proj_skip_w"],
                         params["up"]["proj_skip_b"], ss, ts, proj_g,
                         relu_pre=True, relu_post=False)
    coord, offset = skip_coord, skip_offset

    # BlockSequence
    ref_idx = knn_query(neighbours, coord, offset)
    for blk in params["blocks"]:
        feat = block_forward(blk, coord, feat, ref_idx, groups)
    return coord, feat, offset


# ----------------------------------------------------------------------------
# Deterministic parameter construction
# ----------------------------------------------------------------------------
class KeyGen:
    def __init__(self, key):
        self.key = key

    def __call__(self):
        self.key, k = jax.random.split(self.key)
        return k


def init_params(key, in_channels, skip_channels, embed_channels, groups, depth):
    kg = KeyGen(key)

    def lin(cin, cout, bias=True):
        w = jax.random.normal(kg(), (cin, cout), jnp.float32) / jnp.sqrt(float(cin))
        b = 0.01 * jax.random.normal(kg(), (cout,), jnp.float32) if bias else None
        return w, b

    def bn(c):
        return dict(
            gamma=1.0 + 0.1 * jax.random.normal(kg(), (c,), jnp.float32),
            beta=0.1 * jax.random.normal(kg(), (c,), jnp.float32),
            mean=0.1 * jax.random.normal(kg(), (c,), jnp.float32),
            var=0.5 + jax.random.uniform(kg(), (c,), jnp.float32),
        )

    C, G = embed_channels, groups
    assert C % G == 0
    pw, pb = lin(in_channels, C)
    sw, sb = lin(skip_channels, C)
    params = {
        "up": dict(proj_w=pw, proj_b=pb, proj_bn=bn(C),
                   proj_skip_w=sw, proj_skip_b=sb, proj_skip_bn=bn(C)),
        "blocks": [],
    }
    for _ in range(depth):
        qw, qb = lin(C, C)
        kw, kb = lin(C, C)
        vw, vb = lin(C, C)
        p1w, p1b = lin(3, C)
        p2w, p2b = lin(C, C)
        w1w, w1b = lin(C, G)
        w2w, w2b = lin(G, G)
        attn = dict(q_w=qw, q_b=qb, q_bn=bn(C),
                    k_w=kw, k_b=kb, k_bn=bn(C),
                    v_w=vw, v_b=vb,
                    pb_w1=p1w, pb_b1=p1b, pb_bn=bn(C), pb_w2=p2w, pb_b2=p2b,
                    we_w1=w1w, we_b1=w1b, we_bn=bn(G), we_w2=w2w, we_b2=w2b)
        fc1w, _ = lin(C, C, bias=False)
        fc3w, _ = lin(C, C, bias=False)
        params["blocks"].append(dict(fc1_w=fc1w, fc3_w=fc3w,
                                     norm1=bn(C), norm2=bn(C), norm3=bn(C),
                                     attn=attn))
    return params


# ----------------------------------------------------------------------------
if __name__ == "__main__":
    in_channels, skip_channels, embed_channels = 64, 32, 32
    groups, depth, neighbours = 4, 1, 8
    n_coarse, n_skip = 16, 32

    key = jax.random.PRNGKey(0)
    k1, k2, k3, k4, k5, kp = jax.random.split(key, 6)
    coord = jax.random.normal(k1, (n_coarse, 3), jnp.float32)
    feat = jax.random.normal(k2, (n_coarse, in_channels), jnp.float32)
    offset = jnp.array([n_coarse], jnp.int32)
    skip_coord = jax.random.normal(k3, (n_skip, 3), jnp.float32)
    skip_feat = jax.random.normal(k4, (n_skip, skip_channels), jnp.float32)
    skip_offset = jnp.array([n_skip], jnp.int32)
    cluster = jax.random.randint(k5, (n_skip,), 0, n_coarse, dtype=jnp.int32)

    params = init_params(kp, in_channels, skip_channels, embed_channels, groups, depth)

    out_coord, out_feat, out_offset = decoder_forward(
        params,
        (coord, feat, offset),
        (skip_coord, skip_feat, skip_offset),
        cluster,
        groups=groups,
        neighbours=neighbours,
    )
    jax.block_until_ready(out_feat)
    assert out_feat.shape == (n_skip, embed_channels)
    assert bool(jnp.all(jnp.isfinite(out_feat)))
    print("KERNEL_OK")
</pallas_src>

<mosaic_0001>
module attributes {stable_mosaic.version = 11 : i64} {
  func.func @_linear_gate_kernel(%arg0: i32, %arg1: memref<16x64xf32, #tpu.memory_space<vmem>>, %arg2: memref<64x32xf32, #tpu.memory_space<vmem>>, %arg3: memref<1x32xf32, #tpu.memory_space<vmem>>, %arg4: memref<1x32xf32, #tpu.memory_space<vmem>>, %arg5: memref<1x32xf32, #tpu.memory_space<vmem>>, %arg6: memref<1x32xf32, #tpu.memory_space<vmem>>, %arg7: memref<16x32xf32, #tpu.memory_space<vmem>>) attributes {dimension_semantics = [#tpu.dimension_semantics<parallel>], iteration_bounds = array<i64: 1>, scalar_prefetch = 0 : i64, scratch_operands = 0 : i64, tpu.core_type = #tpu.core_type<tc>, window_params = [{transform_indices = @transform_0, window_bounds = array<i64: 16, 64>}, {pipeline_mode = #tpu.pipeline_mode<synchronous>, transform_indices = @transform_1, window_bounds = array<i64: 64, 32>}, {pipeline_mode = #tpu.pipeline_mode<synchronous>, transform_indices = @transform_2, window_bounds = array<i64: 1, 32>}, {pipeline_mode = #tpu.pipeline_mode<synchronous>, transform_indices = @transform_3, window_bounds = array<i64: 1, 32>}, {pipeline_mode = #tpu.pipeline_mode<synchronous>, transform_indices = @transform_4, window_bounds = array<i64: 1, 32>}, {pipeline_mode = #tpu.pipeline_mode<synchronous>, transform_indices = @transform_5, window_bounds = array<i64: 1, 32>}, {transform_indices = @transform_6, window_bounds = array<i64: 16, 32>}]} {
    %c0 = arith.constant 0 : index
    %c0_0 = arith.constant 0 : index
    %0 = vector.load %arg1[%c0, %c0_0] : memref<16x64xf32, #tpu.memory_space<vmem>>, vector<16x64xf32>
    %c0_1 = arith.constant 0 : index
    %c0_2 = arith.constant 0 : index
    %1 = vector.load %arg2[%c0_1, %c0_2] : memref<64x32xf32, #tpu.memory_space<vmem>>, vector<64x32xf32>
    %cst = arith.constant dense<0.000000e+00> : vector<16x32xf32>
    %2 = tpu.matmul %0, %1, %cst {dimension_numbers = #tpu.dot_dimension_numbers<[1], [0], [0], [1], [0, 0, 1, 1], [], []>} : vector<16x64xf32>, vector<64x32xf32>, vector<16x32xf32> -> vector<16x32xf32>
    %c0_3 = arith.constant 0 : index
    %c0_4 = arith.constant 0 : index
    %3 = vector.load %arg3[%c0_3, %c0_4] : memref<1x32xf32, #tpu.memory_space<vmem>>, vector<1x32xf32>
    %4 = vector.broadcast %3 : vector<1x32xf32> to vector<16x32xf32>
    %5 = arith.addf %2, %4 : vector<16x32xf32>
    %c0_5 = arith.constant 0 : index
    %c0_6 = arith.constant 0 : index
    %6 = vector.load %arg4[%c0_5, %c0_6] : memref<1x32xf32, #tpu.memory_space<vmem>>, vector<1x32xf32>
    %7 = vector.broadcast %6 : vector<1x32xf32> to vector<16x32xf32>
    %8 = arith.mulf %5, %7 : vector<16x32xf32>
    %c0_7 = arith.constant 0 : index
    %c0_8 = arith.constant 0 : index
    %9 = vector.load %arg5[%c0_7, %c0_8] : memref<1x32xf32, #tpu.memory_space<vmem>>, vector<1x32xf32>
    %10 = vector.broadcast %9 : vector<1x32xf32> to vector<16x32xf32>
    %11 = arith.addf %8, %10 : vector<16x32xf32>
    %c0_9 = arith.constant 0 : index
    %c0_10 = arith.constant 0 : index
    %12 = vector.load %arg6[%c0_9, %c0_10] : memref<1x32xf32, #tpu.memory_space<vmem>>, vector<1x32xf32>
    %cst_11 = arith.constant 0.000000e+00 : f32
    %13 = vector.broadcast %cst_11 : f32 to vector<1x32xf32>
    %14 = arith.cmpf ogt, %12, %13 : vector<1x32xf32>
    %cst_12 = arith.constant 0.000000e+00 : f32
    %15 = vector.broadcast %cst_12 : f32 to vector<16x32xf32>
    %16 = arith.maximumf %11, %15 : vector<16x32xf32>
    %17 = vector.shape_cast %14 : vector<1x32xi1> to vector<1x32xi1>
    %18 = vector.broadcast %17 : vector<1x32xi1> to vector<16x32xi1>
    %19 = arith.select %18, %16, %11 : vector<16x32xi1>, vector<16x32xf32>
    %c0_13 = arith.constant 0 : index
    %c0_14 = arith.constant 0 : index
    %20 = vector.load %arg7[%c0_13, %c0_14] : memref<16x32xf32, #tpu.memory_space<vmem>>, vector<16x32xf32>
    tpu.vector_store %arg7[%c0_13, %c0_14], %19 {strides = array<i32>} : memref<16x32xf32, #tpu.memory_space<vmem>>, vector<16x32xf32>,
    return
  }
  func.func @transform_0(%arg0: i32) -> (i32, i32) {
    %c0_i32 = arith.constant 0 : i32
    %c0_i32_0 = arith.constant 0 : i32
    return %arg0, %c0_i32 : i32, i32
  }
  func.func @transform_1(%arg0: i32) -> (i32, i32) {
    %c0_i32 = arith.constant 0 : i32
    %c0_i32_0 = arith.constant 0 : i32
    %c0_i32_1 = arith.constant 0 : i32
    return %c0_i32, %c0_i32_0 : i32, i32
  }
  func.func @transform_2(%arg0: i32) -> (i32, i32) {
    %c0_i32 = arith.constant 0 : i32
    %c0_i32_0 = arith.constant 0 : i32
    %c0_i32_1 = arith.constant 0 : i32
    return %c0_i32, %c0_i32_0 : i32, i32
  }
  func.func @transform_3(%arg0: i32) -> (i32, i32) {
    %c0_i32 = arith.constant 0 : i32
    %c0_i32_0 = arith.constant 0 : i32
    %c0_i32_1 = arith.constant 0 : i32
    return %c0_i32, %c0_i32_0 : i32, i32
  }
  func.func @transform_4(%arg0: i32) -> (i32, i32) {
    %c0_i32 = arith.constant 0 : i32
    %c0_i32_0 = arith.constant 0 : i32
    %c0_i32_1 = arith.constant 0 : i32
    return %c0_i32, %c0_i32_0 : i32, i32
  }
  func.func @transform_5(%arg0: i32) -> (i32, i32) {
    %c0_i32 = arith.constant 0 : i32
    %c0_i32_0 = arith.constant 0 : i32
    %c0_i32_1 = arith.constant 0 : i32
    return %c0_i32, %c0_i32_0 : i32, i32
  }
  func.func @transform_6(%arg0: i32) -> (i32, i32) {
    %c0_i32 = arith.constant 0 : i32
    %c0_i32_0 = arith.constant 0 : i32
    return %arg0, %c0_i32 : i32, i32
  }
}

module attributes {stable_mosaic.version = 11 : i64} {
  func.func @_linear_gate_kernel(%arg0: i32, %arg1: memref<32x32xf32, #tpu.memory_space<vmem>>, %arg2: memref<32x32xf32, #tpu.memory_space<vmem>>, %arg3: memref<1x32xf32, #tpu.memory_space<vmem>>, %arg4: memref<1x32xf32, #tpu.memory_space<vmem>>, %arg5: memref<1x32xf32, #tpu.memory_space<vmem>>, %arg6: memref<1x32xf32, #tpu.memory_space<vmem>>, %arg7: memref<32x32xf32, #tpu.memory_space<vmem>>) attributes {dimension_semantics = [#tpu.dimension_semantics<parallel>], iteration_bounds = array<i64: 1>, scalar_prefetch = 0 : i64, scratch_operands = 0 : i64, tpu.core_type = #tpu.core_type<tc>, window_params = [{transform_indices = @transform_0, window_bounds = array<i64: 32, 32>}, {pipeline_mode = #tpu.pipeline_mode<synchronous>, transform_indices = @transform_1, window_bounds = array<i64: 32, 32>}, {pipeline_mode = #tpu.pipeline_mode<synchronous>, transform_indices = @transform_2, window_bounds = array<i64: 1, 32>}, {pipeline_mode = #tpu.pipeline_mode<synchronous>, transform_indices = @transform_3, window_bounds = array<i64: 1, 32>}, {pipeline_mode = #tpu.pipeline_mode<synchronous>, transform_indices = @transform_4, window_bounds = array<i64: 1, 32>}, {pipeline_mode = #tpu.pipeline_mode<synchronous>, transform_indices = @transform_5, window_bounds = array<i64: 1, 32>}, {transform_indices = @transform_6, window_bounds = array<i64: 32, 32>}]} {
    %c0 = arith.constant 0 : index
    %c0_0 = arith.constant 0 : index
    %0 = vector.load %arg1[%c0, %c0_0] : memref<32x32xf32, #tpu.memory_space<vmem>>, vector<32x32xf32>
    %c0_1 = arith.constant 0 : index
    %c0_2 = arith.constant 0 : index
    %1 = vector.load %arg2[%c0_1, %c0_2] : memref<32x32xf32, #tpu.memory_space<vmem>>, vector<32x32xf32>
    %cst = arith.constant dense<0.000000e+00> : vector<32x32xf32>
    %2 = tpu.matmul %0, %1, %cst {dimension_numbers = #tpu.dot_dimension_numbers<[1], [0], [0], [1], [0, 0, 1, 1], [], []>} : vector<32x32xf32>, vector<32x32xf32>, vector<32x32xf32> -> vector<32x32xf32>
    %c0_3 = arith.constant 0 : index
    %c0_4 = arith.constant 0 : index
    %3 = vector.load %arg3[%c0_3, %c0_4] : memref<1x32xf32, #tpu.memory_space<vmem>>, vector<1x32xf32>
    %4 = vector.broadcast %3 : vector<1x32xf32> to vector<32x32xf32>
    %5 = arith.addf %2, %4 : vector<32x32xf32>
    %c0_5 = arith.constant 0 : index
    %c0_6 = arith.constant 0 : index
    %6 = vector.load %arg4[%c0_5, %c0_6] : memref<1x32xf32, #tpu.memory_space<vmem>>, vector<1x32xf32>
    %7 = vector.broadcast %6 : vector<1x32xf32> to vector<32x32xf32>
    %8 = arith.mulf %5, %7 : vector<32x32xf32>
    %c0_7 = arith.constant 0 : index
    %c0_8 = arith.constant 0 : index
    %9 = vector.load %arg5[%c0_7, %c0_8] : memref<1x32xf32, #tpu.memory_space<vmem>>, vector<1x32xf32>
    %10 = vector.broadcast %9 : vector<1x32xf32> to vector<32x32xf32>
    %11 = arith.addf %8, %10 : vector<32x32xf32>
    %c0_9 = arith.constant 0 : index
    %c0_10 = arith.constant 0 : index
    %12 = vector.load %arg6[%c0_9, %c0_10] : memref<1x32xf32, #tpu.memory_space<vmem>>, vector<1x32xf32>
    %cst_11 = arith.constant 0.000000e+00 : f32
    %13 = vector.broadcast %cst_11 : f32 to vector<1x32xf32>
    %14 = arith.cmpf ogt, %12, %13 : vector<1x32xf32>
    %cst_12 = arith.constant 0.000000e+00 : f32
    %15 = vector.broadcast %cst_12 : f32 to vector<32x32xf32>
    %16 = arith.maximumf %11, %15 : vector<32x32xf32>
    %17 = vector.shape_cast %14 : vector<1x32xi1> to vector<1x32xi1>
    %18 = vector.broadcast %17 : vector<1x32xi1> to vector<32x32xi1>
    %19 = arith.select %18, %16, %11 : vector<32x32xi1>, vector<32x32xf32>
    %c0_13 = arith.constant 0 : index
    %c0_14 = arith.constant 0 : index
    %20 = vector.load %arg7[%c0_13, %c0_14] : memref<32x32xf32, #tpu.memory_space<vmem>>, vector<32x32xf32>
    tpu.vector_store %arg7[%c0_13, %c0_14], %19 {strides = array<i32>} : memref<32x32xf32, #tpu.memory_space<vmem>>, vector<32x32xf32>,
    return
  }
  func.func @transform_0(%arg0: i32) -> (i32, i32) {
    %c0_i32 = arith.constant 0 : i32
    %c0_i32_0 = arith.constant 0 : i32
    return %arg0, %c0_i32 : i32, i32
  }
  func.func @transform_1(%arg0: i32) -> (i32, i32) {
    %c0_i32 = arith.constant 0 : i32
    %c0_i32_0 = arith.constant 0 : i32
    %c0_i32_1 = arith.constant 0 : i32
    return %c0_i32, %c0_i32_0 : i32, i32
  }
  func.func @transform_2(%arg0: i32) -> (i32, i32) {
    %c0_i32 = arith.constant 0 : i32
    %c0_i32_0 = arith.constant 0 : i32
    %c0_i32_1 = arith.constant 0 : i32
    return %c0_i32, %c0_i32_0 : i32, i32
  }
  func.func @transform_3(%arg0: i32) -> (i32, i32) {
    %c0_i32 = arith.constant 0 : i32
    %c0_i32_0 = arith.constant 0 : i32
    %c0_i32_1 = arith.constant 0 : i32
    return %c0_i32, %c0_i32_0 : i32, i32
  }
  func.func @transform_4(%arg0: i32) -> (i32, i32) {
    %c0_i32 = arith.constant 0 : i32
    %c0_i32_0 = arith.constant 0 : i32
    %c0_i32_1 = arith.constant 0 : i32
    return %c0_i32, %c0_i32_0 : i32, i32
  }
  func.func @transform_5(%arg0: i32) -> (i32, i32) {
    %c0_i32 = arith.constant 0 : i32
    %c0_i32_0 = arith.constant 0 : i32
    %c0_i32_1 = arith.constant 0 : i32
    return %c0_i32, %c0_i32_0 : i32, i32
  }
  func.func @transform_6(%arg0: i32) -> (i32, i32) {
    %c0_i32 = arith.constant 0 : i32
    %c0_i32_0 = arith.constant 0 : i32
    return %arg0, %c0_i32 : i32, i32
  }
}

module attributes {stable_mosaic.version = 11 : i64} {
  func.func @_linear_res_kernel(%arg0: i32, %arg1: memref<32x32xf32, #tpu.memory_space<vmem>>, %arg2: memref<32x32xf32, #tpu.memory_space<vmem>>, %arg3: memref<1x32xf32, #tpu.memory_space<vmem>>, %arg4: memref<1x32xf32, #tpu.memory_space<vmem>>, %arg5: memref<1x32xf32, #tpu.memory_space<vmem>>, %arg6: memref<32x32xf32, #tpu.memory_space<vmem>>, %arg7: memref<32x32xf32, #tpu.memory_space<vmem>>) attributes {dimension_semantics = [#tpu.dimension_semantics<parallel>], iteration_bounds = array<i64: 1>, scalar_prefetch = 0 : i64, scratch_operands = 0 : i64, tpu.core_type = #tpu.core_type<tc>, window_params = [{transform_indices = @transform_0, window_bounds = array<i64: 32, 32>}, {pipeline_mode = #tpu.pipeline_mode<synchronous>, transform_indices = @transform_1, window_bounds = array<i64: 32, 32>}, {pipeline_mode = #tpu.pipeline_mode<synchronous>, transform_indices = @transform_2, window_bounds = array<i64: 1, 32>}, {pipeline_mode = #tpu.pipeline_mode<synchronous>, transform_indices = @transform_3, window_bounds = array<i64: 1, 32>}, {pipeline_mode = #tpu.pipeline_mode<synchronous>, transform_indices = @transform_4, window_bounds = array<i64: 1, 32>}, {transform_indices = @transform_5, window_bounds = array<i64: 32, 32>}, {transform_indices = @transform_6, window_bounds = array<i64: 32, 32>}]} {
    %c0 = arith.constant 0 : index
    %c0_0 = arith.constant 0 : index
    %0 = vector.load %arg1[%c0, %c0_0] : memref<32x32xf32, #tpu.memory_space<vmem>>, vector<32x32xf32>
    %c0_1 = arith.constant 0 : index
    %c0_2 = arith.constant 0 : index
    %1 = vector.load %arg2[%c0_1, %c0_2] : memref<32x32xf32, #tpu.memory_space<vmem>>, vector<32x32xf32>
    %cst = arith.constant dense<0.000000e+00> : vector<32x32xf32>
    %2 = tpu.matmul %0, %1, %cst {dimension_numbers = #tpu.dot_dimension_numbers<[1], [0], [0], [1], [0, 0, 1, 1], [], []>} : vector<32x32xf32>, vector<32x32xf32>, vector<32x32xf32> -> vector<32x32xf32>
    %c0_3 = arith.constant 0 : index
    %c0_4 = arith.constant 0 : index
    %3 = vector.load %arg3[%c0_3, %c0_4] : memref<1x32xf32, #tpu.memory_space<vmem>>, vector<1x32xf32>
    %4 = vector.broadcast %3 : vector<1x32xf32> to vector<32x32xf32>
    %5 = arith.addf %2, %4 : vector<32x32xf32>
    %c0_5 = arith.constant 0 : index
    %c0_6 = arith.constant 0 : index
    %6 = vector.load %arg4[%c0_5, %c0_6] : memref<1x32xf32, #tpu.memory_space<vmem>>, vector<1x32xf32>
    %7 = vector.broadcast %6 : vector<1x32xf32> to vector<32x32xf32>
    %8 = arith.mulf %5, %7 : vector<32x32xf32>
    %c0_7 = arith.constant 0 : index
    %c0_8 = arith.constant 0 : index
    %9 = vector.load %arg5[%c0_7, %c0_8] : memref<1x32xf32, #tpu.memory_space<vmem>>, vector<1x32xf32>
    %10 = vector.broadcast %9 : vector<1x32xf32> to vector<32x32xf32>
    %11 = arith.addf %8, %10 : vector<32x32xf32>
    %cst_9 = arith.constant 0.000000e+00 : f32
    %12 = vector.broadcast %cst_9 : f32 to vector<32x32xf32>
    %13 = arith.maximumf %11, %12 : vector<32x32xf32>
    %c0_10 = arith.constant 0 : index
    %c0_11 = arith.constant 0 : index
    %14 = vector.load %arg6[%c0_10, %c0_11] : memref<32x32xf32, #tpu.memory_space<vmem>>, vector<32x32xf32>
    %15 = arith.addf %13, %14 : vector<32x32xf32>
    %c0_12 = arith.constant 0 : index
    %c0_13 = arith.constant 0 : index
    %16 = vector.load %arg7[%c0_12, %c0_13] : memref<32x32xf32, #tpu.memory_space<vmem>>, vector<32x32xf32>
    tpu.vector_store %arg7[%c0_12, %c0_13], %15 {strides = array<i32>} : memref<32x32xf32, #tpu.memory_space<vmem>>, vector<32x32xf32>,
    return
  }
  func.func @transform_0(%arg0: i32) -> (i32, i32) {
    %c0_i32 = arith.constant 0 : i32
    %c0_i32_0 = arith.constant 0 : i32
    return %arg0, %c0_i32 : i32, i32
  }
  func.func @transform_1(%arg0: i32) -> (i32, i32) {
    %c0_i32 = arith.constant 0 : i32
    %c0_i32_0 = arith.constant 0 : i32
    %c0_i32_1 = arith.constant 0 : i32
    return %c0_i32, %c0_i32_0 : i32, i32
  }
  func.func @transform_2(%arg0: i32) -> (i32, i32) {
    %c0_i32 = arith.constant 0 : i32
    %c0_i32_0 = arith.constant 0 : i32
    %c0_i32_1 = arith.constant 0 : i32
    return %c0_i32, %c0_i32_0 : i32, i32
  }
  func.func @transform_3(%arg0: i32) -> (i32, i32) {
    %c0_i32 = arith.constant 0 : i32
    %c0_i32_0 = arith.constant 0 : i32
    %c0_i32_1 = arith.constant 0 : i32
    return %c0_i32, %c0_i32_0 : i32, i32
  }
  func.func @transform_4(%arg0: i32) -> (i32, i32) {
    %c0_i32 = arith.constant 0 : i32
    %c0_i32_0 = arith.constant 0 : i32
    %c0_i32_1 = arith.constant 0 : i32
    return %c0_i32, %c0_i32_0 : i32, i32
  }
  func.func @transform_5(%arg0: i32) -> (i32, i32) {
    %c0_i32 = arith.constant 0 : i32
    %c0_i32_0 = arith.constant 0 : i32
    return %arg0, %c0_i32 : i32, i32
  }
  func.func @transform_6(%arg0: i32) -> (i32, i32) {
    %c0_i32 = arith.constant 0 : i32
    %c0_i32_0 = arith.constant 0 : i32
    return %arg0, %c0_i32 : i32, i32
  }
}

module attributes {stable_mosaic.version = 11 : i64} {
  func.func @_linear_gate_kernel(%arg0: i32, %arg1: memref<32x32xf32, #tpu.memory_space<vmem>>, %arg2: memref<32x96xf32, #tpu.memory_space<vmem>>, %arg3: memref<1x96xf32, #tpu.memory_space<vmem>>, %arg4: memref<1x96xf32, #tpu.memory_space<vmem>>, %arg5: memref<1x96xf32, #tpu.memory_space<vmem>>, %arg6: memref<1x96xf32, #tpu.memory_space<vmem>>, %arg7: memref<32x96xf32, #tpu.memory_space<vmem>>) attributes {dimension_semantics = [#tpu.dimension_semantics<parallel>], iteration_bounds = array<i64: 1>, scalar_prefetch = 0 : i64, scratch_operands = 0 : i64, tpu.core_type = #tpu.core_type<tc>, window_params = [{transform_indices = @transform_0, window_bounds = array<i64: 32, 32>}, {pipeline_mode = #tpu.pipeline_mode<synchronous>, transform_indices = @transform_1, window_bounds = array<i64: 32, 96>}, {pipeline_mode = #tpu.pipeline_mode<synchronous>, transform_indices = @transform_2, window_bounds = array<i64: 1, 96>}, {pipeline_mode = #tpu.pipeline_mode<synchronous>, transform_indices = @transform_3, window_bounds = array<i64: 1, 96>}, {pipeline_mode = #tpu.pipeline_mode<synchronous>, transform_indices = @transform_4, window_bounds = array<i64: 1, 96>}, {pipeline_mode = #tpu.pipeline_mode<synchronous>, transform_indices = @transform_5, window_bounds = array<i64: 1, 96>}, {transform_indices = @transform_6, window_bounds = array<i64: 32, 96>}]} {
    %c0 = arith.constant 0 : index
    %c0_0 = arith.constant 0 : index
    %0 = vector.load %arg1[%c0, %c0_0] : memref<32x32xf32, #tpu.memory_space<vmem>>, vector<32x32xf32>
    %c0_1 = arith.constant 0 : index
    %c0_2 = arith.constant 0 : index
    %1 = vector.load %arg2[%c0_1, %c0_2] : memref<32x96xf32, #tpu.memory_space<vmem>>, vector<32x96xf32>
    %cst = arith.constant dense<0.000000e+00> : vector<32x96xf32>
    %2 = tpu.matmul %0, %1, %cst {dimension_numbers = #tpu.dot_dimension_numbers<[1], [0], [0], [1], [0, 0, 1, 1], [], []>} : vector<32x32xf32>, vector<32x96xf32>, vector<32x96xf32> -> vector<32x96xf32>
    %c0_3 = arith.constant 0 : index
    %c0_4 = arith.constant 0 : index
    %3 = vector.load %arg3[%c0_3, %c0_4] : memref<1x96xf32, #tpu.memory_space<vmem>>, vector<1x96xf32>
    %4 = vector.broadcast %3 : vector<1x96xf32> to vector<32x96xf32>
    %5 = arith.addf %2, %4 : vector<32x96xf32>
    %c0_5 = arith.constant 0 : index
    %c0_6 = arith.constant 0 : index
    %6 = vector.load %arg4[%c0_5, %c0_6] : memref<1x96xf32, #tpu.memory_space<vmem>>, vector<1x96xf32>
    %7 = vector.broadcast %6 : vector<1x96xf32> to vector<32x96xf32>
    %8 = arith.mulf %5, %7 : vector<32x96xf32>
    %c0_7 = arith.constant 0 : index
    %c0_8 = arith.constant 0 : index
    %9 = vector.load %arg5[%c0_7, %c0_8] : memref<1x96xf32, #tpu.memory_space<vmem>>, vector<1x96xf32>
    %10 = vector.broadcast %9 : vector<1x96xf32> to vector<32x96xf32>
    %11 = arith.addf %8, %10 : vector<32x96xf32>
    %c0_9 = arith.constant 0 : index
    %c0_10 = arith.constant 0 : index
    %12 = vector.load %arg6[%c0_9, %c0_10] : memref<1x96xf32, #tpu.memory_space<vmem>>, vector<1x96xf32>
    %cst_11 = arith.constant 0.000000e+00 : f32
    %13 = vector.broadcast %cst_11 : f32 to vector<1x96xf32>
    %14 = arith.cmpf ogt, %12, %13 : vector<1x96xf32>
    %cst_12 = arith.constant 0.000000e+00 : f32
    %15 = vector.broadcast %cst_12 : f32 to vector<32x96xf32>
    %16 = arith.maximumf %11, %15 : vector<32x96xf32>
    %17 = vector.shape_cast %14 : vector<1x96xi1> to vector<1x96xi1>
    %18 = vector.broadcast %17 : vector<1x96xi1> to vector<32x96xi1>
    %19 = arith.select %18, %16, %11 : vector<32x96xi1>, vector<32x96xf32>
    %c0_13 = arith.constant 0 : index
    %c0_14 = arith.constant 0 : index
    %20 = vector.load %arg7[%c0_13, %c0_14] : memref<32x96xf32, #tpu.memory_space<vmem>>, vector<32x96xf32>
    tpu.vector_store %arg7[%c0_13, %c0_14], %19 {strides = array<i32>} : memref<32x96xf32, #tpu.memory_space<vmem>>, vector<32x96xf32>,
    return
  }
  func.func @transform_0(%arg0: i32) -> (i32, i32) {
    %c0_i32 = arith.constant 0 : i32
    %c0_i32_0 = arith.constant 0 : i32
    return %arg0, %c0_i32 : i32, i32
  }
  func.func @transform_1(%arg0: i32) -> (i32, i32) {
    %c0_i32 = arith.constant 0 : i32
    %c0_i32_0 = arith.constant 0 : i32
    %c0_i32_1 = arith.constant 0 : i32
    return %c0_i32, %c0_i32_0 : i32, i32
  }
  func.func @transform_2(%arg0: i32) -> (i32, i32) {
    %c0_i32 = arith.constant 0 : i32
    %c0_i32_0 = arith.constant 0 : i32
    %c0_i32_1 = arith.constant 0 : i32
    return %c0_i32, %c0_i32_0 : i32, i32
  }
  func.func @transform_3(%arg0: i32) -> (i32, i32) {
    %c0_i32 = arith.constant 0 : i32
    %c0_i32_0 = arith.constant 0 : i32
    %c0_i32_1 = arith.constant 0 : i32
    return %c0_i32, %c0_i32_0 : i32, i32
  }
  func.func @transform_4(%arg0: i32) -> (i32, i32) {
    %c0_i32 = arith.constant 0 : i32
    %c0_i32_0 = arith.constant 0 : i32
    %c0_i32_1 = arith.constant 0 : i32
    return %c0_i32, %c0_i32_0 : i32, i32
  }
  func.func @transform_5(%arg0: i32) -> (i32, i32) {
    %c0_i32 = arith.constant 0 : i32
    %c0_i32_0 = arith.constant 0 : i32
    %c0_i32_1 = arith.constant 0 : i32
    return %c0_i32, %c0_i32_0 : i32, i32
  }
  func.func @transform_6(%arg0: i32) -> (i32, i32) {
    %c0_i32 = arith.constant 0 : i32
    %c0_i32_0 = arith.constant 0 : i32
    return %arg0, %c0_i32 : i32, i32
  }
}

module attributes {stable_mosaic.version = 11 : i64} {
  func.func @_linear_res_kernel(%arg0: i32, %arg1: memref<32x32xf32, #tpu.memory_space<vmem>>, %arg2: memref<32x32xf32, #tpu.memory_space<vmem>>, %arg3: memref<1x32xf32, #tpu.memory_space<vmem>>, %arg4: memref<1x32xf32, #tpu.memory_space<vmem>>, %arg5: memref<1x32xf32, #tpu.memory_space<vmem>>, %arg6: memref<32x32xf32, #tpu.memory_space<vmem>>, %arg7: memref<32x32xf32, #tpu.memory_space<vmem>>) attributes {dimension_semantics = [#tpu.dimension_semantics<parallel>], iteration_bounds = array<i64: 1>, scalar_prefetch = 0 : i64, scratch_operands = 0 : i64, tpu.core_type = #tpu.core_type<tc>, window_params = [{transform_indices = @transform_0, window_bounds = array<i64: 32, 32>}, {pipeline_mode = #tpu.pipeline_mode<synchronous>, transform_indices = @transform_1, window_bounds = array<i64: 32, 32>}, {pipeline_mode = #tpu.pipeline_mode<synchronous>, transform_indices = @transform_2, window_bounds = array<i64: 1, 32>}, {pipeline_mode = #tpu.pipeline_mode<synchronous>, transform_indices = @transform_3, window_bounds = array<i64: 1, 32>}, {pipeline_mode = #tpu.pipeline_mode<synchronous>, transform_indices = @transform_4, window_bounds = array<i64: 1, 32>}, {transform_indices = @transform_5, window_bounds = array<i64: 32, 32>}, {transform_indices = @transform_6, window_bounds = array<i64: 32, 32>}]} {
    %c0 = arith.constant 0 : index
    %c0_0 = arith.constant 0 : index
    %0 = vector.load %arg1[%c0, %c0_0] : memref<32x32xf32, #tpu.memory_space<vmem>>, vector<32x32xf32>
    %c0_1 = arith.constant 0 : index
    %c0_2 = arith.constant 0 : index
    %1 = vector.load %arg2[%c0_1, %c0_2] : memref<32x32xf32, #tpu.memory_space<vmem>>, vector<32x32xf32>
    %cst = arith.constant dense<0.000000e+00> : vector<32x32xf32>
    %2 = tpu.matmul %0, %1, %cst {dimension_numbers = #tpu.dot_dimension_numbers<[1], [0], [0], [1], [0, 0, 1, 1], [], []>} : vector<32x32xf32>, vector<32x32xf32>, vector<32x32xf32> -> vector<32x32xf32>
    %c0_3 = arith.constant 0 : index
    %c0_4 = arith.constant 0 : index
    %3 = vector.load %arg3[%c0_3, %c0_4] : memref<1x32xf32, #tpu.memory_space<vmem>>, vector<1x32xf32>
    %4 = vector.broadcast %3 : vector<1x32xf32> to vector<32x32xf32>
    %5 = arith.addf %2, %4 : vector<32x32xf32>
    %c0_5 = arith.constant 0 : index
    %c0_6 = arith.constant 0 : index
    %6 = vector.load %arg4[%c0_5, %c0_6] : memref<1x32xf32, #tpu.memory_space<vmem>>, vector<1x32xf32>
    %7 = vector.broadcast %6 : vector<1x32xf32> to vector<32x32xf32>
    %8 = arith.mulf %5, %7 : vector<32x32xf32>
    %c0_7 = arith.constant 0 : index
    %c0_8 = arith.constant 0 : index
    %9 = vector.load %arg5[%c0_7, %c0_8] : memref<1x32xf32, #tpu.memory_space<vmem>>, vector<1x32xf32>
    %10 = vector.broadcast %9 : vector<1x32xf32> to vector<32x32xf32>
    %11 = arith.addf %8, %10 : vector<32x32xf32>
    %c0_9 = arith.constant 0 : index
    %c0_10 = arith.constant 0 : index
    %12 = vector.load %arg6[%c0_9, %c0_10] : memref<32x32xf32, #tpu.memory_space<vmem>>, vector<32x32xf32>
    %13 = arith.addf %11, %12 : vector<32x32xf32>
    %cst_11 = arith.constant 0.000000e+00 : f32
    %14 = vector.broadcast %cst_11 : f32 to vector<32x32xf32>
    %15 = arith.maximumf %13, %14 : vector<32x32xf32>
    %c0_12 = arith.constant 0 : index
    %c0_13 = arith.constant 0 : index
    %16 = vector.load %arg7[%c0_12, %c0_13] : memref<32x32xf32, #tpu.memory_space<vmem>>, vector<32x32xf32>
    tpu.vector_store %arg7[%c0_12, %c0_13], %15 {strides = array<i32>} : memref<32x32xf32, #tpu.memory_space<vmem>>, vector<32x32xf32>,
    return
  }
  func.func @transform_0(%arg0: i32) -> (i32, i32) {
    %c0_i32 = arith.constant 0 : i32
    %c0_i32_0 = arith.constant 0 : i32
    return %arg0, %c0_i32 : i32, i32
  }
  func.func @transform_1(%arg0: i32) -> (i32, i32) {
    %c0_i32 = arith.constant 0 : i32
    %c0_i32_0 = arith.constant 0 : i32
    %c0_i32_1 = arith.constant 0 : i32
    return %c0_i32, %c0_i32_0 : i32, i32
  }
  func.func @transform_2(%arg0: i32) -> (i32, i32) {
    %c0_i32 = arith.constant 0 : i32
    %c0_i32_0 = arith.constant 0 : i32
    %c0_i32_1 = arith.constant 0 : i32
    return %c0_i32, %c0_i32_0 : i32, i32
  }
  func.func @transform_3(%arg0: i32) -> (i32, i32) {
    %c0_i32 = arith.constant 0 : i32
    %c0_i32_0 = arith.constant 0 : i32
    %c0_i32_1 = arith.constant 0 : i32
    return %c0_i32, %c0_i32_0 : i32, i32
  }
  func.func @transform_4(%arg0: i32) -> (i32, i32) {
    %c0_i32 = arith.constant 0 : i32
    %c0_i32_0 = arith.constant 0 : i32
    %c0_i32_1 = arith.constant 0 : i32
    return %c0_i32, %c0_i32_0 : i32, i32
  }
  func.func @transform_5(%arg0: i32) -> (i32, i32) {
    %c0_i32 = arith.constant 0 : i32
    %c0_i32_0 = arith.constant 0 : i32
    return %arg0, %c0_i32 : i32, i32
  }
  func.func @transform_6(%arg0: i32) -> (i32, i32) {
    %c0_i32 = arith.constant 0 : i32
    %c0_i32_0 = arith.constant 0 : i32
    return %arg0, %c0_i32 : i32, i32
  }
}

module attributes {stable_mosaic.version = 11 : i64} {
  func.func @_gva_kernel(%arg0: i32, %arg1: memref<32x32xf32, #tpu.memory_space<vmem>>, %arg2: memref<32x8x32xf32, #tpu.memory_space<vmem>>, %arg3: memref<32x8x32xf32, #tpu.memory_space<vmem>>, %arg4: memref<32x8x3xf32, #tpu.memory_space<vmem>>, %arg5: memref<32x8x1xf32, #tpu.memory_space<vmem>>, %arg6: memref<3x32xf32, #tpu.memory_space<vmem>>, %arg7: memref<1x32xf32, #tpu.memory_space<vmem>>, %arg8: memref<1x32xf32, #tpu.memory_space<vmem>>, %arg9: memref<1x32xf32, #tpu.memory_space<vmem>>, %arg10: memref<32x32xf32, #tpu.memory_space<vmem>>, %arg11: memref<1x32xf32, #tpu.memory_space<vmem>>, %arg12: memref<32x4xf32, #tpu.memory_space<vmem>>, %arg13: memref<1x4xf32, #tpu.memory_space<vmem>>, %arg14: memref<1x4xf32, #tpu.memory_space<vmem>>, %arg15: memref<1x4xf32, #tpu.memory_space<vmem>>, %arg16: memref<4x4xf32, #tpu.memory_space<vmem>>, %arg17: memref<1x4xf32, #tpu.memory_space<vmem>>, %arg18: memref<4x32xf32, #tpu.memory_space<vmem>>, %arg19: memref<1x32xf32, #tpu.memory_space<vmem>>, %arg20: memref<1x32xf32, #tpu.memory_space<vmem>>, %arg21: memref<32x32xf32, #tpu.memory_space<vmem>>) attributes {dimension_semantics = [#tpu.dimension_semantics<parallel>], iteration_bounds = array<i64: 1>, scalar_prefetch = 0 : i64, scratch_operands = 0 : i64, tpu.core_type = #tpu.core_type<tc>, window_params = [{transform_indices = @transform_0, window_bounds = array<i64: 32, 32>}, {transform_indices = @transform_1, window_bounds = array<i64: 32, 8, 32>}, {transform_indices = @transform_2, window_bounds = array<i64: 32, 8, 32>}, {transform_indices = @transform_3, window_bounds = array<i64: 32, 8, 3>}, {transform_indices = @transform_4, window_bounds = array<i64: 32, 8, 1>}, {pipeline_mode = #tpu.pipeline_mode<synchronous>, transform_indices = @transform_5, window_bounds = array<i64: 3, 32>}, {pipeline_mode = #tpu.pipeline_mode<synchronous>, transform_indices = @transform_6, window_bounds = array<i64: 1, 32>}, {pipeline_mode = #tpu.pipeline_mode<synchronous>, transform_indices = @transform_7, window_bounds = array<i64: 1, 32>}, {pipeline_mode = #tpu.pipeline_mode<synchronous>, transform_indices = @transform_8, window_bounds = array<i64: 1, 32>}, {pipeline_mode = #tpu.pipeline_mode<synchronous>, transform_indices = @transform_9, window_bounds = array<i64: 32, 32>}, {pipeline_mode = #tpu.pipeline_mode<synchronous>, transform_indices = @transform_10, window_bounds = array<i64: 1, 32>}, {pipeline_mode = #tpu.pipeline_mode<synchronous>, transform_indices = @transform_11, window_bounds = array<i64: 32, 4>}, {pipeline_mode = #tpu.pipeline_mode<synchronous>, transform_indices = @transform_12, window_bounds = array<i64: 1, 4>}, {pipeline_mode = #tpu.pipeline_mode<synchronous>, transform_indices = @transform_13, window_bounds = array<i64: 1, 4>}, {pipeline_mode = #tpu.pipeline_mode<synchronous>, transform_indices = @transform_14, window_bounds = array<i64: 1, 4>}, {pipeline_mode = #tpu.pipeline_mode<synchronous>, transform_indices = @transform_15, window_bounds = array<i64: 4, 4>}, {pipeline_mode = #tpu.pipeline_mode<synchronous>, transform_indices = @transform_16, window_bounds = array<i64: 1, 4>}, {pipeline_mode = #tpu.pipeline_mode<synchronous>, transform_indices = @transform_17, window_bounds = array<i64: 4, 32>}, {pipeline_mode = #tpu.pipeline_mode<synchronous>, transform_indices = @transform_18, window_bounds = array<i64: 1, 32>}, {pipeline_mode = #tpu.pipeline_mode<synchronous>, transform_indices = @transform_19, window_bounds = array<i64: 1, 32>}, {transform_indices = @transform_20, window_bounds = array<i64: 32, 32>}]} {
    %c0 = arith.constant 0 : index
    %c0_0 = arith.constant 0 : index
    %0 = vector.load %arg1[%c0, %c0_0] : memref<32x32xf32, #tpu.memory_space<vmem>>, vector<32x32xf32>
    %c0_1 = arith.constant 0 : index
    %c0_2 = arith.constant 0 : index
    %c0_3 = arith.constant 0 : index
    %1 = vector.load %arg2[%c0_1, %c0_2, %c0_3] : memref<32x8x32xf32, #tpu.memory_space<vmem>>, vector<32x8x32xf32>
    %c0_4 = arith.constant 0 : index
    %c0_5 = arith.constant 0 : index
    %c0_6 = arith.constant 0 : index
    %2 = vector.load %arg3[%c0_4, %c0_5, %c0_6] : memref<32x8x32xf32, #tpu.memory_space<vmem>>, vector<32x8x32xf32>
    %c0_7 = arith.constant 0 : index
    %c0_8 = arith.constant 0 : index
    %c0_9 = arith.constant 0 : index
    %3 = vector.load %arg4[%c0_7, %c0_8, %c0_9] : memref<32x8x3xf32, #tpu.memory_space<vmem>>, vector<32x8x3xf32>
    %4 = vector.shape_cast %3 : vector<32x8x3xf32> to vector<256x3xf32>
    %c0_10 = arith.constant 0 : index
    %c0_11 = arith.constant 0 : index
    %5 = vector.load %arg6[%c0_10, %c0_11] : memref<3x32xf32, #tpu.memory_space<vmem>>, vector<3x32xf32>
    %cst = arith.constant dense<0.000000e+00> : vector<256x32xf32>
    %6 = tpu.matmul %4, %5, %cst {dimension_numbers = #tpu.dot_dimension_numbers<[1], [0], [0], [1], [0, 0, 1, 1], [], []>} : vector<256x3xf32>, vector<3x32xf32>, vector<256x32xf32> -> vector<256x32xf32>
    %c0_12 = arith.constant 0 : index
    %c0_13 = arith.constant 0 : index
    %7 = vector.load %arg7[%c0_12, %c0_13] : memref<1x32xf32, #tpu.memory_space<vmem>>, vector<1x32xf32>
    %8 = vector.broadcast %7 : vector<1x32xf32> to vector<256x32xf32>
    %9 = arith.addf %6, %8 : vector<256x32xf32>
    %c0_14 = arith.constant 0 : index
    %c0_15 = arith.constant 0 : index
    %10 = vector.load %arg8[%c0_14, %c0_15] : memref<1x32xf32, #tpu.memory_space<vmem>>, vector<1x32xf32>
    %11 = vector.broadcast %10 : vector<1x32xf32> to vector<256x32xf32>
    %12 = arith.mulf %9, %11 : vector<256x32xf32>
    %c0_16 = arith.constant 0 : index
    %c0_17 = arith.constant 0 : index
    %13 = vector.load %arg9[%c0_16, %c0_17] : memref<1x32xf32, #tpu.memory_space<vmem>>, vector<1x32xf32>
    %14 = vector.broadcast %13 : vector<1x32xf32> to vector<256x32xf32>
    %15 = arith.addf %12, %14 : vector<256x32xf32>
    %cst_18 = arith.constant 0.000000e+00 : f32
    %16 = vector.broadcast %cst_18 : f32 to vector<256x32xf32>
    %17 = arith.maximumf %15, %16 : vector<256x32xf32>
    %c0_19 = arith.constant 0 : index
    %c0_20 = arith.constant 0 : index
    %18 = vector.load %arg10[%c0_19, %c0_20] : memref<32x32xf32, #tpu.memory_space<vmem>>, vector<32x32xf32>
    %cst_21 = arith.constant dense<0.000000e+00> : vector<256x32xf32>
    %19 = tpu.matmul %17, %18, %cst_21 {dimension_numbers = #tpu.dot_dimension_numbers<[1], [0], [0], [1], [0, 0, 1, 1], [], []>} : vector<256x32xf32>, vector<32x32xf32>, vector<256x32xf32> -> vector<256x32xf32>
    %c0_22 = arith.constant 0 : index
    %c0_23 = arith.constant 0 : index
    %20 = vector.load %arg11[%c0_22, %c0_23] : memref<1x32xf32, #tpu.memory_space<vmem>>, vector<1x32xf32>
    %21 = vector.broadcast %20 : vector<1x32xf32> to vector<256x32xf32>
    %22 = arith.addf %19, %21 : vector<256x32xf32>
    %23 = vector.shape_cast %0 : vector<32x32xf32> to vector<32x1x32xf32>
    %24 = vector.broadcast %23 : vector<32x1x32xf32> to vector<32x8x32xf32>
    %25 = arith.subf %1, %24 : vector<32x8x32xf32>
    %26 = vector.shape_cast %25 : vector<32x8x32xf32> to vector<256x32xf32>
    %27 = arith.addf %26, %22 : vector<256x32xf32>
    %c0_24 = arith.constant 0 : index
    %c0_25 = arith.constant 0 : index
    %28 = vector.load %arg12[%c0_24, %c0_25] : memref<32x4xf32, #tpu.memory_space<vmem>>, vector<32x4xf32>
    %cst_26 = arith.constant dense<0.000000e+00> : vector<256x4xf32>
    %29 = tpu.matmul %27, %28, %cst_26 {dimension_numbers = #tpu.dot_dimension_numbers<[1], [0], [0], [1], [0, 0, 1, 1], [], []>} : vector<256x32xf32>, vector<32x4xf32>, vector<256x4xf32> -> vector<256x4xf32>
    %c0_27 = arith.constant 0 : index
    %c0_28 = arith.constant 0 : index
    %30 = vector.load %arg13[%c0_27, %c0_28] : memref<1x4xf32, #tpu.memory_space<vmem>>, vector<1x4xf32>
    %31 = vector.broadcast %30 : vector<1x4xf32> to vector<256x4xf32>
    %32 = arith.addf %29, %31 : vector<256x4xf32>
    %c0_29 = arith.constant 0 : index
    %c0_30 = arith.constant 0 : index
    %33 = vector.load %arg14[%c0_29, %c0_30] : memref<1x4xf32, #tpu.memory_space<vmem>>, vector<1x4xf32>
    %34 = vector.broadcast %33 : vector<1x4xf32> to vector<256x4xf32>
    %35 = arith.mulf %32, %34 : vector<256x4xf32>
    %c0_31 = arith.constant 0 : index
    %c0_32 = arith.constant 0 : index
    %36 = vector.load %arg15[%c0_31, %c0_32] : memref<1x4xf32, #tpu.memory_space<vmem>>, vector<1x4xf32>
    %37 = vector.broadcast %36 : vector<1x4xf32> to vector<256x4xf32>
    %38 = arith.addf %35, %37 : vector<256x4xf32>
    %cst_33 = arith.constant 0.000000e+00 : f32
    %39 = vector.broadcast %cst_33 : f32 to vector<256x4xf32>
    %40 = arith.maximumf %38, %39 : vector<256x4xf32>
    %c0_34 = arith.constant 0 : index
    %c0_35 = arith.constant 0 : index
    %41 = vector.load %arg16[%c0_34, %c0_35] : memref<4x4xf32, #tpu.memory_space<vmem>>, vector<4x4xf32>
    %cst_36 = arith.constant dense<0.000000e+00> : vector<256x4xf32>
    %42 = tpu.matmul %40, %41, %cst_36 {dimension_numbers = #tpu.dot_dimension_numbers<[1], [0], [0], [1], [0, 0, 1, 1], [], []>} : vector<256x4xf32>, vector<4x4xf32>, vector<256x4xf32> -> vector<256x4xf32>
    %c0_37 = arith.constant 0 : index
    %c0_38 = arith.constant 0 : index
    %43 = vector.load %arg17[%c0_37, %c0_38] : memref<1x4xf32, #tpu.memory_space<vmem>>, vector<1x4xf32>
    %44 = vector.broadcast %43 : vector<1x4xf32> to vector<256x4xf32>
    %45 = arith.addf %42, %44 : vector<256x4xf32>
    %46 = vector.shape_cast %45 : vector<256x4xf32> to vector<32x8x4xf32>
    %cst_39 = arith.constant dense<0xFF800000> : vector<32x4xf32>
    %47 = vector.multi_reduction <maximumf>, %46, %cst_39 [1] : vector<32x8x4xf32> to vector<32x4xf32>
    %48 = vector.shape_cast %47 : vector<32x4xf32> to vector<32x1x4xf32>
    %49 = vector.broadcast %48 : vector<32x1x4xf32> to vector<32x8x4xf32>
    %50 = arith.subf %46, %49 : vector<32x8x4xf32>
    %51 = math.exp %50 : vector<32x8x4xf32>
    %cst_40 = arith.constant dense<0.000000e+00> : vector<32x4xf32>
    %52 = vector.multi_reduction <add>, %51, %cst_40 [1] : vector<32x8x4xf32> to vector<32x4xf32>
    %53 = vector.shape_cast %52 : vector<32x4xf32> to vector<32x1x4xf32>
    %54 = vector.broadcast %53 : vector<32x1x4xf32> to vector<32x8x4xf32>
    %55 = arith.divf %51, %54 : vector<32x8x4xf32>
    %c0_41 = arith.constant 0 : index
    %c0_42 = arith.constant 0 : index
    %c0_43 = arith.constant 0 : index
    %56 = vector.load %arg5[%c0_41, %c0_42, %c0_43] : memref<32x8x1xf32, #tpu.memory_space<vmem>>, vector<32x8x1xf32>
    %57 = vector.broadcast %56 : vector<32x8x1xf32> to vector<32x8x4xf32>
    %58 = arith.mulf %55, %57 : vector<32x8x4xf32>
    %59 = vector.shape_cast %58 : vector<32x8x4xf32> to vector<256x4xf32>
    %c0_44 = arith.constant 0 : index
    %c0_45 = arith.constant 0 : index
    %60 = vector.load %arg18[%c0_44, %c0_45] : memref<4x32xf32, #tpu.memory_space<vmem>>, vector<4x32xf32>
    %cst_46 = arith.constant dense<0.000000e+00> : vector<256x32xf32>
    %61 = tpu.matmul %59, %60, %cst_46 {dimension_numbers = #tpu.dot_dimension_numbers<[1], [0], [0], [1], [0, 0, 1, 1], [], []>} : vector<256x4xf32>, vector<4x32xf32>, vector<256x32xf32> -> vector<256x32xf32>
    %62 = vector.shape_cast %61 : vector<256x32xf32> to vector<32x8x32xf32>
    %63 = vector.shape_cast %22 : vector<256x32xf32> to vector<32x8x32xf32>
    %64 = arith.addf %2, %63 : vector<32x8x32xf32>
    %65 = arith.mulf %64, %62 : vector<32x8x32xf32>
    %cst_47 = arith.constant dense<0.000000e+00> : vector<32x32xf32>
    %66 = vector.multi_reduction <add>, %65, %cst_47 [1] : vector<32x8x32xf32> to vector<32x32xf32>
    %c0_48 = arith.constant 0 : index
    %c0_49 = arith.constant 0 : index
    %67 = vector.load %arg19[%c0_48, %c0_49] : memref<1x32xf32, #tpu.memory_space<vmem>>, vector<1x32xf32>
    %68 = vector.broadcast %67 : vector<1x32xf32> to vector<32x32xf32>
    %69 = arith.mulf %66, %68 : vector<32x32xf32>
    %c0_50 = arith.constant 0 : index
    %c0_51 = arith.constant 0 : index
    %70 = vector.load %arg20[%c0_50, %c0_51] : memref<1x32xf32, #tpu.memory_space<vmem>>, vector<1x32xf32>
    %71 = vector.broadcast %70 : vector<1x32xf32> to vector<32x32xf32>
    %72 = arith.addf %69, %71 : vector<32x32xf32>
    %cst_52 = arith.constant 0.000000e+00 : f32
    %73 = vector.broadcast %cst_52 : f32 to vector<32x32xf32>
    %74 = arith.maximumf %72, %73 : vector<32x32xf32>
    %c0_53 = arith.constant 0 : index
    %c0_54 = arith.constant 0 : index
    %75 = vector.load %arg21[%c0_53, %c0_54] : memref<32x32xf32, #tpu.memory_space<vmem>>, vector<32x32xf32>
    tpu.vector_store %arg21[%c0_53, %c0_54], %74 {strides = array<i32>} : memref<32x32xf32, #tpu.memory_space<vmem>>, vector<32x32xf32>,
    return
  }
  func.func @transform_0(%arg0: i32) -> (i32, i32) {
    %c0_i32 = arith.constant 0 : i32
    %c0_i32_0 = arith.constant 0 : i32
    return %arg0, %c0_i32 : i32, i32
  }
  func.func @transform_1(%arg0: i32) -> (i32, i32, i32) {
    %c0_i32 = arith.constant 0 : i32
    %c0_i32_0 = arith.constant 0 : i32
    %c0_i32_1 = arith.constant 0 : i32
    return %arg0, %c0_i32, %c0_i32_0 : i32, i32, i32
  }
  func.func @transform_2(%arg0: i32) -> (i32, i32, i32) {
    %c0_i32 = arith.constant 0 : i32
    %c0_i32_0 = arith.constant 0 : i32
    %c0_i32_1 = arith.constant 0 : i32
    return %arg0, %c0_i32, %c0_i32_0 : i32, i32, i32
  }
  func.func @transform_3(%arg0: i32) -> (i32, i32, i32) {
    %c0_i32 = arith.constant 0 : i32
    %c0_i32_0 = arith.constant 0 : i32
    %c0_i32_1 = arith.constant 0 : i32
    return %arg0, %c0_i32, %c0_i32_0 : i32, i32, i32
  }
  func.func @transform_4(%arg0: i32) -> (i32, i32, i32) {
    %c0_i32 = arith.constant 0 : i32
    %c0_i32_0 = arith.constant 0 : i32
    %c0_i32_1 = arith.constant 0 : i32
    return %arg0, %c0_i32, %c0_i32_0 : i32, i32, i32
  }
  func.func @transform_5(%arg0: i32) -> (i32, i32) {
    %c0_i32 = arith.constant 0 : i32
    %c0_i32_0 = arith.constant 0 : i32
    %c0_i32_1 = arith.constant 0 : i32
    return %c0_i32, %c0_i32_0 : i32, i32
  }
  func.func @transform_6(%arg0: i32) -> (i32, i32) {
    %c0_i32 = arith.constant 0 : i32
    %c0_i32_0 = arith.constant 0 : i32
    %c0_i32_1 = arith.constant 0 : i32
    return %c0_i32, %c0_i32_0 : i32, i32
  }
  func.func @transform_7(%arg0: i32) -> (i32, i32) {
    %c0_i32 = arith.constant 0 : i32
    %c0_i32_0 = arith.constant 0 : i32
    %c0_i32_1 = arith.constant 0 : i32
    return %c0_i32, %c0_i32_0 : i32, i32
  }
  func.func @transform_8(%arg0: i32) -> (i32, i32) {
    %c0_i32 = arith.constant 0 : i32
    %c0_i32_0 = arith.constant 0 : i32
    %c0_i32_1 = arith.constant 0 : i32
    return %c0_i32, %c0_i32_0 : i32, i32
  }
  func.func @transform_9(%arg0: i32) -> (i32, i32) {
    %c0_i32 = arith.constant 0 : i32
    %c0_i32_0 = arith.constant 0 : i32
    %c0_i32_1 = arith.constant 0 : i32
    return %c0_i32, %c0_i32_0 : i32, i32
  }
  func.func @transform_10(%arg0: i32) -> (i32, i32) {
    %c0_i32 = arith.constant 0 : i32
    %c0_i32_0 = arith.constant 0 : i32
    %c0_i32_1 = arith.constant 0 : i32
    return %c0_i32, %c0_i32_0 : i32, i32
  }
  func.func @transform_11(%arg0: i32) -> (i32, i32) {
    %c0_i32 = arith.constant 0 : i32
    %c0_i32_0 = arith.constant 0 : i32
    %c0_i32_1 = arith.constant 0 : i32
    return %c0_i32, %c0_i32_0 : i32, i32
  }
  func.func @transform_12(%arg0: i32) -> (i32, i32) {
    %c0_i32 = arith.constant 0 : i32
    %c0_i32_0 = arith.constant 0 : i32
    %c0_i32_1 = arith.constant 0 : i32
    return %c0_i32, %c0_i32_0 : i32, i32
  }
  func.func @transform_13(%arg0: i32) -> (i32, i32) {
    %c0_i32 = arith.constant 0 : i32
    %c0_i32_0 = arith.constant 0 : i32
    %c0_i32_1 = arith.constant 0 : i32
    return %c0_i32, %c0_i32_0 : i32, i32
  }
  func.func @transform_14(%arg0: i32) -> (i32, i32) {
    %c0_i32 = arith.constant 0 : i32
    %c0_i32_0 = arith.constant 0 : i32
    %c0_i32_1 = arith.constant 0 : i32
    return %c0_i32, %c0_i32_0 : i32, i32
  }
  func.func @transform_15(%arg0: i32) -> (i32, i32) {
    %c0_i32 = arith.constant 0 : i32
    %c0_i32_0 = arith.constant 0 : i32
    %c0_i32_1 = arith.constant 0 : i32
    return %c0_i32, %c0_i32_0 : i32, i32
  }
  func.func @transform_16(%arg0: i32) -> (i32, i32) {
    %c0_i32 = arith.constant 0 : i32
    %c0_i32_0 = arith.constant 0 : i32
    %c0_i32_1 = arith.constant 0 : i32
    return %c0_i32, %c0_i32_0 : i32, i32
  }
  func.func @transform_17(%arg0: i32) -> (i32, i32) {
    %c0_i32 = arith.constant 0 : i32
    %c0_i32_0 = arith.constant 0 : i32
    %c0_i32_1 = arith.constant 0 : i32
    return %c0_i32, %c0_i32_0 : i32, i32
  }
  func.func @transform_18(%arg0: i32) -> (i32, i32) {
    %c0_i32 = arith.constant 0 : i32
    %c0_i32_0 = arith.constant 0 : i32
    %c0_i32_1 = arith.constant 0 : i32
    return %c0_i32, %c0_i32_0 : i32, i32
  }
  func.func @transform_19(%arg0: i32) -> (i32, i32) {
    %c0_i32 = arith.constant 0 : i32
    %c0_i32_0 = arith.constant 0 : i32
    %c0_i32_1 = arith.constant 0 : i32
    return %c0_i32, %c0_i32_0 : i32, i32
  }
  func.func @transform_20(%arg0: i32) -> (i32, i32) {
    %c0_i32 = arith.constant 0 : i32
    %c0_i32_0 = arith.constant 0 : i32
    return %arg0, %c0_i32 : i32, i32
  }
}

</mosaic_0001>

<llo_original>
// kernel: decoder_forward.7
$region0: #{decoder_forward.7}
  #allocation0 [shape = 'u32[]', space=smem, size = 0x4, offset = 0x4, fixed_abs, tag = 'smem constant byte address 0x4 - core index']
  #allocation1 [shape = 'u32[144,128]{1,0:T(1,128)}', space=vmem, size = 0x12000, scoped, tag = 'internal scratch']
  %s0 = inlined_call_operand.vmem [shape: f32[32,32], index: 0, kind: input, shape index: {}]
  %s1 = inlined_call_operand.vmem [shape: f32[32,32], index: 1, kind: input, shape index: {}]
  %s2 = inlined_call_operand.vmem [shape: f32[1,32], index: 2, kind: input, shape index: {}]
  %s3 = inlined_call_operand.vmem [shape: f32[1,32], index: 3, kind: input, shape index: {}]
  %s4 = inlined_call_operand.vmem [shape: f32[1,32], index: 4, kind: input, shape index: {}]
  %s5 = inlined_call_operand.vmem [shape: f32[32,32], index: 5, kind: input, shape index: {}]
  %s6 = inlined_call_operand.vmem [shape: f32[32,32], index: 6, kind: output, shape index: {}]
  %s7 = sld [smem:[#allocation0]]
  $region34: #{decoder_forward.7} parent=0
    _
  %s9 = ssub.s32 1, %s7
  %s10 = scalar_select 0, %s9, %s7
  // Predicated region
  $region2: #{decoder_forward.7} parent=0 // pred_check
    _
  $region3: #{decoder_forward.7} parent=0 // pred_check_branch
    %12 = sbr.rel (0) target = $region5
  $region4: #{decoder_forward.7} parent=0 // pred_region
    _
  $region5: #{decoder_forward.7} parent=0 // pred_fallthru
    _
  // Predicated region
  $region6: #{decoder_forward.7} parent=0 // pred_check
    _
  $region7: #{decoder_forward.7} parent=0 // pred_check_branch
    %14 = sbr.rel (0) target = $region9
  $region8: #{decoder_forward.7} parent=0 // pred_region
    _
  $region9: #{decoder_forward.7} parent=0 // pred_fallthru
    _
  // Predicated region
  $region10: #{decoder_forward.7} parent=0 // pred_check
    _
  $region11: #{decoder_forward.7} parent=0 // pred_check_branch
    %16 = sbr.rel (0) target = $region13
  $region12: #{decoder_forward.7} parent=0 // pred_region
    _
  $region13: #{decoder_forward.7} parent=0 // pred_fallthru
    _
  // Predicated region
  $region14: #{decoder_forward.7} parent=0 // pred_check
    _
  $region15: #{decoder_forward.7} parent=0 // pred_check_branch
    %18 = sbr.rel (0) target = $region17
  $region16: #{decoder_forward.7} parent=0 // pred_region
    _
  $region17: #{decoder_forward.7} parent=0 // pred_fallthru
    _
  // Predicated region
  $region18: #{decoder_forward.7} parent=0 // pred_check
    _
  $region19: #{decoder_forward.7} parent=0 // pred_check_branch
    %20 = sbr.rel (0) target = $region21
  $region20: #{decoder_forward.7} parent=0 // pred_region
    _
  $region21: #{decoder_forward.7} parent=0 // pred_fallthru
    _
  // Predicated region
  $region22: #{decoder_forward.7} parent=0 // pred_check
    _
  $region23: #{decoder_forward.7} parent=0 // pred_check_branch
    %22 = sbr.rel (0) target = $region25
  $region24: #{decoder_forward.7} parent=0 // pred_region
    _
  $region25: #{decoder_forward.7} parent=0 // pred_fallthru
    _
  %v23 = vld [vmem:[%s0] sm:$0xff]
  %v24 = vld [vmem:[%s0 + $0x8] sm:$0xff]
  %v25 = vld [vmem:[%s0 + $0x10] sm:$0xff]
  %v26 = vld [vmem:[%s0 + $0x18] sm:$0xff]
  %v27 = vld [vmem:[%s1] sm:$0xff]
  %v28 = vld [vmem:[%s1 + $0x8] sm:$0xff]
  %v29 = vld [vmem:[%s1 + $0x10] sm:$0xff]
  %v30 = vld [vmem:[%s1 + $0x18] sm:$0xff]
  %v31 = vld [vmem:[%s2] sm:$0x1]
  %v33 = vlaneseq
  %v34 = vshrl.u32 %v33, 7
  %v35 = vsub.s32 0, %v34
  %v36 = vrot.slane %v31, %v35
  %vm38 = vcmask 261120
  %v40 = vsel %vm38, %v23, 0
  %v43 = vsel %vm38, %v24, 0
  %v46 = vsel %vm38, %v25, 0
  %v49 = vsel %vm38, %v26, 0
  %51 = vmatprep.subr.mxu0 0.0
  %52 = vmatpush1.msra.mxu0 %v27
  %53 = vmatprep.subr.mxu0 0.0
  %54 = vmatpush1.msra.mxu0 %v28
  %55 = vmatprep.subr.mxu0 0.0
  %56 = vmatpush1.msra.mxu0 %v29
  %57 = vmatprep.subr.mxu0 0.0
  %58 = vmatpush1.msra.mxu0 %v30
  %59 = vmatprep.subr.mxu0 0.0
  %60 = vmatpush1.msra.mxu0 0.0
  %61 = vmatprep.subr.mxu0 0.0
  %62 = vmatpush1.msra.mxu0 0.0
  %63 = vmatprep.subr.mxu0 0.0
  %64 = vmatpush1.msra.mxu0 0.0
  %65 = vmatprep.subr.mxu0 0.0
  %66 = vmatpush1.msra.mxu0 0.0
  %67 = vmatprep.subr.mxu0 0.0
  %68 = vmatpush1.msra.mxu0 0.0
  %69 = vmatprep.subr.mxu0 0.0
  %70 = vmatpush1.msra.mxu0 0.0
  %71 = vmatprep.subr.mxu0 0.0
  %72 = vmatpush1.msra.mxu0 0.0
  %73 = vmatprep.subr.mxu0 0.0
  %74 = vmatpush1.msra.mxu0 0.0
  %75 = vmatprep.subr.mxu0 0.0
  %76 = vmatpush1.msra.mxu0 0.0
  %77 = vmatprep.subr.mxu0 0.0
  %78 = vmatpush1.msra.mxu0 0.0
  %79 = vmatprep.subr.mxu0 0.0
  %80 = vmatpush1.msra.mxu0 0.0
  %81 = vmatprep.subr.mxu0 0.0
  %82 = vmatpush1.msra.mxu0 0.0
  %83 = vmatprep.subr.mxu0 0.0
  %84 = vmatpush1.msra.mxu0 0.0
  %85 = vmatprep.subr.mxu0 0.0
  %86 = vmatpush1.msra.mxu0 0.0
  %87 = vmatprep.subr.mxu0 0.0
  %88 = vmatpush1.msra.mxu0 0.0
  %89 = vmatprep.subr.mxu0 0.0
  %90 = vmatpush1.msra.mxu0 0.0
  %91 = vmatprep.subr.mxu0 0.0
  %92 = vmatpush1.msra.mxu0 0.0
  %93 = vmatprep.subr.mxu0 0.0
  %94 = vmatpush1.msra.mxu0 0.0
  %95 = vmatprep.subr.mxu0 0.0
  %96 = vmatpush1.msra.mxu0 0.0
  %97 = vmatprep.subr.mxu0 0.0
  %98 = vmatpush1.msra.mxu0 0.0
  %99 = vmatprep.subr.mxu0 0.0
  %100 = vmatpush1.msra.mxu0 0.0
  %101 = vmatprep.subr.mxu0 0.0
  %102 = vmatpush1.msra.mxu0 0.0
  %103 = vmatprep.subr.mxu0 0.0
  %104 = vmatpush1.msra.mxu0 0.0
  %105 = vmatprep.subr.mxu0 0.0
  %106 = vmatpush1.msra.mxu0 0.0
  %107 = vmatprep.subr.mxu0 0.0
  %108 = vmatpush1.msra.mxu0 0.0
  %109 = vmatprep.subr.mxu0 0.0
  %110 = vmatpush1.msra.mxu0 0.0
  %111 = vmatprep.subr.mxu0 0.0
  %112 = vmatpush1.msra.mxu0 0.0
  %113 = vmatprep.subr.mxu0 0.0
  %114 = vmatpush1.msra.mxu0 0.0
  %115 = vmatprep.mubr.f32.mxu0 0.0
  %116 = vmatmul.mubr.f32.gmra.mrb[0].mxu0 %v40
  %v117 = vpop.f32.mrb[0].mxu0
  %v118 = vadd.f32 %v36, %v117
  %v119 = vpop.f32.mrb[0].mxu0
  %120 = vmatprep.mubr.f32.mxu0 0.0
  %121 = vmatmul.mubr.f32.gmra.mrb[0].mxu0 %v43
  %v122 = vpop.f32.mrb[0].mxu0
  %v123 = vadd.f32 %v36, %v122
  %v124 = vpop.f32.mrb[0].mxu0
  %125 = vmatprep.mubr.f32.mxu0 0.0
  %126 = vmatmul.mubr.f32.gmra.mrb[0].mxu0 %v46
  %v127 = vpop.f32.mrb[0].mxu0
  %v128 = vadd.f32 %v36, %v127
  %v129 = vpop.f32.mrb[0].mxu0
  %130 = vmatprep.mubr.f32.mxu0 0.0
  %131 = vmatmul.mubr.f32.gmra.mrb[0].mxu0 %v49
  %v132 = vpop.f32.mrb[0].mxu0
  %v133 = vadd.f32 %v36, %v132
  %v134 = vpop.f32.mrb[0].mxu0
  %135 = vdwg.mxu0
  %v136 = vld [vmem:[%s3] sm:$0x1]
  %v138 = vlaneseq
  %v139 = vshrl.u32 %v138, 7
  %v140 = vsub.s32 0, %v139
  %v141 = vrot.slane %v136, %v140
  %v143 = vmul.f32 %v118, %v141
  %v144 = vmul.f32 %v123, %v141
  %v145 = vmul.f32 %v128, %v141
  %v146 = vmul.f32 %v133, %v141
  %v147 = vld [vmem:[%s4] sm:$0x1]
  %v149 = vlaneseq
  %v150 = vshrl.u32 %v149, 7
  %v151 = vsub.s32 0, %v150
  %v152 = vrot.slane %v147, %v151
  %v154 = vadd.f32 %v143, %v152
  %v155 = vadd.f32 %v144, %v152
  %v156 = vadd.f32 %v145, %v152
  %v157 = vadd.f32 %v146, %v152
  %v158 = vmax.f32 %v154, 0.0
  %v159 = vmax.f32 %v155, 0.0
  %v160 = vmax.f32 %v156, 0.0
  %v161 = vmax.f32 %v157, 0.0
  %v162 = vld [vmem:[%s5] sm:$0xff]
  %v163 = vld [vmem:[%s5 + $0x8] sm:$0xff]
  %v164 = vld [vmem:[%s5 + $0x10] sm:$0xff]
  %v165 = vld [vmem:[%s5 + $0x18] sm:$0xff]
  %v166 = vadd.f32 %v158, %v162
  %v167 = vadd.f32 %v159, %v163
  %v168 = vadd.f32 %v160, %v164
  %v169 = vadd.f32 %v161, %v165
  %170 = vst.msk [vmem:[%s6] sm:$0xff] %vm38, %v166
  %171 = vst.msk [vmem:[%s6 + $0x8] sm:$0xff] %vm38, %v167
  %172 = vst.msk [vmem:[%s6 + $0x10] sm:$0xff] %vm38, %v168
  %173 = vst.msk [vmem:[%s6 + $0x18] sm:$0xff] %vm38, %v169
  // Predicated region
  $region26: #{decoder_forward.7} parent=0 // pred_check
    _
  $region27: #{decoder_forward.7} parent=0 // pred_check_branch
    %175 = sbr.rel (0) target = $region29
  $region28: #{decoder_forward.7} parent=0 // pred_region
    _
  $region29: #{decoder_forward.7} parent=0 // pred_fallthru
    _
  // Predicated region
  $region30: #{decoder_forward.7} parent=0 // pred_check
    _
  $region31: #{decoder_forward.7} parent=0 // pred_check_branch
    %177 = sbr.rel (0) target = $region33
  $region32: #{decoder_forward.7} parent=0 // pred_region
    _
  $region33: #{decoder_forward.7} parent=0 // pred_fallthru
    _

// kernel: decoder_forward.8
$region0: #{decoder_forward.8}
  #allocation0 [shape = 'u32[]', space=smem, size = 0x4, offset = 0x4, fixed_abs, tag = 'smem constant byte address 0x4 - core index']
  #allocation1 [shape = 'u32[144,128]{1,0:T(1,128)}', space=vmem, size = 0x12000, scoped, tag = 'internal scratch']
  %s0 = inlined_call_operand.vmem [shape: f32[32,32], index: 0, kind: input, shape index: {}]
  %s1 = inlined_call_operand.vmem [shape: f32[32,32], index: 1, kind: input, shape index: {}]
  %s2 = inlined_call_operand.vmem [shape: f32[1,32], index: 2, kind: input, shape index: {}]
  %s3 = inlined_call_operand.vmem [shape: f32[1,32], index: 3, kind: input, shape index: {}]
  %s4 = inlined_call_operand.vmem [shape: f32[1,32], index: 4, kind: input, shape index: {}]
  %s5 = inlined_call_operand.vmem [shape: f32[1,32], index: 5, kind: input, shape index: {}]
  %s6 = inlined_call_operand.vmem [shape: f32[32,32], index: 6, kind: output, shape index: {}]
  %s7 = sld [smem:[#allocation0]]
  $region34: #{decoder_forward.8} parent=0
    _
  %s9 = ssub.s32 1, %s7
  %s10 = scalar_select 0, %s9, %s7
  // Predicated region
  $region2: #{decoder_forward.8} parent=0 // pred_check
    _
  $region3: #{decoder_forward.8} parent=0 // pred_check_branch
    %12 = sbr.rel (0) target = $region5
  $region4: #{decoder_forward.8} parent=0 // pred_region
    _
  $region5: #{decoder_forward.8} parent=0 // pred_fallthru
    _
  // Predicated region
  $region6: #{decoder_forward.8} parent=0 // pred_check
    _
  $region7: #{decoder_forward.8} parent=0 // pred_check_branch
    %14 = sbr.rel (0) target = $region9
  $region8: #{decoder_forward.8} parent=0 // pred_region
    _
  $region9: #{decoder_forward.8} parent=0 // pred_fallthru
    _
  // Predicated region
  $region10: #{decoder_forward.8} parent=0 // pred_check
    _
  $region11: #{decoder_forward.8} parent=0 // pred_check_branch
    %16 = sbr.rel (0) target = $region13
  $region12: #{decoder_forward.8} parent=0 // pred_region
    _
  $region13: #{decoder_forward.8} parent=0 // pred_fallthru
    _
  // Predicated region
  $region14: #{decoder_forward.8} parent=0 // pred_check
    _
  $region15: #{decoder_forward.8} parent=0 // pred_check_branch
    %18 = sbr.rel (0) target = $region17
  $region16: #{decoder_forward.8} parent=0 // pred_region
    _
  $region17: #{decoder_forward.8} parent=0 // pred_fallthru
    _
  // Predicated region
  $region18: #{decoder_forward.8} parent=0 // pred_check
    _
  $region19: #{decoder_forward.8} parent=0 // pred_check_branch
    %20 = sbr.rel (0) target = $region21
  $region20: #{decoder_forward.8} parent=0 // pred_region
    _
  $region21: #{decoder_forward.8} parent=0 // pred_fallthru
    _
  // Predicated region
  $region22: #{decoder_forward.8} parent=0 // pred_check
    _
  $region23: #{decoder_forward.8} parent=0 // pred_check_branch
    %22 = sbr.rel (0) target = $region25
  $region24: #{decoder_forward.8} parent=0 // pred_region
    _
  $region25: #{decoder_forward.8} parent=0 // pred_fallthru
    _
  %v23 = vld [vmem:[%s0] sm:$0xff]
  %v24 = vld [vmem:[%s0 + $0x8] sm:$0xff]
  %v25 = vld [vmem:[%s0 + $0x10] sm:$0xff]
  %v26 = vld [vmem:[%s0 + $0x18] sm:$0xff]
  %v27 = vld [vmem:[%s1] sm:$0xff]
  %v28 = vld [vmem:[%s1 + $0x8] sm:$0xff]
  %v29 = vld [vmem:[%s1 + $0x10] sm:$0xff]
  %v30 = vld [vmem:[%s1 + $0x18] sm:$0xff]
  %v31 = vld [vmem:[%s2] sm:$0x1]
  %v33 = vlaneseq
  %v34 = vshrl.u32 %v33, 7
  %v35 = vsub.s32 0, %v34
  %v36 = vrot.slane %v31, %v35
  %vm38 = vcmask 261120
  %v40 = vsel %vm38, %v23, 0
  %v43 = vsel %vm38, %v24, 0
  %v46 = vsel %vm38, %v25, 0
  %v49 = vsel %vm38, %v26, 0
  %51 = vmatprep.subr.mxu0 0.0
  %52 = vmatpush1.msra.mxu0 %v27
  %53 = vmatprep.subr.mxu0 0.0
  %54 = vmatpush1.msra.mxu0 %v28
  %55 = vmatprep.subr.mxu0 0.0
  %56 = vmatpush1.msra.mxu0 %v29
  %57 = vmatprep.subr.mxu0 0.0
  %58 = vmatpush1.msra.mxu0 %v30
  %59 = vmatprep.subr.mxu0 0.0
  %60 = vmatpush1.msra.mxu0 0.0
  %61 = vmatprep.subr.mxu0 0.0
  %62 = vmatpush1.msra.mxu0 0.0
  %63 = vmatprep.subr.mxu0 0.0
  %64 = vmatpush1.msra.mxu0 0.0
  %65 = vmatprep.subr.mxu0 0.0
  %66 = vmatpush1.msra.mxu0 0.0
  %67 = vmatprep.subr.mxu0 0.0
  %68 = vmatpush1.msra.mxu0 0.0
  %69 = vmatprep.subr.mxu0 0.0
  %70 = vmatpush1.msra.mxu0 0.0
  %71 = vmatprep.subr.mxu0 0.0
  %72 = vmatpush1.msra.mxu0 0.0
  %73 = vmatprep.subr.mxu0 0.0
  %74 = vmatpush1.msra.mxu0 0.0
  %75 = vmatprep.subr.mxu0 0.0
  %76 = vmatpush1.msra.mxu0 0.0
  %77 = vmatprep.subr.mxu0 0.0
  %78 = vmatpush1.msra.mxu0 0.0
  %79 = vmatprep.subr.mxu0 0.0
  %80 = vmatpush1.msra.mxu0 0.0
  %81 = vmatprep.subr.mxu0 0.0
  %82 = vmatpush1.msra.mxu0 0.0
  %83 = vmatprep.subr.mxu0 0.0
  %84 = vmatpush1.msra.mxu0 0.0
  %85 = vmatprep.subr.mxu0 0.0
  %86 = vmatpush1.msra.mxu0 0.0
  %87 = vmatprep.subr.mxu0 0.0
  %88 = vmatpush1.msra.mxu0 0.0
  %89 = vmatprep.subr.mxu0 0.0
  %90 = vmatpush1.msra.mxu0 0.0
  %91 = vmatprep.subr.mxu0 0.0
  %92 = vmatpush1.msra.mxu0 0.0
  %93 = vmatprep.subr.mxu0 0.0
  %94 = vmatpush1.msra.mxu0 0.0
  %95 = vmatprep.subr.mxu0 0.0
  %96 = vmatpush1.msra.mxu0 0.0
  %97 = vmatprep.subr.mxu0 0.0
  %98 = vmatpush1.msra.mxu0 0.0
  %99 = vmatprep.subr.mxu0 0.0
  %100 = vmatpush1.msra.mxu0 0.0
  %101 = vmatprep.subr.mxu0 0.0
  %102 = vmatpush1.msra.mxu0 0.0
  %103 = vmatprep.subr.mxu0 0.0
  %104 = vmatpush1.msra.mxu0 0.0
  %105 = vmatprep.subr.mxu0 0.0
  %106 = vmatpush1.msra.mxu0 0.0
  %107 = vmatprep.subr.mxu0 0.0
  %108 = vmatpush1.msra.mxu0 0.0
  %109 = vmatprep.subr.mxu0 0.0
  %110 = vmatpush1.msra.mxu0 0.0
  %111 = vmatprep.subr.mxu0 0.0
  %112 = vmatpush1.msra.mxu0 0.0
  %113 = vmatprep.subr.mxu0 0.0
  %114 = vmatpush1.msra.mxu0 0.0
  %115 = vmatprep.mubr.f32.mxu0 0.0
  %116 = vmatmul.mubr.f32.gmra.mrb[0].mxu0 %v40
  %v117 = vpop.f32.mrb[0].mxu0
  %v118 = vadd.f32 %v36, %v117
  %v119 = vpop.f32.mrb[0].mxu0
  %120 = vmatprep.mubr.f32.mxu0 0.0
  %121 = vmatmul.mubr.f32.gmra.mrb[0].mxu0 %v43
  %v122 = vpop.f32.mrb[0].mxu0
  %v123 = vadd.f32 %v36, %v122
  %v124 = vpop.f32.mrb[0].mxu0
  %125 = vmatprep.mubr.f32.mxu0 0.0
  %126 = vmatmul.mubr.f32.gmra.mrb[0].mxu0 %v46
  %v127 = vpop.f32.mrb[0].mxu0
  %v128 = vadd.f32 %v36, %v127
  %v129 = vpop.f32.mrb[0].mxu0
  %130 = vmatprep.mubr.f32.mxu0 0.0
  %131 = vmatmul.mubr.f32.gmra.mrb[0].mxu0 %v49
  %v132 = vpop.f32.mrb[0].mxu0
  %v133 = vadd.f32 %v36, %v132
  %v134 = vpop.f32.mrb[0].mxu0
  %135 = vdwg.mxu0
  %v136 = vld [vmem:[%s3] sm:$0x1]
  %v138 = vlaneseq
  %v139 = vshrl.u32 %v138, 7
  %v140 = vsub.s32 0, %v139
  %v141 = vrot.slane %v136, %v140
  %v143 = vmul.f32 %v118, %v141
  %v144 = vmul.f32 %v123, %v141
  %v145 = vmul.f32 %v128, %v141
  %v146 = vmul.f32 %v133, %v141
  %v147 = vld [vmem:[%s4] sm:$0x1]
  %v149 = vlaneseq
  %v150 = vshrl.u32 %v149, 7
  %v151 = vsub.s32 0, %v150
  %v152 = vrot.slane %v147, %v151
  %v154 = vadd.f32 %v143, %v152
  %v155 = vadd.f32 %v144, %v152
  %v156 = vadd.f32 %v145, %v152
  %v157 = vadd.f32 %v146, %v152
  %v158 = vld [vmem:[%s5] sm:$0x1]
  %vm159 = vcmp.gt.f32.partialorder %v158, 0.0
  %v160 = vmax.f32 %v154, 0.0
  %v161 = vmax.f32 %v155, 0.0
  %v162 = vmax.f32 %v156, 0.0
  %v163 = vmax.f32 %v157, 0.0
  %v164 = vsel %vm159, 1, 0
  %v165 = vlaneseq
  %v166 = vshrl.u32 %v165, 7
  %v167 = vsub.s32 0, %v166
  %v168 = vrot.slane %v164, %v167
  %vm169 = vcmp.eq.s32.totalorder %v168, 1
  %v170 = vsel %vm169, %v160, %v154
  %v171 = vsel %vm169, %v161, %v155
  %v172 = vsel %vm169, %v162, %v156
  %v173 = vsel %vm169, %v163, %v157
  %174 = vst.msk [vmem:[%s6] sm:$0xff] %vm38, %v170
  %175 = vst.msk [vmem:[%s6 + $0x8] sm:$0xff] %vm38, %v171
  %176 = vst.msk [vmem:[%s6 + $0x10] sm:$0xff] %vm38, %v172
  %177 = vst.msk [vmem:[%s6 + $0x18] sm:$0xff] %vm38, %v173
  // Predicated region
  $region26: #{decoder_forward.8} parent=0 // pred_check
    _
  $region27: #{decoder_forward.8} parent=0 // pred_check_branch
    %179 = sbr.rel (0) target = $region29
  $region28: #{decoder_forward.8} parent=0 // pred_region
    _
  $region29: #{decoder_forward.8} parent=0 // pred_fallthru
    _
  // Predicated region
  $region30: #{decoder_forward.8} parent=0 // pred_check
    _
  $region31: #{decoder_forward.8} parent=0 // pred_check_branch
    %181 = sbr.rel (0) target = $region33
  $region32: #{decoder_forward.8} parent=0 // pred_region
    _
  $region33: #{decoder_forward.8} parent=0 // pred_fallthru
    _

// kernel: decoder_forward.6
$region0: #{decoder_forward.6}
  #allocation0 [shape = 'u32[]', space=smem, size = 0x4, offset = 0x4, fixed_abs, tag = 'smem constant byte address 0x4 - core index']
  #allocation1 [shape = 'u32[144,128]{1,0:T(1,128)}', space=vmem, size = 0x12000, scoped, tag = 'internal scratch']
  %s0 = inlined_call_operand.vmem [shape: f32[16,64], index: 0, kind: input, shape index: {}]
  %s1 = inlined_call_operand.vmem [shape: f32[64,32], index: 1, kind: input, shape index: {}]
  %s2 = inlined_call_operand.vmem [shape: f32[1,32], index: 2, kind: input, shape index: {}]
  %s3 = inlined_call_operand.vmem [shape: f32[1,32], index: 3, kind: input, shape index: {}]
  %s4 = inlined_call_operand.vmem [shape: f32[1,32], index: 4, kind: input, shape index: {}]
  %s5 = inlined_call_operand.vmem [shape: f32[1,32], index: 5, kind: input, shape index: {}]
  %s6 = inlined_call_operand.vmem [shape: f32[16,32], index: 6, kind: output, shape index: {}]
  %s7 = sld [smem:[#allocation0]]
  $region34: #{decoder_forward.6} parent=0
    _
  %s9 = ssub.s32 1, %s7
  %s10 = scalar_select 0, %s9, %s7
  // Predicated region
  $region2: #{decoder_forward.6} parent=0 // pred_check
    _
  $region3: #{decoder_forward.6} parent=0 // pred_check_branch
    %12 = sbr.rel (0) target = $region5
  $region4: #{decoder_forward.6} parent=0 // pred_region
    _
  $region5: #{decoder_forward.6} parent=0 // pred_fallthru
    _
  // Predicated region
  $region6: #{decoder_forward.6} parent=0 // pred_check
    _
  $region7: #{decoder_forward.6} parent=0 // pred_check_branch
    %14 = sbr.rel (0) target = $region9
  $region8: #{decoder_forward.6} parent=0 // pred_region
    _
  $region9: #{decoder_forward.6} parent=0 // pred_fallthru
    _
  // Predicated region
  $region10: #{decoder_forward.6} parent=0 // pred_check
    _
  $region11: #{decoder_forward.6} parent=0 // pred_check_branch
    %16 = sbr.rel (0) target = $region13
  $region12: #{decoder_forward.6} parent=0 // pred_region
    _
  $region13: #{decoder_forward.6} parent=0 // pred_fallthru
    _
  // Predicated region
  $region14: #{decoder_forward.6} parent=0 // pred_check
    _
  $region15: #{decoder_forward.6} parent=0 // pred_check_branch
    %18 = sbr.rel (0) target = $region17
  $region16: #{decoder_forward.6} parent=0 // pred_region
    _
  $region17: #{decoder_forward.6} parent=0 // pred_fallthru
    _
  // Predicated region
  $region18: #{decoder_forward.6} parent=0 // pred_check
    _
  $region19: #{decoder_forward.6} parent=0 // pred_check_branch
    %20 = sbr.rel (0) target = $region21
  $region20: #{decoder_forward.6} parent=0 // pred_region
    _
  $region21: #{decoder_forward.6} parent=0 // pred_fallthru
    _
  // Predicated region
  $region22: #{decoder_forward.6} parent=0 // pred_check
    _
  $region23: #{decoder_forward.6} parent=0 // pred_check_branch
    %22 = sbr.rel (0) target = $region25
  $region24: #{decoder_forward.6} parent=0 // pred_region
    _
  $region25: #{decoder_forward.6} parent=0 // pred_fallthru
    _
  %v23 = vld [vmem:[%s0] sm:$0xff]
  %v24 = vld [vmem:[%s0 + $0x8] sm:$0xff]
  %v25 = vld [vmem:[%s1] sm:$0xff]
  %v26 = vld [vmem:[%s1 + $0x8] sm:$0xff]
  %v27 = vld [vmem:[%s1 + $0x10] sm:$0xff]
  %v28 = vld [vmem:[%s1 + $0x18] sm:$0xff]
  %v29 = vld [vmem:[%s1 + $0x20] sm:$0xff]
  %v30 = vld [vmem:[%s1 + $0x28] sm:$0xff]
  %v31 = vld [vmem:[%s1 + $0x30] sm:$0xff]
  %v32 = vld [vmem:[%s1 + $0x38] sm:$0xff]
  %v33 = vld [vmem:[%s2] sm:$0x1]
  %v35 = vlaneseq
  %v36 = vshrl.u32 %v35, 7
  %v37 = vsub.s32 0, %v36
  %v38 = vrot.slane %v33, %v37
  %vm40 = vcmask 523264
  %v42 = vsel %vm40, %v23, 0
  %v45 = vsel %vm40, %v24, 0
  %47 = vmatprep.subr.mxu0 0.0
  %48 = vmatpush1.msra.mxu0 %v25
  %49 = vmatprep.subr.mxu0 0.0
  %50 = vmatpush1.msra.mxu0 %v26
  %51 = vmatprep.subr.mxu0 0.0
  %52 = vmatpush1.msra.mxu0 %v27
  %53 = vmatprep.subr.mxu0 0.0
  %54 = vmatpush1.msra.mxu0 %v28
  %55 = vmatprep.subr.mxu0 0.0
  %56 = vmatpush1.msra.mxu0 %v29
  %57 = vmatprep.subr.mxu0 0.0
  %58 = vmatpush1.msra.mxu0 %v30
  %59 = vmatprep.subr.mxu0 0.0
  %60 = vmatpush1.msra.mxu0 %v31
  %61 = vmatprep.subr.mxu0 0.0
  %62 = vmatpush1.msra.mxu0 %v32
  %63 = vmatprep.subr.mxu0 0.0
  %64 = vmatpush1.msra.mxu0 0.0
  %65 = vmatprep.subr.mxu0 0.0
  %66 = vmatpush1.msra.mxu0 0.0
  %67 = vmatprep.subr.mxu0 0.0
  %68 = vmatpush1.msra.mxu0 0.0
  %69 = vmatprep.subr.mxu0 0.0
  %70 = vmatpush1.msra.mxu0 0.0
  %71 = vmatprep.subr.mxu0 0.0
  %72 = vmatpush1.msra.mxu0 0.0
  %73 = vmatprep.subr.mxu0 0.0
  %74 = vmatpush1.msra.mxu0 0.0
  %75 = vmatprep.subr.mxu0 0.0
  %76 = vmatpush1.msra.mxu0 0.0
  %77 = vmatprep.subr.mxu0 0.0
  %78 = vmatpush1.msra.mxu0 0.0
  %79 = vmatprep.subr.mxu0 0.0
  %80 = vmatpush1.msra.mxu0 0.0
  %81 = vmatprep.subr.mxu0 0.0
  %82 = vmatpush1.msra.mxu0 0.0
  %83 = vmatprep.subr.mxu0 0.0
  %84 = vmatpush1.msra.mxu0 0.0
  %85 = vmatprep.subr.mxu0 0.0
  %86 = vmatpush1.msra.mxu0 0.0
  %87 = vmatprep.subr.mxu0 0.0
  %88 = vmatpush1.msra.mxu0 0.0
  %89 = vmatprep.subr.mxu0 0.0
  %90 = vmatpush1.msra.mxu0 0.0
  %91 = vmatprep.subr.mxu0 0.0
  %92 = vmatpush1.msra.mxu0 0.0
  %93 = vmatprep.subr.mxu0 0.0
  %94 = vmatpush1.msra.mxu0 0.0
  %95 = vmatprep.subr.mxu0 0.0
  %96 = vmatpush1.msra.mxu0 0.0
  %97 = vmatprep.subr.mxu0 0.0
  %98 = vmatpush1.msra.mxu0 0.0
  %99 = vmatprep.subr.mxu0 0.0
  %100 = vmatpush1.msra.mxu0 0.0
  %101 = vmatprep.subr.mxu0 0.0
  %102 = vmatpush1.msra.mxu0 0.0
  %103 = vmatprep.subr.mxu0 0.0
  %104 = vmatpush1.msra.mxu0 0.0
  %105 = vmatprep.subr.mxu0 0.0
  %106 = vmatpush1.msra.mxu0 0.0
  %107 = vmatprep.subr.mxu0 0.0
  %108 = vmatpush1.msra.mxu0 0.0
  %109 = vmatprep.subr.mxu0 0.0
  %110 = vmatpush1.msra.mxu0 0.0
  %111 = vmatprep.mubr.f32.mxu0 0.0
  %112 = vmatmul.mubr.f32.gmra.mrb[0].mxu0 %v42
  %v113 = vpop.f32.mrb[0].mxu0
  %v114 = vadd.f32 %v38, %v113
  %v115 = vpop.f32.mrb[0].mxu0
  %116 = vmatprep.mubr.f32.mxu0 0.0
  %117 = vmatmul.mubr.f32.gmra.mrb[0].mxu0 %v45
  %v118 = vpop.f32.mrb[0].mxu0
  %v119 = vadd.f32 %v38, %v118
  %v120 = vpop.f32.mrb[0].mxu0
  %121 = vdwg.mxu0
  %v122 = vld [vmem:[%s3] sm:$0x1]
  %v124 = vlaneseq
  %v125 = vshrl.u32 %v124, 7
  %v126 = vsub.s32 0, %v125
  %v127 = vrot.slane %v122, %v126
  %v129 = vmul.f32 %v114, %v127
  %v130 = vmul.f32 %v119, %v127
  %v131 = vld [vmem:[%s4] sm:$0x1]
  %v133 = vlaneseq
  %v134 = vshrl.u32 %v133, 7
  %v135 = vsub.s32 0, %v134
  %v136 = vrot.slane %v131, %v135
  %v138 = vadd.f32 %v129, %v136
  %v139 = vadd.f32 %v130, %v136
  %v140 = vld [vmem:[%s5] sm:$0x1]
  %vm141 = vcmp.gt.f32.partialorder %v140, 0.0
  %v142 = vmax.f32 %v138, 0.0
  %v143 = vmax.f32 %v139, 0.0
  %v144 = vsel %vm141, 1, 0
  %v145 = vlaneseq
  %v146 = vshrl.u32 %v145, 7
  %v147 = vsub.s32 0, %v146
  %v148 = vrot.slane %v144, %v147
  %vm149 = vcmp.eq.s32.totalorder %v148, 1
  %v150 = vsel %vm149, %v142, %v138
  %v151 = vsel %vm149, %v143, %v139
  %vm152 = vcmask 261120
  %153 = vst.msk [vmem:[%s6] sm:$0xff] %vm152, %v150
  %154 = vst.msk [vmem:[%s6 + $0x8] sm:$0xff] %vm152, %v151
  // Predicated region
  $region26: #{decoder_forward.6} parent=0 // pred_check
    _
  $region27: #{decoder_forward.6} parent=0 // pred_check_branch
    %156 = sbr.rel (0) target = $region29
  $region28: #{decoder_forward.6} parent=0 // pred_region
    _
  $region29: #{decoder_forward.6} parent=0 // pred_fallthru
    _
  // Predicated region
  $region30: #{decoder_forward.6} parent=0 // pred_check
    _
  $region31: #{decoder_forward.6} parent=0 // pred_check_branch
    %158 = sbr.rel (0) target = $region33
  $region32: #{decoder_forward.6} parent=0 // pred_region
    _
  $region33: #{decoder_forward.6} parent=0 // pred_fallthru
    _

// kernel: decoder_forward.9
$region0: #{decoder_forward.9}
  #allocation0 [shape = 'u32[]', space=smem, size = 0x4, offset = 0x4, fixed_abs, tag = 'smem constant byte address 0x4 - core index']
  #allocation1 [shape = 'u32[144,128]{1,0:T(1,128)}', space=vmem, size = 0x12000, scoped, tag = 'internal scratch']
  %s0 = inlined_call_operand.vmem [shape: f32[32,32], index: 0, kind: input, shape index: {}]
  %s1 = inlined_call_operand.vmem [shape: f32[32,96], index: 1, kind: input, shape index: {}]
  %s2 = inlined_call_operand.vmem [shape: f32[1,96], index: 2, kind: input, shape index: {}]
  %s3 = inlined_call_operand.vmem [shape: f32[1,96], index: 3, kind: input, shape index: {}]
  %s4 = inlined_call_operand.vmem [shape: f32[1,96], index: 4, kind: input, shape index: {}]
  %s5 = inlined_call_operand.vmem [shape: f32[1,96], index: 5, kind: input, shape index: {}]
  %s6 = inlined_call_operand.vmem [shape: f32[32,96], index: 6, kind: output, shape index: {}]
  %s7 = sld [smem:[#allocation0]]
  $region34: #{decoder_forward.9} parent=0
    _
  %s9 = ssub.s32 1, %s7
  %s10 = scalar_select 0, %s9, %s7
  // Predicated region
  $region2: #{decoder_forward.9} parent=0 // pred_check
    _
  $region3: #{decoder_forward.9} parent=0 // pred_check_branch
    %12 = sbr.rel (0) target = $region5
  $region4: #{decoder_forward.9} parent=0 // pred_region
    _
  $region5: #{decoder_forward.9} parent=0 // pred_fallthru
    _
  // Predicated region
  $region6: #{decoder_forward.9} parent=0 // pred_check
    _
  $region7: #{decoder_forward.9} parent=0 // pred_check_branch
    %14 = sbr.rel (0) target = $region9
  $region8: #{decoder_forward.9} parent=0 // pred_region
    _
  $region9: #{decoder_forward.9} parent=0 // pred_fallthru
    _
  // Predicated region
  $region10: #{decoder_forward.9} parent=0 // pred_check
    _
  $region11: #{decoder_forward.9} parent=0 // pred_check_branch
    %16 = sbr.rel (0) target = $region13
  $region12: #{decoder_forward.9} parent=0 // pred_region
    _
  $region13: #{decoder_forward.9} parent=0 // pred_fallthru
    _
  // Predicated region
  $region14: #{decoder_forward.9} parent=0 // pred_check
    _
  $region15: #{decoder_forward.9} parent=0 // pred_check_branch
    %18 = sbr.rel (0) target = $region17
  $region16: #{decoder_forward.9} parent=0 // pred_region
    _
  $region17: #{decoder_forward.9} parent=0 // pred_fallthru
    _
  // Predicated region
  $region18: #{decoder_forward.9} parent=0 // pred_check
    _
  $region19: #{decoder_forward.9} parent=0 // pred_check_branch
    %20 = sbr.rel (0) target = $region21
  $region20: #{decoder_forward.9} parent=0 // pred_region
    _
  $region21: #{decoder_forward.9} parent=0 // pred_fallthru
    _
  // Predicated region
  $region22: #{decoder_forward.9} parent=0 // pred_check
    _
  $region23: #{decoder_forward.9} parent=0 // pred_check_branch
    %22 = sbr.rel (0) target = $region25
  $region24: #{decoder_forward.9} parent=0 // pred_region
    _
  $region25: #{decoder_forward.9} parent=0 // pred_fallthru
    _
  %v23 = vld [vmem:[%s0] sm:$0xff]
  %v24 = vld [vmem:[%s0 + $0x8] sm:$0xff]
  %v25 = vld [vmem:[%s0 + $0x10] sm:$0xff]
  %v26 = vld [vmem:[%s0 + $0x18] sm:$0xff]
  %v27 = vld [vmem:[%s1] sm:$0xff]
  %v28 = vld [vmem:[%s1 + $0x8] sm:$0xff]
  %v29 = vld [vmem:[%s1 + $0x10] sm:$0xff]
  %v30 = vld [vmem:[%s1 + $0x18] sm:$0xff]
  %v31 = vld [vmem:[%s2] sm:$0x1]
  %v33 = vlaneseq
  %v34 = vshrl.u32 %v33, 7
  %v35 = vsub.s32 0, %v34
  %v36 = vrot.slane %v31, %v35
  %vm38 = vcmask 261120
  %v40 = vsel %vm38, %v23, 0
  %v43 = vsel %vm38, %v24, 0
  %v46 = vsel %vm38, %v25, 0
  %v49 = vsel %vm38, %v26, 0
  %51 = vmatprep.subr.mxu0 0.0
  %52 = vmatpush1.msra.mxu0 %v27
  %53 = vmatprep.subr.mxu0 0.0
  %54 = vmatpush1.msra.mxu0 %v28
  %55 = vmatprep.subr.mxu0 0.0
  %56 = vmatpush1.msra.mxu0 %v29
  %57 = vmatprep.subr.mxu0 0.0
  %58 = vmatpush1.msra.mxu0 %v30
  %59 = vmatprep.subr.mxu0 0.0
  %60 = vmatpush1.msra.mxu0 0.0
  %61 = vmatprep.subr.mxu0 0.0
  %62 = vmatpush1.msra.mxu0 0.0
  %63 = vmatprep.subr.mxu0 0.0
  %64 = vmatpush1.msra.mxu0 0.0
  %65 = vmatprep.subr.mxu0 0.0
  %66 = vmatpush1.msra.mxu0 0.0
  %67 = vmatprep.subr.mxu0 0.0
  %68 = vmatpush1.msra.mxu0 0.0
  %69 = vmatprep.subr.mxu0 0.0
  %70 = vmatpush1.msra.mxu0 0.0
  %71 = vmatprep.subr.mxu0 0.0
  %72 = vmatpush1.msra.mxu0 0.0
  %73 = vmatprep.subr.mxu0 0.0
  %74 = vmatpush1.msra.mxu0 0.0
  %75 = vmatprep.subr.mxu0 0.0
  %76 = vmatpush1.msra.mxu0 0.0
  %77 = vmatprep.subr.mxu0 0.0
  %78 = vmatpush1.msra.mxu0 0.0
  %79 = vmatprep.subr.mxu0 0.0
  %80 = vmatpush1.msra.mxu0 0.0
  %81 = vmatprep.subr.mxu0 0.0
  %82 = vmatpush1.msra.mxu0 0.0
  %83 = vmatprep.subr.mxu0 0.0
  %84 = vmatpush1.msra.mxu0 0.0
  %85 = vmatprep.subr.mxu0 0.0
  %86 = vmatpush1.msra.mxu0 0.0
  %87 = vmatprep.subr.mxu0 0.0
  %88 = vmatpush1.msra.mxu0 0.0
  %89 = vmatprep.subr.mxu0 0.0
  %90 = vmatpush1.msra.mxu0 0.0
  %91 = vmatprep.subr.mxu0 0.0
  %92 = vmatpush1.msra.mxu0 0.0
  %93 = vmatprep.subr.mxu0 0.0
  %94 = vmatpush1.msra.mxu0 0.0
  %95 = vmatprep.subr.mxu0 0.0
  %96 = vmatpush1.msra.mxu0 0.0
  %97 = vmatprep.subr.mxu0 0.0
  %98 = vmatpush1.msra.mxu0 0.0
  %99 = vmatprep.subr.mxu0 0.0
  %100 = vmatpush1.msra.mxu0 0.0
  %101 = vmatprep.subr.mxu0 0.0
  %102 = vmatpush1.msra.mxu0 0.0
  %103 = vmatprep.subr.mxu0 0.0
  %104 = vmatpush1.msra.mxu0 0.0
  %105 = vmatprep.subr.mxu0 0.0
  %106 = vmatpush1.msra.mxu0 0.0
  %107 = vmatprep.subr.mxu0 0.0
  %108 = vmatpush1.msra.mxu0 0.0
  %109 = vmatprep.subr.mxu0 0.0
  %110 = vmatpush1.msra.mxu0 0.0
  %111 = vmatprep.subr.mxu0 0.0
  %112 = vmatpush1.msra.mxu0 0.0
  %113 = vmatprep.subr.mxu0 0.0
  %114 = vmatpush1.msra.mxu0 0.0
  %115 = vmatprep.mubr.f32.mxu0 0.0
  %116 = vmatmul.mubr.f32.gmra.mrb[0].mxu0 %v40
  %v117 = vpop.f32.mrb[0].mxu0
  %v118 = vadd.f32 %v36, %v117
  %v119 = vpop.f32.mrb[0].mxu0
  %120 = vmatprep.mubr.f32.mxu0 0.0
  %121 = vmatmul.mubr.f32.gmra.mrb[0].mxu0 %v43
  %v122 = vpop.f32.mrb[0].mxu0
  %v123 = vadd.f32 %v36, %v122
  %v124 = vpop.f32.mrb[0].mxu0
  %125 = vmatprep.mubr.f32.mxu0 0.0
  %126 = vmatmul.mubr.f32.gmra.mrb[0].mxu0 %v46
  %v127 = vpop.f32.mrb[0].mxu0
  %v128 = vadd.f32 %v36, %v127
  %v129 = vpop.f32.mrb[0].mxu0
  %130 = vmatprep.mubr.f32.mxu0 0.0
  %131 = vmatmul.mubr.f32.gmra.mrb[0].mxu0 %v49
  %v132 = vpop.f32.mrb[0].mxu0
  %v133 = vadd.f32 %v36, %v132
  %v134 = vpop.f32.mrb[0].mxu0
  %135 = vdwg.mxu0
  %v136 = vld [vmem:[%s3] sm:$0x1]
  %v138 = vlaneseq
  %v139 = vshrl.u32 %v138, 7
  %v140 = vsub.s32 0, %v139
  %v141 = vrot.slane %v136, %v140
  %v143 = vmul.f32 %v118, %v141
  %v144 = vmul.f32 %v123, %v141
  %v145 = vmul.f32 %v128, %v141
  %v146 = vmul.f32 %v133, %v141
  %v147 = vld [vmem:[%s4] sm:$0x1]
  %v149 = vlaneseq
  %v150 = vshrl.u32 %v149, 7
  %v151 = vsub.s32 0, %v150
  %v152 = vrot.slane %v147, %v151
  %v154 = vadd.f32 %v143, %v152
  %v155 = vadd.f32 %v144, %v152
  %v156 = vadd.f32 %v145, %v152
  %v157 = vadd.f32 %v146, %v152
  %v158 = vld [vmem:[%s5] sm:$0x1]
  %vm159 = vcmp.gt.f32.partialorder %v158, 0.0
  %v160 = vmax.f32 %v154, 0.0
  %v161 = vmax.f32 %v155, 0.0
  %v162 = vmax.f32 %v156, 0.0
  %v163 = vmax.f32 %v157, 0.0
  %v164 = vsel %vm159, 1, 0
  %v165 = vlaneseq
  %v166 = vshrl.u32 %v165, 7
  %v167 = vsub.s32 0, %v166
  %v168 = vrot.slane %v164, %v167
  %vm169 = vcmp.eq.s32.totalorder %v168, 1
  %v170 = vsel %vm169, %v160, %v154
  %v171 = vsel %vm169, %v161, %v155
  %v172 = vsel %vm169, %v162, %v156
  %v173 = vsel %vm169, %v163, %v157
  %vm174 = vcmask 785408
  %175 = vst.msk [vmem:[%s6] sm:$0xff] %vm174, %v170
  %176 = vst.msk [vmem:[%s6 + $0x8] sm:$0xff] %vm174, %v171
  %177 = vst.msk [vmem:[%s6 + $0x10] sm:$0xff] %vm174, %v172
  %178 = vst.msk [vmem:[%s6 + $0x18] sm:$0xff] %vm174, %v173
  // Predicated region
  $region26: #{decoder_forward.9} parent=0 // pred_check
    _
  $region27: #{decoder_forward.9} parent=0 // pred_check_branch
    %180 = sbr.rel (0) target = $region29
  $region28: #{decoder_forward.9} parent=0 // pred_region
    _
  $region29: #{decoder_forward.9} parent=0 // pred_fallthru
    _
  // Predicated region
  $region30: #{decoder_forward.9} parent=0 // pred_check
    _
  $region31: #{decoder_forward.9} parent=0 // pred_check_branch
    %182 = sbr.rel (0) target = $region33
  $region32: #{decoder_forward.9} parent=0 // pred_region
    _
  $region33: #{decoder_forward.9} parent=0 // pred_fallthru
    _

// kernel: decoder_forward.11
$region0: #{decoder_forward.11}
  #allocation0 [shape = 'u32[]', space=smem, size = 0x4, offset = 0x4, fixed_abs, tag = 'smem constant byte address 0x4 - core index']
  #allocation1 [shape = 'u32[144,128]{1,0:T(1,128)}', space=vmem, size = 0x12000, scoped, tag = 'internal scratch']
  %s0 = inlined_call_operand.vmem [shape: f32[32,32], index: 0, kind: input, shape index: {}]
  %s1 = inlined_call_operand.vmem [shape: f32[32,32], index: 1, kind: input, shape index: {}]
  %s2 = inlined_call_operand.vmem [shape: f32[1,32], index: 2, kind: input, shape index: {}]
  %s3 = inlined_call_operand.vmem [shape: f32[1,32], index: 3, kind: input, shape index: {}]
  %s4 = inlined_call_operand.vmem [shape: f32[1,32], index: 4, kind: input, shape index: {}]
  %s5 = inlined_call_operand.vmem [shape: f32[32,32], index: 5, kind: input, shape index: {}]
  %s6 = inlined_call_operand.hbm [shape: f32[32,32], index: 6, kind: output, shape index: {}]
  %s7 = sld [smem:[#allocation0]]
  $region34: #{decoder_forward.11} parent=0
    _
  %s9 = ssub.s32 1, %s7
  %s10 = scalar_select 0, %s9, %s7
  $region1: #{decoder_forward.11} parent=0
    #allocation2 [shape = 'u8[16384]{0}', space=vmem, size = 0x4000, scoped, tag = 'output window, operand 0, single buffered']
    #allocation3 [shape = 's32[1]{0}', space=sflag, size = 0x4, scoped, tag = 'scoped memory for decoder_forward.11']
    %11 = vsyncpa [#allocation3], 0
    // Predicated region
    $region2: #{decoder_forward.11} parent=1 // pred_check
      _
    $region3: #{decoder_forward.11} parent=1 // pred_check_branch
      %13 = sbr.rel (0) target = $region5
    $region4: #{decoder_forward.11} parent=1 // pred_region
      _
    $region5: #{decoder_forward.11} parent=1 // pred_fallthru
      _
    // Predicated region
    $region6: #{decoder_forward.11} parent=1 // pred_check
      _
    $region7: #{decoder_forward.11} parent=1 // pred_check_branch
      %15 = sbr.rel (0) target = $region9
    $region8: #{decoder_forward.11} parent=1 // pred_region
      _
    $region9: #{decoder_forward.11} parent=1 // pred_fallthru
      _
    // Predicated region
    $region10: #{decoder_forward.11} parent=1 // pred_check
      _
    $region11: #{decoder_forward.11} parent=1 // pred_check_branch
      %17 = sbr.rel (0) target = $region13
    $region12: #{decoder_forward.11} parent=1 // pred_region
      _
    $region13: #{decoder_forward.11} parent=1 // pred_fallthru
      _
    // Predicated region
    $region14: #{decoder_forward.11} parent=1 // pred_check
      _
    $region15: #{decoder_forward.11} parent=1 // pred_check_branch
      %19 = sbr.rel (0) target = $region17
    $region16: #{decoder_forward.11} parent=1 // pred_region
      _
    $region17: #{decoder_forward.11} parent=1 // pred_fallthru
      _
    // Predicated region
    $region18: #{decoder_forward.11} parent=1 // pred_check
      _
    $region19: #{decoder_forward.11} parent=1 // pred_check_branch
      %21 = sbr.rel (0) target = $region21
    $region20: #{decoder_forward.11} parent=1 // pred_region
      _
    $region21: #{decoder_forward.11} parent=1 // pred_fallthru
      _
    // Predicated region
    $region22: #{decoder_forward.11} parent=1 // pred_check
      _
    $region23: #{decoder_forward.11} parent=1 // pred_check_branch
      %23 = sbr.rel (0) target = $region25
    $region24: #{decoder_forward.11} parent=1 // pred_region
      _
    $region25: #{decoder_forward.11} parent=1 // pred_fallthru
      _
    %v24 = vld [vmem:[%s0] sm:$0xff]
    %v25 = vld [vmem:[%s0 + $0x8] sm:$0xff]
    %v26 = vld [vmem:[%s0 + $0x10] sm:$0xff]
    %v27 = vld [vmem:[%s0 + $0x18] sm:$0xff]
    %v28 = vld [vmem:[%s1] sm:$0xff]
    %v29 = vld [vmem:[%s1 + $0x8] sm:$0xff]
    %v30 = vld [vmem:[%s1 + $0x10] sm:$0xff]
    %v31 = vld [vmem:[%s1 + $0x18] sm:$0xff]
    %v32 = vld [vmem:[%s2] sm:$0x1]
    %v34 = vlaneseq
    %v35 = vshrl.u32 %v34, 7
    %v36 = vsub.s32 0, %v35
    %v37 = vrot.slane %v32, %v36
    %vm39 = vcmask 261120
    %v41 = vsel %vm39, %v24, 0
    %v44 = vsel %vm39, %v25, 0
    %v47 = vsel %vm39, %v26, 0
    %v50 = vsel %vm39, %v27, 0
    %52 = vmatprep.subr.mxu0 0.0
    %53 = vmatpush1.msra.mxu0 %v28
    %54 = vmatprep.subr.mxu0 0.0
    %55 = vmatpush1.msra.mxu0 %v29
    %56 = vmatprep.subr.mxu0 0.0
    %57 = vmatpush1.msra.mxu0 %v30
    %58 = vmatprep.subr.mxu0 0.0
    %59 = vmatpush1.msra.mxu0 %v31
    %60 = vmatprep.subr.mxu0 0.0
    %61 = vmatpush1.msra.mxu0 0.0
    %62 = vmatprep.subr.mxu0 0.0
    %63 = vmatpush1.msra.mxu0 0.0
    %64 = vmatprep.subr.mxu0 0.0
    %65 = vmatpush1.msra.mxu0 0.0
    %66 = vmatprep.subr.mxu0 0.0
    %67 = vmatpush1.msra.mxu0 0.0
    %68 = vmatprep.subr.mxu0 0.0
    %69 = vmatpush1.msra.mxu0 0.0
    %70 = vmatprep.subr.mxu0 0.0
    %71 = vmatpush1.msra.mxu0 0.0
    %72 = vmatprep.subr.mxu0 0.0
    %73 = vmatpush1.msra.mxu0 0.0
    %74 = vmatprep.subr.mxu0 0.0
    %75 = vmatpush1.msra.mxu0 0.0
    %76 = vmatprep.subr.mxu0 0.0
    %77 = vmatpush1.msra.mxu0 0.0
    %78 = vmatprep.subr.mxu0 0.0
    %79 = vmatpush1.msra.mxu0 0.0
    %80 = vmatprep.subr.mxu0 0.0
    %81 = vmatpush1.msra.mxu0 0.0
    %82 = vmatprep.subr.mxu0 0.0
    %83 = vmatpush1.msra.mxu0 0.0
    %84 = vmatprep.subr.mxu0 0.0
    %85 = vmatpush1.msra.mxu0 0.0
    %86 = vmatprep.subr.mxu0 0.0
    %87 = vmatpush1.msra.mxu0 0.0
    %88 = vmatprep.subr.mxu0 0.0
    %89 = vmatpush1.msra.mxu0 0.0
    %90 = vmatprep.subr.mxu0 0.0
    %91 = vmatpush1.msra.mxu0 0.0
    %92 = vmatprep.subr.mxu0 0.0
    %93 = vmatpush1.msra.mxu0 0.0
    %94 = vmatprep.subr.mxu0 0.0
    %95 = vmatpush1.msra.mxu0 0.0
    %96 = vmatprep.subr.mxu0 0.0
    %97 = vmatpush1.msra.mxu0 0.0
    %98 = vmatprep.subr.mxu0 0.0
    %99 = vmatpush1.msra.mxu0 0.0
    %100 = vmatprep.subr.mxu0 0.0
    %101 = vmatpush1.msra.mxu0 0.0
    %102 = vmatprep.subr.mxu0 0.0
    %103 = vmatpush1.msra.mxu0 0.0
    %104 = vmatprep.subr.mxu0 0.0
    %105 = vmatpush1.msra.mxu0 0.0
    %106 = vmatprep.subr.mxu0 0.0
    %107 = vmatpush1.msra.mxu0 0.0
    %108 = vmatprep.subr.mxu0 0.0
    %109 = vmatpush1.msra.mxu0 0.0
    %110 = vmatprep.subr.mxu0 0.0
    %111 = vmatpush1.msra.mxu0 0.0
    %112 = vmatprep.subr.mxu0 0.0
    %113 = vmatpush1.msra.mxu0 0.0
    %114 = vmatprep.subr.mxu0 0.0
    %115 = vmatpush1.msra.mxu0 0.0
    %116 = vmatprep.mubr.f32.mxu0 0.0
    %117 = vmatmul.mubr.f32.gmra.mrb[0].mxu0 %v41
    %v118 = vpop.f32.mrb[0].mxu0
    %v119 = vadd.f32 %v37, %v118
    %v120 = vpop.f32.mrb[0].mxu0
    %121 = vmatprep.mubr.f32.mxu0 0.0
    %122 = vmatmul.mubr.f32.gmra.mrb[0].mxu0 %v44
    %v123 = vpop.f32.mrb[0].mxu0
    %v124 = vadd.f32 %v37, %v123
    %v125 = vpop.f32.mrb[0].mxu0
    %126 = vmatprep.mubr.f32.mxu0 0.0
    %127 = vmatmul.mubr.f32.gmra.mrb[0].mxu0 %v47
    %v128 = vpop.f32.mrb[0].mxu0
    %v129 = vadd.f32 %v37, %v128
    %v130 = vpop.f32.mrb[0].mxu0
    %131 = vmatprep.mubr.f32.mxu0 0.0
    %132 = vmatmul.mubr.f32.gmra.mrb[0].mxu0 %v50
    %v133 = vpop.f32.mrb[0].mxu0
    %v134 = vadd.f32 %v37, %v133
    %v135 = vpop.f32.mrb[0].mxu0
    %136 = vdwg.mxu0
    %v137 = vld [vmem:[%s3] sm:$0x1]
    %v139 = vlaneseq
    %v140 = vshrl.u32 %v139, 7
    %v141 = vsub.s32 0, %v140
    %v142 = vrot.slane %v137, %v141
    %v144 = vmul.f32 %v119, %v142
    %v145 = vmul.f32 %v124, %v142
    %v146 = vmul.f32 %v129, %v142
    %v147 = vmul.f32 %v134, %v142
    %v148 = vld [vmem:[%s4] sm:$0x1]
    %v150 = vlaneseq
    %v151 = vshrl.u32 %v150, 7
    %v152 = vsub.s32 0, %v151
    %v153 = vrot.slane %v148, %v152
    %v155 = vadd.f32 %v144, %v153
    %v156 = vadd.f32 %v145, %v153
    %v157 = vadd.f32 %v146, %v153
    %v158 = vadd.f32 %v147, %v153
    %v159 = vld [vmem:[%s5] sm:$0xff]
    %v160 = vld [vmem:[%s5 + $0x8] sm:$0xff]
    %v161 = vld [vmem:[%s5 + $0x10] sm:$0xff]
    %v162 = vld [vmem:[%s5 + $0x18] sm:$0xff]
    %v163 = vadd.f32 %v155, %v159
    %v164 = vadd.f32 %v156, %v160
    %v165 = vadd.f32 %v157, %v161
    %v166 = vadd.f32 %v158, %v162
    %v167 = vmax.f32 %v163, 0.0
    %v168 = vmax.f32 %v164, 0.0
    %v169 = vmax.f32 %v165, 0.0
    %v170 = vmax.f32 %v166, 0.0
    %171 = vst.msk [vmem:[#allocation2] sm:$0xff] %vm39, %v167
    %172 = vst.msk [vmem:[#allocation2 + $0x8] sm:$0xff] %vm39, %v168
    %173 = vst.msk [vmem:[#allocation2 + $0x10] sm:$0xff] %vm39, %v169
    %174 = vst.msk [vmem:[#allocation2 + $0x18] sm:$0xff] %vm39, %v170
    // Predicated region
    $region26: #{decoder_forward.11} parent=1 // pred_check
      _
    $region27: #{decoder_forward.11} parent=1 // pred_check_branch
      %176 = sbr.rel (0) target = $region29
    $region28: #{decoder_forward.11} parent=1 // pred_region
      %s178 = ssub.s32 512, 512
      %179 = vsyncadd [#allocation3], %s178
      %s180 = sshll.u32 [#allocation2], 4
      %s181 = int_to_ptr.vmem [resolvable:$true] %s180
      %186 = dma.vmem_to_hbm [thread:$0]  %s181, 512, %s6, [#allocation3], 128, 128, 8
    $region29: #{decoder_forward.11} parent=1 // pred_fallthru
      _
    // Predicated region
    $region30: #{decoder_forward.11} parent=1 // pred_check
      _
    $region31: #{decoder_forward.11} parent=1 // pred_check_branch
      %188 = sbr.rel (0) target = $region33
    $region32: #{decoder_forward.11} parent=1 // pred_region
      %189 = dma.done [#allocation3], 512
    $region33: #{decoder_forward.11} parent=1 // pred_fallthru
      _
    %190 = vsyncpa [#allocation3], 1

// kernel: decoder_forward.10
$region0: #{decoder_forward.10}
  #allocation0 [shape = 'u32[]', space=smem, size = 0x4, offset = 0x4, fixed_abs, tag = 'smem constant byte address 0x4 - core index']
  #allocation1 [shape = 'u32[144,128]{1,0:T(1,128)}', space=vmem, size = 0x12000, scoped, tag = 'internal scratch']
  %s0 = inlined_call_operand.vmem [shape: f32[32,32], index: 0, kind: input, shape index: {}]
  %s1 = inlined_call_operand.vmem [shape: f32[32,8,32], index: 1, kind: input, shape index: {}]
  %s2 = inlined_call_operand.vmem [shape: f32[32,8,32], index: 2, kind: input, shape index: {}]
  %s3 = inlined_call_operand.vmem [shape: f32[32,8,3], index: 3, kind: input, shape index: {}]
  %s4 = inlined_call_operand.vmem [shape: f32[32,8,1], index: 4, kind: input, shape index: {}]
  %s5 = inlined_call_operand.vmem [shape: f32[3,32], index: 5, kind: input, shape index: {}]
  %s6 = inlined_call_operand.vmem [shape: f32[1,32], index: 6, kind: input, shape index: {}]
  %s7 = inlined_call_operand.vmem [shape: f32[1,32], index: 7, kind: input, shape index: {}]
  %s8 = inlined_call_operand.vmem [shape: f32[1,32], index: 8, kind: input, shape index: {}]
  %s9 = inlined_call_operand.vmem [shape: f32[32,32], index: 9, kind: input, shape index: {}]
  %s10 = inlined_call_operand.vmem [shape: f32[1,32], index: 10, kind: input, shape index: {}]
  %s11 = inlined_call_operand.vmem [shape: f32[32,4], index: 11, kind: input, shape index: {}]
  %s12 = inlined_call_operand.vmem [shape: f32[1,4], index: 12, kind: input, shape index: {}]
  %s13 = inlined_call_operand.vmem [shape: f32[1,4], index: 13, kind: input, shape index: {}]
  %s14 = inlined_call_operand.vmem [shape: f32[1,4], index: 14, kind: input, shape index: {}]
  %s15 = inlined_call_operand.vmem [shape: f32[4,4], index: 15, kind: input, shape index: {}]
  %s16 = inlined_call_operand.vmem [shape: f32[1,4], index: 16, kind: input, shape index: {}]
  %s17 = inlined_call_operand.vmem [shape: f32[4,32], index: 17, kind: input, shape index: {}]
  %s18 = inlined_call_operand.vmem [shape: f32[1,32], index: 18, kind: input, shape index: {}]
  %s19 = inlined_call_operand.vmem [shape: f32[1,32], index: 19, kind: input, shape index: {}]
  %s20 = inlined_call_operand.vmem [shape: f32[32,32], index: 20, kind: output, shape index: {}]
  %s21 = sld [smem:[#allocation0]]
  $region90: #{decoder_forward.10} parent=0
    _
  %s23 = ssub.s32 1, %s21
  %s24 = scalar_select 0, %s23, %s21
  // Predicated region
  $region2: #{decoder_forward.10} parent=0 // pred_check
    _
  $region3: #{decoder_forward.10} parent=0 // pred_check_branch
    %26 = sbr.rel (0) target = $region5
  $region4: #{decoder_forward.10} parent=0 // pred_region
    _
  $region5: #{decoder_forward.10} parent=0 // pred_fallthru
    _
  // Predicated region
  $region6: #{decoder_forward.10} parent=0 // pred_check
    _
  $region7: #{decoder_forward.10} parent=0 // pred_check_branch
    %28 = sbr.rel (0) target = $region9
  $region8: #{decoder_forward.10} parent=0 // pred_region
    _
  $region9: #{decoder_forward.10} parent=0 // pred_fallthru
    _
  // Predicated region
  $region10: #{decoder_forward.10} parent=0 // pred_check
    _
  $region11: #{decoder_forward.10} parent=0 // pred_check_branch
    %30 = sbr.rel (0) target = $region13
  $region12: #{decoder_forward.10} parent=0 // pred_region
    _
  $region13: #{decoder_forward.10} parent=0 // pred_fallthru
    _
  // Predicated region
  $region14: #{decoder_forward.10} parent=0 // pred_check
    _
  $region15: #{decoder_forward.10} parent=0 // pred_check_branch
    %32 = sbr.rel (0) target = $region17
  $region16: #{decoder_forward.10} parent=0 // pred_region
    _
  $region17: #{decoder_forward.10} parent=0 // pred_fallthru
    _
  // Predicated region
  $region18: #{decoder_forward.10} parent=0 // pred_check
    _
  $region19: #{decoder_forward.10} parent=0 // pred_check_branch
    %34 = sbr.rel (0) target = $region21
  $region20: #{decoder_forward.10} parent=0 // pred_region
    _
  $region21: #{decoder_forward.10} parent=0 // pred_fallthru
    _
  // Predicated region
  $region22: #{decoder_forward.10} parent=0 // pred_check
    _
  $region23: #{decoder_forward.10} parent=0 // pred_check_branch
    %36 = sbr.rel (0) target = $region25
  $region24: #{decoder_forward.10} parent=0 // pred_region
    _
  $region25: #{decoder_forward.10} parent=0 // pred_fallthru
    _
  // Predicated region
  $region26: #{decoder_forward.10} parent=0 // pred_check
    _
  $region27: #{decoder_forward.10} parent=0 // pred_check_branch
    %38 = sbr.rel (0) target = $region29
  $region28: #{decoder_forward.10} parent=0 // pred_region
    _
  $region29: #{decoder_forward.10} parent=0 // pred_fallthru
    _
  // Predicated region
  $region30: #{decoder_forward.10} parent=0 // pred_check
    _
  $region31: #{decoder_forward.10} parent=0 // pred_check_branch
    %40 = sbr.rel (0) target = $region33
  $region32: #{decoder_forward.10} parent=0 // pred_region
    _
  $region33: #{decoder_forward.10} parent=0 // pred_fallthru
    _
  // Predicated region
  $region34: #{decoder_forward.10} parent=0 // pred_check
    _
  $region35: #{decoder_forward.10} parent=0 // pred_check_branch
    %42 = sbr.rel (0) target = $region37
  $region36: #{decoder_forward.10} parent=0 // pred_region
    _
  $region37: #{decoder_forward.10} parent=0 // pred_fallthru
    _
  // Predicated region
  $region38: #{decoder_forward.10} parent=0 // pred_check
    _
  $region39: #{decoder_forward.10} parent=0 // pred_check_branch
    %44 = sbr.rel (0) target = $region41
  $region40: #{decoder_forward.10} parent=0 // pred_region
    _
  $region41: #{decoder_forward.10} parent=0 // pred_fallthru
    _
  // Predicated region
  $region42: #{decoder_forward.10} parent=0 // pred_check
    _
  $region43: #{decoder_forward.10} parent=0 // pred_check_branch
    %46 = sbr.rel (0) target = $region45
  $region44: #{decoder_forward.10} parent=0 // pred_region
    _
  $region45: #{decoder_forward.10} parent=0 // pred_fallthru
    _
  // Predicated region
  $region46: #{decoder_forward.10} parent=0 // pred_check
    _
  $region47: #{decoder_forward.10} parent=0 // pred_check_branch
    %48 = sbr.rel (0) target = $region49
  $region48: #{decoder_forward.10} parent=0 // pred_region
    _
  $region49: #{decoder_forward.10} parent=0 // pred_fallthru
    _
  // Predicated region
  $region50: #{decoder_forward.10} parent=0 // pred_check
    _
  $region51: #{decoder_forward.10} parent=0 // pred_check_branch
    %50 = sbr.rel (0) target = $region53
  $region52: #{decoder_forward.10} parent=0 // pred_region
    _
  $region53: #{decoder_forward.10} parent=0 // pred_fallthru
    _
  // Predicated region
  $region54: #{decoder_forward.10} parent=0 // pred_check
    _
  $region55: #{decoder_forward.10} parent=0 // pred_check_branch
    %52 = sbr.rel (0) target = $region57
  $region56: #{decoder_forward.10} parent=0 // pred_region
    _
  $region57: #{decoder_forward.10} parent=0 // pred_fallthru
    _
  // Predicated region
  $region58: #{decoder_forward.10} parent=0 // pred_check
    _
  $region59: #{decoder_forward.10} parent=0 // pred_check_branch
    %54 = sbr.rel (0) target = $region61
  $region60: #{decoder_forward.10} parent=0 // pred_region
    _
  $region61: #{decoder_forward.10} parent=0 // pred_fallthru
    _
  // Predicated region
  $region62: #{decoder_forward.10} parent=0 // pred_check
    _
  $region63: #{decoder_forward.10} parent=0 // pred_check_branch
    %56 = sbr.rel (0) target = $region65
  $region64: #{decoder_forward.10} parent=0 // pred_region
    _
  $region65: #{decoder_forward.10} parent=0 // pred_fallthru
    _
  // Predicated region
  $region66: #{decoder_forward.10} parent=0 // pred_check
    _
  $region67: #{decoder_forward.10} parent=0 // pred_check_branch
    %58 = sbr.rel (0) target = $region69
  $region68: #{decoder_forward.10} parent=0 // pred_region
    _
  $region69: #{decoder_forward.10} parent=0 // pred_fallthru
    _
  // Predicated region
  $region70: #{decoder_forward.10} parent=0 // pred_check
    _
  $region71: #{decoder_forward.10} parent=0 // pred_check_branch
    %60 = sbr.rel (0) target = $region73
  $region72: #{decoder_forward.10} parent=0 // pred_region
    _
  $region73: #{decoder_forward.10} parent=0 // pred_fallthru
    _
  // Predicated region
  $region74: #{decoder_forward.10} parent=0 // pred_check
    _
  $region75: #{decoder_forward.10} parent=0 // pred_check_branch
    %62 = sbr.rel (0) target = $region77
  $region76: #{decoder_forward.10} parent=0 // pred_region
    _
  $region77: #{decoder_forward.10} parent=0 // pred_fallthru
    _
  // Predicated region
  $region78: #{decoder_forward.10} parent=0 // pred_check
    _
  $region79: #{decoder_forward.10} parent=0 // pred_check_branch
    %64 = sbr.rel (0) target = $region81
  $region80: #{decoder_forward.10} parent=0 // pred_region
    _
  $region81: #{decoder_forward.10} parent=0 // pred_fallthru
    _
  %v65 = vld [vmem:[%s0] sm:$0xff]
  %v66 = vld [vmem:[%s0 + $0x8] sm:$0xff]
  %v67 = vld [vmem:[%s0 + $0x10] sm:$0xff]
  %v68 = vld [vmem:[%s0 + $0x18] sm:$0xff]
  %v69 = vld [vmem:[%s1] sm:$0xff]
  %v70 = vld [vmem:[%s1 + $0x8] sm:$0xff]
  %v71 = vld [vmem:[%s1 + $0x10] sm:$0xff]
  %v72 = vld [vmem:[%s1 + $0x18] sm:$0xff]
  %v73 = vld [vmem:[%s1 + $0x20] sm:$0xff]
  %v74 = vld [vmem:[%s1 + $0x28] sm:$0xff]
  %v75 = vld [vmem:[%s1 + $0x30] sm:$0xff]
  %v76 = vld [vmem:[%s1 + $0x38] sm:$0xff]
  %v77 = vld [vmem:[%s1 + $0x40] sm:$0xff]
  %v78 = vld [vmem:[%s1 + $0x48] sm:$0xff]
  %v79 = vld [vmem:[%s1 + $0x50] sm:$0xff]
  %v80 = vld [vmem:[%s1 + $0x58] sm:$0xff]
  %v81 = vld [vmem:[%s1 + $0x60] sm:$0xff]
  %v82 = vld [vmem:[%s1 + $0x68] sm:$0xff]
  %v83 = vld [vmem:[%s1 + $0x70] sm:$0xff]
  %v84 = vld [vmem:[%s1 + $0x78] sm:$0xff]
  %v85 = vld [vmem:[%s1 + $0x80] sm:$0xff]
  %v86 = vld [vmem:[%s1 + $0x88] sm:$0xff]
  %v87 = vld [vmem:[%s1 + $0x90] sm:$0xff]
  %v88 = vld [vmem:[%s1 + $0x98] sm:$0xff]
  %v89 = vld [vmem:[%s1 + $0xa0] sm:$0xff]
  %v90 = vld [vmem:[%s1 + $0xa8] sm:$0xff]
  %v91 = vld [vmem:[%s1 + $0xb0] sm:$0xff]
  %v92 = vld [vmem:[%s1 + $0xb8] sm:$0xff]
  %v93 = vld [vmem:[%s1 + $0xc0] sm:$0xff]
  %v94 = vld [vmem:[%s1 + $0xc8] sm:$0xff]
  %v95 = vld [vmem:[%s1 + $0xd0] sm:$0xff]
  %v96 = vld [vmem:[%s1 + $0xd8] sm:$0xff]
  %v97 = vld [vmem:[%s1 + $0xe0] sm:$0xff]
  %v98 = vld [vmem:[%s1 + $0xe8] sm:$0xff]
  %v99 = vld [vmem:[%s1 + $0xf0] sm:$0xff]
  %v100 = vld [vmem:[%s1 + $0xf8] sm:$0xff]
  %v101 = vld [vmem:[%s2] sm:$0xff]
  %v102 = vld [vmem:[%s2 + $0x8] sm:$0xff]
  %v103 = vld [vmem:[%s2 + $0x10] sm:$0xff]
  %v104 = vld [vmem:[%s2 + $0x18] sm:$0xff]
  %v105 = vld [vmem:[%s2 + $0x20] sm:$0xff]
  %v106 = vld [vmem:[%s2 + $0x28] sm:$0xff]
  %v107 = vld [vmem:[%s2 + $0x30] sm:$0xff]
  %v108 = vld [vmem:[%s2 + $0x38] sm:$0xff]
  %v109 = vld [vmem:[%s2 + $0x40] sm:$0xff]
  %v110 = vld [vmem:[%s2 + $0x48] sm:$0xff]
  %v111 = vld [vmem:[%s2 + $0x50] sm:$0xff]
  %v112 = vld [vmem:[%s2 + $0x58] sm:$0xff]
  %v113 = vld [vmem:[%s2 + $0x60] sm:$0xff]
  %v114 = vld [vmem:[%s2 + $0x68] sm:$0xff]
  %v115 = vld [vmem:[%s2 + $0x70] sm:$0xff]
  %v116 = vld [vmem:[%s2 + $0x78] sm:$0xff]
  %v117 = vld [vmem:[%s2 + $0x80] sm:$0xff]
  %v118 = vld [vmem:[%s2 + $0x88] sm:$0xff]
  %v119 = vld [vmem:[%s2 + $0x90] sm:$0xff]
  %v120 = vld [vmem:[%s2 + $0x98] sm:$0xff]
  %v121 = vld [vmem:[%s2 + $0xa0] sm:$0xff]
  %v122 = vld [vmem:[%s2 + $0xa8] sm:$0xff]
  %v123 = vld [vmem:[%s2 + $0xb0] sm:$0xff]
  %v124 = vld [vmem:[%s2 + $0xb8] sm:$0xff]
  %v125 = vld [vmem:[%s2 + $0xc0] sm:$0xff]
  %v126 = vld [vmem:[%s2 + $0xc8] sm:$0xff]
  %v127 = vld [vmem:[%s2 + $0xd0] sm:$0xff]
  %v128 = vld [vmem:[%s2 + $0xd8] sm:$0xff]
  %v129 = vld [vmem:[%s2 + $0xe0] sm:$0xff]
  %v130 = vld [vmem:[%s2 + $0xe8] sm:$0xff]
  %v131 = vld [vmem:[%s2 + $0xf0] sm:$0xff]
  %v132 = vld [vmem:[%s2 + $0xf8] sm:$0xff]
  %v133 = vld [vmem:[%s3] sm:$0xff]
  %v134 = vld [vmem:[%s3 + $0x8] sm:$0xff]
  %v135 = vld [vmem:[%s3 + $0x10] sm:$0xff]
  %v136 = vld [vmem:[%s3 + $0x18] sm:$0xff]
  %v137 = vld [vmem:[%s3 + $0x20] sm:$0xff]
  %v138 = vld [vmem:[%s3 + $0x28] sm:$0xff]
  %v139 = vld [vmem:[%s3 + $0x30] sm:$0xff]
  %v140 = vld [vmem:[%s3 + $0x38] sm:$0xff]
  %v141 = vld [vmem:[%s3 + $0x40] sm:$0xff]
  %v142 = vld [vmem:[%s3 + $0x48] sm:$0xff]
  %v143 = vld [vmem:[%s3 + $0x50] sm:$0xff]
  %v144 = vld [vmem:[%s3 + $0x58] sm:$0xff]
  %v145 = vld [vmem:[%s3 + $0x60] sm:$0xff]
  %v146 = vld [vmem:[%s3 + $0x68] sm:$0xff]
  %v147 = vld [vmem:[%s3 + $0x70] sm:$0xff]
  %v148 = vld [vmem:[%s3 + $0x78] sm:$0xff]
  %v149 = vld [vmem:[%s3 + $0x80] sm:$0xff]
  %v150 = vld [vmem:[%s3 + $0x88] sm:$0xff]
  %v151 = vld [vmem:[%s3 + $0x90] sm:$0xff]
  %v152 = vld [vmem:[%s3 + $0x98] sm:$0xff]
  %v153 = vld [vmem:[%s3 + $0xa0] sm:$0xff]
  %v154 = vld [vmem:[%s3 + $0xa8] sm:$0xff]
  %v155 = vld [vmem:[%s3 + $0xb0] sm:$0xff]
  %v156 = vld [vmem:[%s3 + $0xb8] sm:$0xff]
  %v157 = vld [vmem:[%s3 + $0xc0] sm:$0xff]
  %v158 = vld [vmem:[%s3 + $0xc8] sm:$0xff]
  %v159 = vld [vmem:[%s3 + $0xd0] sm:$0xff]
  %v160 = vld [vmem:[%s3 + $0xd8] sm:$0xff]
  %v161 = vld [vmem:[%s3 + $0xe0] sm:$0xff]
  %v162 = vld [vmem:[%s3 + $0xe8] sm:$0xff]
  %v163 = vld [vmem:[%s3 + $0xf0] sm:$0xff]
  %v164 = vld [vmem:[%s3 + $0xf8] sm:$0xff]
  %v165 = vld [vmem:[%s5] sm:$0x7]
  %v166 = vld [vmem:[%s6] sm:$0x1]
  %v168 = vlaneseq
  %v169 = vshrl.u32 %v168, 7
  %v170 = vsub.s32 0, %v169
  %v171 = vrot.slane %v166, %v170
  %vm173 = vcmask 23552
  %v175 = vsel %vm173, %v133, 0
  %v178 = vsel %vm173, %v134, 0
  %v181 = vsel %vm173, %v135, 0
  %v184 = vsel %vm173, %v136, 0
  %v187 = vsel %vm173, %v137, 0
  %v190 = vsel %vm173, %v138, 0
  %v193 = vsel %vm173, %v139, 0
  %v196 = vsel %vm173, %v140, 0
  %v199 = vsel %vm173, %v141, 0
  %v202 = vsel %vm173, %v142, 0
  %v205 = vsel %vm173, %v143, 0
  %v208 = vsel %vm173, %v144, 0
  %v211 = vsel %vm173, %v145, 0
  %v214 = vsel %vm173, %v146, 0
  %v217 = vsel %vm173, %v147, 0
  %v220 = vsel %vm173, %v148, 0
  %v223 = vsel %vm173, %v149, 0
  %v226 = vsel %vm173, %v150, 0
  %v229 = vsel %vm173, %v151, 0
  %v232 = vsel %vm173, %v152, 0
  %v235 = vsel %vm173, %v153, 0
  %v238 = vsel %vm173, %v154, 0
  %v241 = vsel %vm173, %v155, 0
  %v244 = vsel %vm173, %v156, 0
  %v247 = vsel %vm173, %v157, 0
  %v250 = vsel %vm173, %v158, 0
  %v253 = vsel %vm173, %v159, 0
  %v256 = vsel %vm173, %v160, 0
  %v259 = vsel %vm173, %v161, 0
  %v262 = vsel %vm173, %v162, 0
  %v265 = vsel %vm173, %v163, 0
  %v268 = vsel %vm173, %v164, 0
  %vm270 = vcmask 1042432
  %v272 = vsel %vm270, %v165, 0
  %274 = vmatprep.subr.mxu0 0.0
  %275 = vmatpush1.msra.mxu0 %v272
  %276 = vmatprep.subr.mxu0 0.0
  %277 = vmatpush1.msra.mxu0 0.0
  %278 = vmatprep.subr.mxu0 0.0
  %279 = vmatpush1.msra.mxu0 0.0
  %280 = vmatprep.subr.mxu0 0.0
  %281 = vmatpush1.msra.mxu0 0.0
  %282 = vmatprep.subr.mxu0 0.0
  %283 = vmatpush1.msra.mxu0 0.0
  %284 = vmatprep.subr.mxu0 0.0
  %285 = vmatpush1.msra.mxu0 0.0
  %286 = vmatprep.subr.mxu0 0.0
  %287 = vmatpush1.msra.mxu0 0.0
  %288 = vmatprep.subr.mxu0 0.0
  %289 = vmatpush1.msra.mxu0 0.0
  %290 = vmatprep.subr.mxu0 0.0
  %291 = vmatpush1.msra.mxu0 0.0
  %292 = vmatprep.subr.mxu0 0.0
  %293 = vmatpush1.msra.mxu0 0.0
  %294 = vmatprep.subr.mxu0 0.0
  %295 = vmatpush1.msra.mxu0 0.0
  %296 = vmatprep.subr.mxu0 0.0
  %297 = vmatpush1.msra.mxu0 0.0
  %298 = vmatprep.subr.mxu0 0.0
  %299 = vmatpush1.msra.mxu0 0.0
  %300 = vmatprep.subr.mxu0 0.0
  %301 = vmatpush1.msra.mxu0 0.0
  %302 = vmatprep.subr.mxu0 0.0
  %303 = vmatpush1.msra.mxu0 0.0
  %304 = vmatprep.subr.mxu0 0.0
  %305 = vmatpush1.msra.mxu0 0.0
  %306 = vmatprep.subr.mxu0 0.0
  %307 = vmatpush1.msra.mxu0 0.0
  %308 = vmatprep.subr.mxu0 0.0
  %309 = vmatpush1.msra.mxu0 0.0
  %310 = vmatprep.subr.mxu0 0.0
  %311 = vmatpush1.msra.mxu0 0.0
  %312 = vmatprep.subr.mxu0 0.0
  %313 = vmatpush1.msra.mxu0 0.0
  %314 = vmatprep.subr.mxu0 0.0
  %315 = vmatpush1.msra.mxu0 0.0
  %316 = vmatprep.subr.mxu0 0.0
  %317 = vmatpush1.msra.mxu0 0.0
  %318 = vmatprep.subr.mxu0 0.0
  %319 = vmatpush1.msra.mxu0 0.0
  %320 = vmatprep.subr.mxu0 0.0
  %321 = vmatpush1.msra.mxu0 0.0
  %322 = vmatprep.subr.mxu0 0.0
  %323 = vmatpush1.msra.mxu0 0.0
  %324 = vmatprep.subr.mxu0 0.0
  %325 = vmatpush1.msra.mxu0 0.0
  %326 = vmatprep.subr.mxu0 0.0
  %327 = vmatpush1.msra.mxu0 0.0
  %328 = vmatprep.subr.mxu0 0.0
  %329 = vmatpush1.msra.mxu0 0.0
  %330 = vmatprep.subr.mxu0 0.0
  %331 = vmatpush1.msra.mxu0 0.0
  %332 = vmatprep.subr.mxu0 0.0
  %333 = vmatpush1.msra.mxu0 0.0
  %334 = vmatprep.subr.mxu0 0.0
  %335 = vmatpush1.msra.mxu0 0.0
  %336 = vmatprep.subr.mxu0 0.0
  %337 = vmatpush1.msra.mxu0 0.0
  %338 = vmatprep.mubr.f32.mxu0 0.0
  %339 = vmatmul.mubr.f32.gmra.mrb[0].mxu0 %v175
  %v340 = vpop.f32.mrb[0].mxu0
  %v341 = vadd.f32 %v171, %v340
  %v342 = vpop.f32.mrb[0].mxu0
  %343 = vmatprep.mubr.f32.mxu0 0.0
  %344 = vmatmul.mubr.f32.gmra.mrb[0].mxu0 %v178
  %v345 = vpop.f32.mrb[0].mxu0
  %v346 = vadd.f32 %v171, %v345
  %v347 = vpop.f32.mrb[0].mxu0
  %348 = vmatprep.mubr.f32.mxu0 0.0
  %349 = vmatmul.mubr.f32.gmra.mrb[0].mxu0 %v181
  %v350 = vpop.f32.mrb[0].mxu0
  %v351 = vadd.f32 %v171, %v350
  %v352 = vpop.f32.mrb[0].mxu0
  %353 = vmatprep.mubr.f32.mxu0 0.0
  %354 = vmatmul.mubr.f32.gmra.mrb[0].mxu0 %v184
  %v355 = vpop.f32.mrb[0].mxu0
  %v356 = vadd.f32 %v171, %v355
  %v357 = vpop.f32.mrb[0].mxu0
  %358 = vmatprep.mubr.f32.mxu0 0.0
  %359 = vmatmul.mubr.f32.gmra.mrb[0].mxu0 %v187
  %v360 = vpop.f32.mrb[0].mxu0
  %v361 = vadd.f32 %v171, %v360
  %v362 = vpop.f32.mrb[0].mxu0
  %363 = vmatprep.mubr.f32.mxu0 0.0
  %364 = vmatmul.mubr.f32.gmra.mrb[0].mxu0 %v190
  %v365 = vpop.f32.mrb[0].mxu0
  %v366 = vadd.f32 %v171, %v365
  %v367 = vpop.f32.mrb[0].mxu0
  %368 = vmatprep.mubr.f32.mxu0 0.0
  %369 = vmatmul.mubr.f32.gmra.mrb[0].mxu0 %v193
  %v370 = vpop.f32.mrb[0].mxu0
  %v371 = vadd.f32 %v171, %v370
  %v372 = vpop.f32.mrb[0].mxu0
  %373 = vmatprep.mubr.f32.mxu0 0.0
  %374 = vmatmul.mubr.f32.gmra.mrb[0].mxu0 %v196
  %v375 = vpop.f32.mrb[0].mxu0
  %v376 = vadd.f32 %v171, %v375
  %v377 = vpop.f32.mrb[0].mxu0
  %378 = vmatprep.mubr.f32.mxu0 0.0
  %379 = vmatmul.mubr.f32.gmra.mrb[0].mxu0 %v199
  %v380 = vpop.f32.mrb[0].mxu0
  %v381 = vadd.f32 %v171, %v380
  %v382 = vpop.f32.mrb[0].mxu0
  %383 = vmatprep.mubr.f32.mxu0 0.0
  %384 = vmatmul.mubr.f32.gmra.mrb[0].mxu0 %v202
  %v385 = vpop.f32.mrb[0].mxu0
  %v386 = vadd.f32 %v171, %v385
  %v387 = vpop.f32.mrb[0].mxu0
  %388 = vmatprep.mubr.f32.mxu0 0.0
  %389 = vmatmul.mubr.f32.gmra.mrb[0].mxu0 %v205
  %v390 = vpop.f32.mrb[0].mxu0
  %v391 = vadd.f32 %v171, %v390
  %v392 = vpop.f32.mrb[0].mxu0
  %393 = vmatprep.mubr.f32.mxu0 0.0
  %394 = vmatmul.mubr.f32.gmra.mrb[0].mxu0 %v208
  %v395 = vpop.f32.mrb[0].mxu0
  %v396 = vadd.f32 %v171, %v395
  %v397 = vpop.f32.mrb[0].mxu0
  %398 = vmatprep.mubr.f32.mxu0 0.0
  %399 = vmatmul.mubr.f32.gmra.mrb[0].mxu0 %v211
  %v400 = vpop.f32.mrb[0].mxu0
  %v401 = vadd.f32 %v171, %v400
  %v402 = vpop.f32.mrb[0].mxu0
  %403 = vmatprep.mubr.f32.mxu0 0.0
  %404 = vmatmul.mubr.f32.gmra.mrb[0].mxu0 %v214
  %v405 = vpop.f32.mrb[0].mxu0
  %v406 = vadd.f32 %v171, %v405
  %v407 = vpop.f32.mrb[0].mxu0
  %408 = vmatprep.mubr.f32.mxu0 0.0
  %409 = vmatmul.mubr.f32.gmra.mrb[0].mxu0 %v217
  %v410 = vpop.f32.mrb[0].mxu0
  %v411 = vadd.f32 %v171, %v410
  %v412 = vpop.f32.mrb[0].mxu0
  %413 = vmatprep.mubr.f32.mxu0 0.0
  %414 = vmatmul.mubr.f32.gmra.mrb[0].mxu0 %v220
  %v415 = vpop.f32.mrb[0].mxu0
  %v416 = vadd.f32 %v171, %v415
  %v417 = vpop.f32.mrb[0].mxu0
  %418 = vmatprep.mubr.f32.mxu0 0.0
  %419 = vmatmul.mubr.f32.gmra.mrb[0].mxu0 %v223
  %v420 = vpop.f32.mrb[0].mxu0
  %v421 = vadd.f32 %v171, %v420
  %v422 = vpop.f32.mrb[0].mxu0
  %423 = vmatprep.mubr.f32.mxu0 0.0
  %424 = vmatmul.mubr.f32.gmra.mrb[0].mxu0 %v226
  %v425 = vpop.f32.mrb[0].mxu0
  %v426 = vadd.f32 %v171, %v425
  %v427 = vpop.f32.mrb[0].mxu0
  %428 = vmatprep.mubr.f32.mxu0 0.0
  %429 = vmatmul.mubr.f32.gmra.mrb[0].mxu0 %v229
  %v430 = vpop.f32.mrb[0].mxu0
  %v431 = vadd.f32 %v171, %v430
  %v432 = vpop.f32.mrb[0].mxu0
  %433 = vmatprep.mubr.f32.mxu0 0.0
  %434 = vmatmul.mubr.f32.gmra.mrb[0].mxu0 %v232
  %v435 = vpop.f32.mrb[0].mxu0
  %v436 = vadd.f32 %v171, %v435
  %v437 = vpop.f32.mrb[0].mxu0
  %438 = vmatprep.mubr.f32.mxu0 0.0
  %439 = vmatmul.mubr.f32.gmra.mrb[0].mxu0 %v235
  %v440 = vpop.f32.mrb[0].mxu0
  %v441 = vadd.f32 %v171, %v440
  %v442 = vpop.f32.mrb[0].mxu0
  %443 = vmatprep.mubr.f32.mxu0 0.0
  %444 = vmatmul.mubr.f32.gmra.mrb[0].mxu0 %v238
  %v445 = vpop.f32.mrb[0].mxu0
  %v446 = vadd.f32 %v171, %v445
  %v447 = vpop.f32.mrb[0].mxu0
  %448 = vmatprep.mubr.f32.mxu0 0.0
  %449 = vmatmul.mubr.f32.gmra.mrb[0].mxu0 %v241
  %v450 = vpop.f32.mrb[0].mxu0
  %v451 = vadd.f32 %v171, %v450
  %v452 = vpop.f32.mrb[0].mxu0
  %453 = vmatprep.mubr.f32.mxu0 0.0
  %454 = vmatmul.mubr.f32.gmra.mrb[0].mxu0 %v244
  %v455 = vpop.f32.mrb[0].mxu0
  %v456 = vadd.f32 %v171, %v455
  %v457 = vpop.f32.mrb[0].mxu0
  %458 = vmatprep.mubr.f32.mxu0 0.0
  %459 = vmatmul.mubr.f32.gmra.mrb[0].mxu0 %v247
  %v460 = vpop.f32.mrb[0].mxu0
  %v461 = vadd.f32 %v171, %v460
  %v462 = vpop.f32.mrb[0].mxu0
  %463 = vmatprep.mubr.f32.mxu0 0.0
  %464 = vmatmul.mubr.f32.gmra.mrb[0].mxu0 %v250
  %v465 = vpop.f32.mrb[0].mxu0
  %v466 = vadd.f32 %v171, %v465
  %v467 = vpop.f32.mrb[0].mxu0
  %468 = vmatprep.mubr.f32.mxu0 0.0
  %469 = vmatmul.mubr.f32.gmra.mrb[0].mxu0 %v253
  %v470 = vpop.f32.mrb[0].mxu0
  %v471 = vadd.f32 %v171, %v470
  %v472 = vpop.f32.mrb[0].mxu0
  %473 = vmatprep.mubr.f32.mxu0 0.0
  %474 = vmatmul.mubr.f32.gmra.mrb[0].mxu0 %v256
  %v475 = vpop.f32.mrb[0].mxu0
  %v476 = vadd.f32 %v171, %v475
  %v477 = vpop.f32.mrb[0].mxu0
  %478 = vmatprep.mubr.f32.mxu0 0.0
  %479 = vmatmul.mubr.f32.gmra.mrb[0].mxu0 %v259
  %v480 = vpop.f32.mrb[0].mxu0
  %v481 = vadd.f32 %v171, %v480
  %v482 = vpop.f32.mrb[0].mxu0
  %483 = vmatprep.mubr.f32.mxu0 0.0
  %484 = vmatmul.mubr.f32.gmra.mrb[0].mxu0 %v262
  %v485 = vpop.f32.mrb[0].mxu0
  %v486 = vadd.f32 %v171, %v485
  %v487 = vpop.f32.mrb[0].mxu0
  %488 = vmatprep.mubr.f32.mxu0 0.0
  %489 = vmatmul.mubr.f32.gmra.mrb[0].mxu0 %v265
  %v490 = vpop.f32.mrb[0].mxu0
  %v491 = vadd.f32 %v171, %v490
  %v492 = vpop.f32.mrb[0].mxu0
  %493 = vmatprep.mubr.f32.mxu0 0.0
  %494 = vmatmul.mubr.f32.gmra.mrb[0].mxu0 %v268
  %v495 = vpop.f32.mrb[0].mxu0
  %v496 = vadd.f32 %v171, %v495
  %v497 = vpop.f32.mrb[0].mxu0
  %498 = vdwg.mxu0
  %v499 = vld [vmem:[%s7] sm:$0x1]
  %v501 = vlaneseq
  %v502 = vshrl.u32 %v501, 7
  %v503 = vsub.s32 0, %v502
  %v504 = vrot.slane %v499, %v503
  %v506 = vmul.f32 %v341, %v504
  %v507 = vmul.f32 %v346, %v504
  %v508 = vmul.f32 %v351, %v504
  %v509 = vmul.f32 %v356, %v504
  %v510 = vmul.f32 %v361, %v504
  %v511 = vmul.f32 %v366, %v504
  %v512 = vmul.f32 %v371, %v504
  %v513 = vmul.f32 %v376, %v504
  %v514 = vmul.f32 %v381, %v504
  %v515 = vmul.f32 %v386, %v504
  %v516 = vmul.f32 %v391, %v504
  %v517 = vmul.f32 %v396, %v504
  %v518 = vmul.f32 %v401, %v504
  %v519 = vmul.f32 %v406, %v504
  %v520 = vmul.f32 %v411, %v504
  %v521 = vmul.f32 %v416, %v504
  %v522 = vmul.f32 %v421, %v504
  %v523 = vmul.f32 %v426, %v504
  %v524 = vmul.f32 %v431, %v504
  %v525 = vmul.f32 %v436, %v504
  %v526 = vmul.f32 %v441, %v504
  %v527 = vmul.f32 %v446, %v504
  %v528 = vmul.f32 %v451, %v504
  %v529 = vmul.f32 %v456, %v504
  %v530 = vmul.f32 %v461, %v504
  %v531 = vmul.f32 %v466, %v504
  %v532 = vmul.f32 %v471, %v504
  %v533 = vmul.f32 %v476, %v504
  %v534 = vmul.f32 %v481, %v504
  %v535 = vmul.f32 %v486, %v504
  %v536 = vmul.f32 %v491, %v504
  %v537 = vmul.f32 %v496, %v504
  %v538 = vld [vmem:[%s8] sm:$0x1]
  %v540 = vlaneseq
  %v541 = vshrl.u32 %v540, 7
  %v542 = vsub.s32 0, %v541
  %v543 = vrot.slane %v538, %v542
  %v545 = vadd.f32 %v506, %v543
  %v546 = vadd.f32 %v507, %v543
  %v547 = vadd.f32 %v508, %v543
  %v548 = vadd.f32 %v509, %v543
  %v549 = vadd.f32 %v510, %v543
  %v550 = vadd.f32 %v511, %v543
  %v551 = vadd.f32 %v512, %v543
  %v552 = vadd.f32 %v513, %v543
  %v553 = vadd.f32 %v514, %v543
  %v554 = vadd.f32 %v515, %v543
  %v555 = vadd.f32 %v516, %v543
  %v556 = vadd.f32 %v517, %v543
  %v557 = vadd.f32 %v518, %v543
  %v558 = vadd.f32 %v519, %v543
  %v559 = vadd.f32 %v520, %v543
  %v560 = vadd.f32 %v521, %v543
  %v561 = vadd.f32 %v522, %v543
  %v562 = vadd.f32 %v523, %v543
  %v563 = vadd.f32 %v524, %v543
  %v564 = vadd.f32 %v525, %v543
  %v565 = vadd.f32 %v526, %v543
  %v566 = vadd.f32 %v527, %v543
  %v567 = vadd.f32 %v528, %v543
  %v568 = vadd.f32 %v529, %v543
  %v569 = vadd.f32 %v530, %v543
  %v570 = vadd.f32 %v531, %v543
  %v571 = vadd.f32 %v532, %v543
  %v572 = vadd.f32 %v533, %v543
  %v573 = vadd.f32 %v534, %v543
  %v574 = vadd.f32 %v535, %v543
  %v575 = vadd.f32 %v536, %v543
  %v576 = vadd.f32 %v537, %v543
  %v577 = vmax.f32 %v545, 0.0
  %v578 = vmax.f32 %v546, 0.0
  %v579 = vmax.f32 %v547, 0.0
  %v580 = vmax.f32 %v548, 0.0
  %v581 = vmax.f32 %v549, 0.0
  %v582 = vmax.f32 %v550, 0.0
  %v583 = vmax.f32 %v551, 0.0
  %v584 = vmax.f32 %v552, 0.0
  %v585 = vmax.f32 %v553, 0.0
  %v586 = vmax.f32 %v554, 0.0
  %v587 = vmax.f32 %v555, 0.0
  %v588 = vmax.f32 %v556, 0.0
  %v589 = vmax.f32 %v557, 0.0
  %v590 = vmax.f32 %v558, 0.0
  %v591 = vmax.f32 %v559, 0.0
  %v592 = vmax.f32 %v560, 0.0
  %v593 = vmax.f32 %v561, 0.0
  %v594 = vmax.f32 %v562, 0.0
  %v595 = vmax.f32 %v563, 0.0
  %v596 = vmax.f32 %v564, 0.0
  %v597 = vmax.f32 %v565, 0.0
  %v598 = vmax.f32 %v566, 0.0
  %v599 = vmax.f32 %v567, 0.0
  %v600 = vmax.f32 %v568, 0.0
  %v601 = vmax.f32 %v569, 0.0
  %v602 = vmax.f32 %v570, 0.0
  %v603 = vmax.f32 %v571, 0.0
  %v604 = vmax.f32 %v572, 0.0
  %v605 = vmax.f32 %v573, 0.0
  %v606 = vmax.f32 %v574, 0.0
  %v607 = vmax.f32 %v575, 0.0
  %v608 = vmax.f32 %v576, 0.0
  %v609 = vld [vmem:[%s9] sm:$0xff]
  %v610 = vld [vmem:[%s9 + $0x8] sm:$0xff]
  %v611 = vld [vmem:[%s9 + $0x10] sm:$0xff]
  %v612 = vld [vmem:[%s9 + $0x18] sm:$0xff]
  %v613 = vld [vmem:[%s10] sm:$0x1]
  %v615 = vlaneseq
  %v616 = vshrl.u32 %v615, 7
  %v617 = vsub.s32 0, %v616
  %v618 = vrot.slane %v613, %v617
  %vm620 = vcmask 261120
  %v622 = vsel %vm620, %v577, 0
  %v625 = vsel %vm620, %v578, 0
  %v628 = vsel %vm620, %v579, 0
  %v631 = vsel %vm620, %v580, 0
  %v634 = vsel %vm620, %v581, 0
  %v637 = vsel %vm620, %v582, 0
  %v640 = vsel %vm620, %v583, 0
  %v643 = vsel %vm620, %v584, 0
  %v646 = vsel %vm620, %v585, 0
  %v649 = vsel %vm620, %v586, 0
  %v652 = vsel %vm620, %v587, 0
  %v655 = vsel %vm620, %v588, 0
  %v658 = vsel %vm620, %v589, 0
  %v661 = vsel %vm620, %v590, 0
  %v664 = vsel %vm620, %v591, 0
  %v667 = vsel %vm620, %v592, 0
  %v670 = vsel %vm620, %v593, 0
  %v673 = vsel %vm620, %v594, 0
  %v676 = vsel %vm620, %v595, 0
  %v679 = vsel %vm620, %v596, 0
  %v682 = vsel %vm620, %v597, 0
  %v685 = vsel %vm620, %v598, 0
  %v688 = vsel %vm620, %v599, 0
  %v691 = vsel %vm620, %v600, 0
  %v694 = vsel %vm620, %v601, 0
  %v697 = vsel %vm620, %v602, 0
  %v700 = vsel %vm620, %v603, 0
  %v703 = vsel %vm620, %v604, 0
  %v706 = vsel %vm620, %v605, 0
  %v709 = vsel %vm620, %v606, 0
  %v712 = vsel %vm620, %v607, 0
  %v715 = vsel %vm620, %v608, 0
  %717 = vmatprep.subr.mxu0 0.0
  %718 = vmatpush1.msra.mxu0 %v609
  %719 = vmatprep.subr.mxu0 0.0
  %720 = vmatpush1.msra.mxu0 %v610
  %721 = vmatprep.subr.mxu0 0.0
  %722 = vmatpush1.msra.mxu0 %v611
  %723 = vmatprep.subr.mxu0 0.0
  %724 = vmatpush1.msra.mxu0 %v612
  %725 = vmatprep.subr.mxu0 0.0
  %726 = vmatpush1.msra.mxu0 0.0
  %727 = vmatprep.subr.mxu0 0.0
  %728 = vmatpush1.msra.mxu0 0.0
  %729 = vmatprep.subr.mxu0 0.0
  %730 = vmatpush1.msra.mxu0 0.0
  %731 = vmatprep.subr.mxu0 0.0
  %732 = vmatpush1.msra.mxu0 0.0
  %733 = vmatprep.subr.mxu0 0.0
  %734 = vmatpush1.msra.mxu0 0.0
  %735 = vmatprep.subr.mxu0 0.0
  %736 = vmatpush1.msra.mxu0 0.0
  %737 = vmatprep.subr.mxu0 0.0
  %738 = vmatpush1.msra.mxu0 0.0
  %739 = vmatprep.subr.mxu0 0.0
  %740 = vmatpush1.msra.mxu0 0.0
  %741 = vmatprep.subr.mxu0 0.0
  %742 = vmatpush1.msra.mxu0 0.0
  %743 = vmatprep.subr.mxu0 0.0
  %744 = vmatpush1.msra.mxu0 0.0
  %745 = vmatprep.subr.mxu0 0.0
  %746 = vmatpush1.msra.mxu0 0.0
  %747 = vmatprep.subr.mxu0 0.0
  %748 = vmatpush1.msra.mxu0 0.0
  %749 = vmatprep.subr.mxu0 0.0
  %750 = vmatpush1.msra.mxu0 0.0
  %751 = vmatprep.subr.mxu0 0.0
  %752 = vmatpush1.msra.mxu0 0.0
  %753 = vmatprep.subr.mxu0 0.0
  %754 = vmatpush1.msra.mxu0 0.0
  %755 = vmatprep.subr.mxu0 0.0
  %756 = vmatpush1.msra.mxu0 0.0
  %757 = vmatprep.subr.mxu0 0.0
  %758 = vmatpush1.msra.mxu0 0.0
  %759 = vmatprep.subr.mxu0 0.0
  %760 = vmatpush1.msra.mxu0 0.0
  %761 = vmatprep.subr.mxu0 0.0
  %762 = vmatpush1.msra.mxu0 0.0
  %763 = vmatprep.subr.mxu0 0.0
  %764 = vmatpush1.msra.mxu0 0.0
  %765 = vmatprep.subr.mxu0 0.0
  %766 = vmatpush1.msra.mxu0 0.0
  %767 = vmatprep.subr.mxu0 0.0
  %768 = vmatpush1.msra.mxu0 0.0
  %769 = vmatprep.subr.mxu0 0.0
  %770 = vmatpush1.msra.mxu0 0.0
  %771 = vmatprep.subr.mxu0 0.0
  %772 = vmatpush1.msra.mxu0 0.0
  %773 = vmatprep.subr.mxu0 0.0
  %774 = vmatpush1.msra.mxu0 0.0
  %775 = vmatprep.subr.mxu0 0.0
  %776 = vmatpush1.msra.mxu0 0.0
  %777 = vmatprep.subr.mxu0 0.0
  %778 = vmatpush1.msra.mxu0 0.0
  %779 = vmatprep.subr.mxu0 0.0
  %780 = vmatpush1.msra.mxu0 0.0
  %781 = vmatprep.mubr.f32.mxu0 0.0
  %782 = vmatmul.mubr.f32.gmra.mrb[0].mxu0 %v622
  %v783 = vpop.f32.mrb[0].mxu0
  %v784 = vadd.f32 %v618, %v783
  %v785 = vpop.f32.mrb[0].mxu0
  %786 = vmatprep.mubr.f32.mxu0 0.0
  %787 = vmatmul.mubr.f32.gmra.mrb[0].mxu0 %v625
  %v788 = vpop.f32.mrb[0].mxu0
  %v789 = vadd.f32 %v618, %v788
  %v790 = vpop.f32.mrb[0].mxu0
  %791 = vmatprep.mubr.f32.mxu0 0.0
  %792 = vmatmul.mubr.f32.gmra.mrb[0].mxu0 %v628
  %v793 = vpop.f32.mrb[0].mxu0
  %v794 = vadd.f32 %v618, %v793
  %v795 = vpop.f32.mrb[0].mxu0
  %796 = vmatprep.mubr.f32.mxu0 0.0
  %797 = vmatmul.mubr.f32.gmra.mrb[0].mxu0 %v631
  %v798 = vpop.f32.mrb[0].mxu0
  %v799 = vadd.f32 %v618, %v798
  %v800 = vpop.f32.mrb[0].mxu0
  %801 = vmatprep.mubr.f32.mxu0 0.0
  %802 = vmatmul.mubr.f32.gmra.mrb[0].mxu0 %v634
  %v803 = vpop.f32.mrb[0].mxu0
  %v804 = vadd.f32 %v618, %v803
  %v805 = vpop.f32.mrb[0].mxu0
  %806 = vmatprep.mubr.f32.mxu0 0.0
  %807 = vmatmul.mubr.f32.gmra.mrb[0].mxu0 %v637
  %v808 = vpop.f32.mrb[0].mxu0
  %v809 = vadd.f32 %v618, %v808
  %v810 = vpop.f32.mrb[0].mxu0
  %811 = vmatprep.mubr.f32.mxu0 0.0
  %812 = vmatmul.mubr.f32.gmra.mrb[0].mxu0 %v640
  %v813 = vpop.f32.mrb[0].mxu0
  %v814 = vadd.f32 %v618, %v813
  %v815 = vpop.f32.mrb[0].mxu0
  %816 = vmatprep.mubr.f32.mxu0 0.0
  %817 = vmatmul.mubr.f32.gmra.mrb[0].mxu0 %v643
  %v818 = vpop.f32.mrb[0].mxu0
  %v819 = vadd.f32 %v618, %v818
  %v820 = vpop.f32.mrb[0].mxu0
  %821 = vmatprep.mubr.f32.mxu0 0.0
  %822 = vmatmul.mubr.f32.gmra.mrb[0].mxu0 %v646
  %v823 = vpop.f32.mrb[0].mxu0
  %v824 = vadd.f32 %v618, %v823
  %v825 = vpop.f32.mrb[0].mxu0
  %826 = vmatprep.mubr.f32.mxu0 0.0
  %827 = vmatmul.mubr.f32.gmra.mrb[0].mxu0 %v649
  %v828 = vpop.f32.mrb[0].mxu0
  %v829 = vadd.f32 %v618, %v828
  %v830 = vpop.f32.mrb[0].mxu0
  %831 = vmatprep.mubr.f32.mxu0 0.0
  %832 = vmatmul.mubr.f32.gmra.mrb[0].mxu0 %v652
  %v833 = vpop.f32.mrb[0].mxu0
  %v834 = vadd.f32 %v618, %v833
  %v835 = vpop.f32.mrb[0].mxu0
  %836 = vmatprep.mubr.f32.mxu0 0.0
  %837 = vmatmul.mubr.f32.gmra.mrb[0].mxu0 %v655
  %v838 = vpop.f32.mrb[0].mxu0
  %v839 = vadd.f32 %v618, %v838
  %v840 = vpop.f32.mrb[0].mxu0
  %841 = vmatprep.mubr.f32.mxu0 0.0
  %842 = vmatmul.mubr.f32.gmra.mrb[0].mxu0 %v658
  %v843 = vpop.f32.mrb[0].mxu0
  %v844 = vadd.f32 %v618, %v843
  %v845 = vpop.f32.mrb[0].mxu0
  %846 = vmatprep.mubr.f32.mxu0 0.0
  %847 = vmatmul.mubr.f32.gmra.mrb[0].mxu0 %v661
  %v848 = vpop.f32.mrb[0].mxu0
  %v849 = vadd.f32 %v618, %v848
  %v850 = vpop.f32.mrb[0].mxu0
  %851 = vmatprep.mubr.f32.mxu0 0.0
  %852 = vmatmul.mubr.f32.gmra.mrb[0].mxu0 %v664
  %v853 = vpop.f32.mrb[0].mxu0
  %v854 = vadd.f32 %v618, %v853
  %v855 = vpop.f32.mrb[0].mxu0
  %856 = vmatprep.mubr.f32.mxu0 0.0
  %857 = vmatmul.mubr.f32.gmra.mrb[0].mxu0 %v667
  %v858 = vpop.f32.mrb[0].mxu0
  %v859 = vadd.f32 %v618, %v858
  %v860 = vpop.f32.mrb[0].mxu0
  %861 = vmatprep.mubr.f32.mxu0 0.0
  %862 = vmatmul.mubr.f32.gmra.mrb[0].mxu0 %v670
  %v863 = vpop.f32.mrb[0].mxu0
  %v864 = vadd.f32 %v618, %v863
  %v865 = vpop.f32.mrb[0].mxu0
  %866 = vmatprep.mubr.f32.mxu0 0.0
  %867 = vmatmul.mubr.f32.gmra.mrb[0].mxu0 %v673
  %v868 = vpop.f32.mrb[0].mxu0
  %v869 = vadd.f32 %v618, %v868
  %v870 = vpop.f32.mrb[0].mxu0
  %871 = vmatprep.mubr.f32.mxu0 0.0
  %872 = vmatmul.mubr.f32.gmra.mrb[0].mxu0 %v676
  %v873 = vpop.f32.mrb[0].mxu0
  %v874 = vadd.f32 %v618, %v873
  %v875 = vpop.f32.mrb[0].mxu0
  %876 = vmatprep.mubr.f32.mxu0 0.0
  %877 = vmatmul.mubr.f32.gmra.mrb[0].mxu0 %v679
  %v878 = vpop.f32.mrb[0].mxu0
  %v879 = vadd.f32 %v618, %v878
  %v880 = vpop.f32.mrb[0].mxu0
  %881 = vmatprep.mubr.f32.mxu0 0.0
  %882 = vmatmul.mubr.f32.gmra.mrb[0].mxu0 %v682
  %v883 = vpop.f32.mrb[0].mxu0
  %v884 = vadd.f32 %v618, %v883
  %v885 = vpop.f32.mrb[0].mxu0
  %886 = vmatprep.mubr.f32.mxu0 0.0
  %887 = vmatmul.mubr.f32.gmra.mrb[0].mxu0 %v685
  %v888 = vpop.f32.mrb[0].mxu0
  %v889 = vadd.f32 %v618, %v888
  %v890 = vpop.f32.mrb[0].mxu0
  %891 = vmatprep.mubr.f32.mxu0 0.0
  %892 = vmatmul.mubr.f32.gmra.mrb[0].mxu0 %v688
  %v893 = vpop.f32.mrb[0].mxu0
  %v894 = vadd.f32 %v618, %v893
  %v895 = vpop.f32.mrb[0].mxu0
  %896 = vmatprep.mubr.f32.mxu0 0.0
  %897 = vmatmul.mubr.f32.gmra.mrb[0].mxu0 %v691
  %v898 = vpop.f32.mrb[0].mxu0
  %v899 = vadd.f32 %v618, %v898
  %v900 = vpop.f32.mrb[0].mxu0
  %901 = vmatprep.mubr.f32.mxu0 0.0
  %902 = vmatmul.mubr.f32.gmra.mrb[0].mxu0 %v694
  %v903 = vpop.f32.mrb[0].mxu0
  %v904 = vadd.f32 %v618, %v903
  %v905 = vpop.f32.mrb[0].mxu0
  %906 = vmatprep.mubr.f32.mxu0 0.0
  %907 = vmatmul.mubr.f32.gmra.mrb[0].mxu0 %v697
  %v908 = vpop.f32.mrb[0].mxu0
  %v909 = vadd.f32 %v618, %v908
  %v910 = vpop.f32.mrb[0].mxu0
  %911 = vmatprep.mubr.f32.mxu0 0.0
  %912 = vmatmul.mubr.f32.gmra.mrb[0].mxu0 %v700
  %v913 = vpop.f32.mrb[0].mxu0
  %v914 = vadd.f32 %v618, %v913
  %v915 = vpop.f32.mrb[0].mxu0
  %916 = vmatprep.mubr.f32.mxu0 0.0
  %917 = vmatmul.mubr.f32.gmra.mrb[0].mxu0 %v703
  %v918 = vpop.f32.mrb[0].mxu0
  %v919 = vadd.f32 %v618, %v918
  %v920 = vpop.f32.mrb[0].mxu0
  %921 = vmatprep.mubr.f32.mxu0 0.0
  %922 = vmatmul.mubr.f32.gmra.mrb[0].mxu0 %v706
  %v923 = vpop.f32.mrb[0].mxu0
  %v924 = vadd.f32 %v618, %v923
  %v925 = vpop.f32.mrb[0].mxu0
  %926 = vmatprep.mubr.f32.mxu0 0.0
  %927 = vmatmul.mubr.f32.gmra.mrb[0].mxu0 %v709
  %v928 = vpop.f32.mrb[0].mxu0
  %v929 = vadd.f32 %v618, %v928
  %v930 = vpop.f32.mrb[0].mxu0
  %931 = vmatprep.mubr.f32.mxu0 0.0
  %932 = vmatmul.mubr.f32.gmra.mrb[0].mxu0 %v712
  %v933 = vpop.f32.mrb[0].mxu0
  %v934 = vadd.f32 %v618, %v933
  %v935 = vpop.f32.mrb[0].mxu0
  %936 = vmatprep.mubr.f32.mxu0 0.0
  %937 = vmatmul.mubr.f32.gmra.mrb[0].mxu0 %v715
  %v938 = vpop.f32.mrb[0].mxu0
  %v939 = vadd.f32 %v618, %v938
  %v940 = vpop.f32.mrb[0].mxu0
  %941 = vdwg.mxu0
  %v946 = vcombine.high %v65, %v65
  %v948 = vunpack.c.l.s4 1966171168
  %v949 = vunpack.c.0.s8 %v948
  %v950 = vlaneseq
  %v951 = vshrl.u32 %v950, 7
  %v952 = vsub.s32 %v949, %v951
  %v953 = vrot.slane %v65, %v952
  %v955 = vunpack.c.l.s4 1966171168
  %v956 = vunpack.c.0.s8 %v955
  %v957 = vlaneseq
  %v958 = vshrl.u32 %v957, 7
  %v959 = vsub.s32 %v956, %v958
  %v960 = vrot.slane %v946, %v959
  %v961 = vcombine.high %v953, %v953
  %v962 = vcombine.high %v960, %v960
  %v964 = vunpack.c.l.s4 1966171168
  %v965 = vunpack.c.0.s8 %v964
  %v966 = vlaneseq
  %v967 = vshrl.u32 %v966, 7
  %v968 = vsub.s32 %v965, %v967
  %v969 = vrot.slane %v953, %v968
  %v971 = vunpack.c.l.s4 1966171168
  %v972 = vunpack.c.0.s8 %v971
  %v973 = vlaneseq
  %v974 = vshrl.u32 %v973, 7
  %v975 = vsub.s32 %v972, %v974
  %v976 = vrot.slane %v960, %v975
  %v978 = vunpack.c.l.s4 1966171168
  %v979 = vunpack.c.0.s8 %v978
  %v980 = vlaneseq
  %v981 = vshrl.u32 %v980, 7
  %v982 = vsub.s32 %v979, %v981
  %v983 = vrot.slane %v961, %v982
  %v985 = vunpack.c.l.s4 1966171168
  %v986 = vunpack.c.0.s8 %v985
  %v987 = vlaneseq
  %v988 = vshrl.u32 %v987, 7
  %v989 = vsub.s32 %v986, %v988
  %v990 = vrot.slane %v962, %v989
  %v991 = vcombine.high %v969, %v969
  %v992 = vcombine.high %v976, %v976
  %v993 = vcombine.high %v983, %v983
  %v994 = vcombine.high %v990, %v990
  %v995 = vcombine.high %v66, %v66
  %v997 = vunpack.c.l.s4 1966171168
  %v998 = vunpack.c.0.s8 %v997
  %v999 = vlaneseq
  %v1000 = vshrl.u32 %v999, 7
  %v1001 = vsub.s32 %v998, %v1000
  %v1002 = vrot.slane %v66, %v1001
  %v1004 = vunpack.c.l.s4 1966171168
  %v1005 = vunpack.c.0.s8 %v1004
  %v1006 = vlaneseq
  %v1007 = vshrl.u32 %v1006, 7
  %v1008 = vsub.s32 %v1005, %v1007
  %v1009 = vrot.slane %v995, %v1008
  %v1010 = vcombine.high %v1002, %v1002
  %v1011 = vcombine.high %v1009, %v1009
  %v1013 = vunpack.c.l.s4 1966171168
  %v1014 = vunpack.c.0.s8 %v1013
  %v1015 = vlaneseq
  %v1016 = vshrl.u32 %v1015, 7
  %v1017 = vsub.s32 %v1014, %v1016
  %v1018 = vrot.slane %v1002, %v1017
  %v1020 = vunpack.c.l.s4 1966171168
  %v1021 = vunpack.c.0.s8 %v1020
  %v1022 = vlaneseq
  %v1023 = vshrl.u32 %v1022, 7
  %v1024 = vsub.s32 %v1021, %v1023
  %v1025 = vrot.slane %v1009, %v1024
  %v1027 = vunpack.c.l.s4 1966171168
  %v1028 = vunpack.c.0.s8 %v1027
  %v1029 = vlaneseq
  %v1030 = vshrl.u32 %v1029, 7
  %v1031 = vsub.s32 %v1028, %v1030
  %v1032 = vrot.slane %v1010, %v1031
  %v1034 = vunpack.c.l.s4 1966171168
  %v1035 = vunpack.c.0.s8 %v1034
  %v1036 = vlaneseq
  %v1037 = vshrl.u32 %v1036, 7
  %v1038 = vsub.s32 %v1035, %v1037
  %v1039 = vrot.slane %v1011, %v1038
  %v1040 = vcombine.high %v1018, %v1018
  %v1041 = vcombine.high %v1025, %v1025
  %v1042 = vcombine.high %v1032, %v1032
  %v1043 = vcombine.high %v1039, %v1039
  %v1044 = vcombine.high %v67, %v67
  %v1046 = vunpack.c.l.s4 1966171168
  %v1047 = vunpack.c.0.s8 %v1046
  %v1048 = vlaneseq
  %v1049 = vshrl.u32 %v1048, 7
  %v1050 = vsub.s32 %v1047, %v1049
  %v1051 = vrot.slane %v67, %v1050
  %v1053 = vunpack.c.l.s4 1966171168
  %v1054 = vunpack.c.0.s8 %v1053
  %v1055 = vlaneseq
  %v1056 = vshrl.u32 %v1055, 7
  %v1057 = vsub.s32 %v1054, %v1056
  %v1058 = vrot.slane %v1044, %v1057
  %v1059 = vcombine.high %v1051, %v1051
  %v1060 = vcombine.high %v1058, %v1058
  %v1062 = vunpack.c.l.s4 1966171168
  %v1063 = vunpack.c.0.s8 %v1062
  %v1064 = vlaneseq
  %v1065 = vshrl.u32 %v1064, 7
  %v1066 = vsub.s32 %v1063, %v1065
  %v1067 = vrot.slane %v1051, %v1066
  %v1069 = vunpack.c.l.s4 1966171168
  %v1070 = vunpack.c.0.s8 %v1069
  %v1071 = vlaneseq
  %v1072 = vshrl.u32 %v1071, 7
  %v1073 = vsub.s32 %v1070, %v1072
  %v1074 = vrot.slane %v1058, %v1073
  %v1076 = vunpack.c.l.s4 1966171168
  %v1077 = vunpack.c.0.s8 %v1076
  %v1078 = vlaneseq
  %v1079 = vshrl.u32 %v1078, 7
  %v1080 = vsub.s32 %v1077, %v1079
  %v1081 = vrot.slane %v1059, %v1080
  %v1083 = vunpack.c.l.s4 1966171168
  %v1084 = vunpack.c.0.s8 %v1083
  %v1085 = vlaneseq
  %v1086 = vshrl.u32 %v1085, 7
  %v1087 = vsub.s32 %v1084, %v1086
  %v1088 = vrot.slane %v1060, %v1087
  %v1089 = vcombine.high %v1067, %v1067
  %v1090 = vcombine.high %v1074, %v1074
  %v1091 = vcombine.high %v1081, %v1081
  %v1092 = vcombine.high %v1088, %v1088
  %v1093 = vcombine.high %v68, %v68
  %v1095 = vunpack.c.l.s4 1966171168
  %v1096 = vunpack.c.0.s8 %v1095
  %v1097 = vlaneseq
  %v1098 = vshrl.u32 %v1097, 7
  %v1099 = vsub.s32 %v1096, %v1098
  %v1100 = vrot.slane %v68, %v1099
  %v1102 = vunpack.c.l.s4 1966171168
  %v1103 = vunpack.c.0.s8 %v1102
  %v1104 = vlaneseq
  %v1105 = vshrl.u32 %v1104, 7
  %v1106 = vsub.s32 %v1103, %v1105
  %v1107 = vrot.slane %v1093, %v1106
  %v1108 = vcombine.high %v1100, %v1100
  %v1109 = vcombine.high %v1107, %v1107
  %v1111 = vunpack.c.l.s4 1966171168
  %v1112 = vunpack.c.0.s8 %v1111
  %v1113 = vlaneseq
  %v1114 = vshrl.u32 %v1113, 7
  %v1115 = vsub.s32 %v1112, %v1114
  %v1116 = vrot.slane %v1100, %v1115
  %v1118 = vunpack.c.l.s4 1966171168
  %v1119 = vunpack.c.0.s8 %v1118
  %v1120 = vlaneseq
  %v1121 = vshrl.u32 %v1120, 7
  %v1122 = vsub.s32 %v1119, %v1121
  %v1123 = vrot.slane %v1107, %v1122
  %v1125 = vunpack.c.l.s4 1966171168
  %v1126 = vunpack.c.0.s8 %v1125
  %v1127 = vlaneseq
  %v1128 = vshrl.u32 %v1127, 7
  %v1129 = vsub.s32 %v1126, %v1128
  %v1130 = vrot.slane %v1108, %v1129
  %v1132 = vunpack.c.l.s4 1966171168
  %v1133 = vunpack.c.0.s8 %v1132
  %v1134 = vlaneseq
  %v1135 = vshrl.u32 %v1134, 7
  %v1136 = vsub.s32 %v1133, %v1135
  %v1137 = vrot.slane %v1109, %v1136
  %v1138 = vcombine.high %v1116, %v1116
  %v1139 = vcombine.high %v1123, %v1123
  %v1140 = vcombine.high %v1130, %v1130
  %v1141 = vcombine.high %v1137, %v1137
  %v1142 = vlaneseq
  %v1143 = vshrl.u32 %v1142, 7
  %v1144 = vsub.s32 0, %v1143
  %v1145 = vrot.slane %v969, %v1144
  %v1146 = vlaneseq
  %v1147 = vshrl.u32 %v1146, 7
  %v1148 = vsub.s32 0, %v1147
  %v1149 = vrot.slane %v983, %v1148
  %v1150 = vlaneseq
  %v1151 = vshrl.u32 %v1150, 7
  %v1152 = vsub.s32 0, %v1151
  %v1153 = vrot.slane %v991, %v1152
  %v1154 = vlaneseq
  %v1155 = vshrl.u32 %v1154, 7
  %v1156 = vsub.s32 0, %v1155
  %v1157 = vrot.slane %v993, %v1156
  %v1158 = vlaneseq
  %v1159 = vshrl.u32 %v1158, 7
  %v1160 = vsub.s32 0, %v1159
  %v1161 = vrot.slane %v976, %v1160
  %v1162 = vlaneseq
  %v1163 = vshrl.u32 %v1162, 7
  %v1164 = vsub.s32 0, %v1163
  %v1165 = vrot.slane %v990, %v1164
  %v1166 = vlaneseq
  %v1167 = vshrl.u32 %v1166, 7
  %v1168 = vsub.s32 0, %v1167
  %v1169 = vrot.slane %v992, %v1168
  %v1170 = vlaneseq
  %v1171 = vshrl.u32 %v1170, 7
  %v1172 = vsub.s32 0, %v1171
  %v1173 = vrot.slane %v994, %v1172
  %v1174 = vlaneseq
  %v1175 = vshrl.u32 %v1174, 7
  %v1176 = vsub.s32 0, %v1175
  %v1177 = vrot.slane %v1018, %v1176
  %v1178 = vlaneseq
  %v1179 = vshrl.u32 %v1178, 7
  %v1180 = vsub.s32 0, %v1179
  %v1181 = vrot.slane %v1032, %v1180
  %v1182 = vlaneseq
  %v1183 = vshrl.u32 %v1182, 7
  %v1184 = vsub.s32 0, %v1183
  %v1185 = vrot.slane %v1040, %v1184
  %v1186 = vlaneseq
  %v1187 = vshrl.u32 %v1186, 7
  %v1188 = vsub.s32 0, %v1187
  %v1189 = vrot.slane %v1042, %v1188
  %v1190 = vlaneseq
  %v1191 = vshrl.u32 %v1190, 7
  %v1192 = vsub.s32 0, %v1191
  %v1193 = vrot.slane %v1025, %v1192
  %v1194 = vlaneseq
  %v1195 = vshrl.u32 %v1194, 7
  %v1196 = vsub.s32 0, %v1195
  %v1197 = vrot.slane %v1039, %v1196
  %v1198 = vlaneseq
  %v1199 = vshrl.u32 %v1198, 7
  %v1200 = vsub.s32 0, %v1199
  %v1201 = vrot.slane %v1041, %v1200
  %v1202 = vlaneseq
  %v1203 = vshrl.u32 %v1202, 7
  %v1204 = vsub.s32 0, %v1203
  %v1205 = vrot.slane %v1043, %v1204
  %v1206 = vlaneseq
  %v1207 = vshrl.u32 %v1206, 7
  %v1208 = vsub.s32 0, %v1207
  %v1209 = vrot.slane %v1067, %v1208
  %v1210 = vlaneseq
  %v1211 = vshrl.u32 %v1210, 7
  %v1212 = vsub.s32 0, %v1211
  %v1213 = vrot.slane %v1081, %v1212
  %v1214 = vlaneseq
  %v1215 = vshrl.u32 %v1214, 7
  %v1216 = vsub.s32 0, %v1215
  %v1217 = vrot.slane %v1089, %v1216
  %v1218 = vlaneseq
  %v1219 = vshrl.u32 %v1218, 7
  %v1220 = vsub.s32 0, %v1219
  %v1221 = vrot.slane %v1091, %v1220
  %v1222 = vlaneseq
  %v1223 = vshrl.u32 %v1222, 7
  %v1224 = vsub.s32 0, %v1223
  %v1225 = vrot.slane %v1074, %v1224
  %v1226 = vlaneseq
  %v1227 = vshrl.u32 %v1226, 7
  %v1228 = vsub.s32 0, %v1227
  %v1229 = vrot.slane %v1088, %v1228
  %v1230 = vlaneseq
  %v1231 = vshrl.u32 %v1230, 7
  %v1232 = vsub.s32 0, %v1231
  %v1233 = vrot.slane %v1090, %v1232
  %v1234 = vlaneseq
  %v1235 = vshrl.u32 %v1234, 7
  %v1236 = vsub.s32 0, %v1235
  %v1237 = vrot.slane %v1092, %v1236
  %v1238 = vlaneseq
  %v1239 = vshrl.u32 %v1238, 7
  %v1240 = vsub.s32 0, %v1239
  %v1241 = vrot.slane %v1116, %v1240
  %v1242 = vlaneseq
  %v1243 = vshrl.u32 %v1242, 7
  %v1244 = vsub.s32 0, %v1243
  %v1245 = vrot.slane %v1130, %v1244
  %v1246 = vlaneseq
  %v1247 = vshrl.u32 %v1246, 7
  %v1248 = vsub.s32 0, %v1247
  %v1249 = vrot.slane %v1138, %v1248
  %v1250 = vlaneseq
  %v1251 = vshrl.u32 %v1250, 7
  %v1252 = vsub.s32 0, %v1251
  %v1253 = vrot.slane %v1140, %v1252
  %v1254 = vlaneseq
  %v1255 = vshrl.u32 %v1254, 7
  %v1256 = vsub.s32 0, %v1255
  %v1257 = vrot.slane %v1123, %v1256
  %v1258 = vlaneseq
  %v1259 = vshrl.u32 %v1258, 7
  %v1260 = vsub.s32 0, %v1259
  %v1261 = vrot.slane %v1137, %v1260
  %v1262 = vlaneseq
  %v1263 = vshrl.u32 %v1262, 7
  %v1264 = vsub.s32 0, %v1263
  %v1265 = vrot.slane %v1139, %v1264
  %v1266 = vlaneseq
  %v1267 = vshrl.u32 %v1266, 7
  %v1268 = vsub.s32 0, %v1267
  %v1269 = vrot.slane %v1141, %v1268
  %v1302 = vsub.f32 %v69, %v1145
  %v1303 = vsub.f32 %v70, %v1149
  %v1304 = vsub.f32 %v71, %v1153
  %v1305 = vsub.f32 %v72, %v1157
  %v1306 = vsub.f32 %v73, %v1161
  %v1307 = vsub.f32 %v74, %v1165
  %v1308 = vsub.f32 %v75, %v1169
  %v1309 = vsub.f32 %v76, %v1173
  %v1310 = vsub.f32 %v77, %v1177
  %v1311 = vsub.f32 %v78, %v1181
  %v1312 = vsub.f32 %v79, %v1185
  %v1313 = vsub.f32 %v80, %v1189
  %v1314 = vsub.f32 %v81, %v1193
  %v1315 = vsub.f32 %v82, %v1197
  %v1316 = vsub.f32 %v83, %v1201
  %v1317 = vsub.f32 %v84, %v1205
  %v1318 = vsub.f32 %v85, %v1209
  %v1319 = vsub.f32 %v86, %v1213
  %v1320 = vsub.f32 %v87, %v1217
  %v1321 = vsub.f32 %v88, %v1221
  %v1322 = vsub.f32 %v89, %v1225
  %v1323 = vsub.f32 %v90, %v1229
  %v1324 = vsub.f32 %v91, %v1233
  %v1325 = vsub.f32 %v92, %v1237
  %v1326 = vsub.f32 %v93, %v1241
  %v1327 = vsub.f32 %v94, %v1245
  %v1328 = vsub.f32 %v95, %v1249
  %v1329 = vsub.f32 %v96, %v1253
  %v1330 = vsub.f32 %v97, %v1257
  %v1331 = vsub.f32 %v98, %v1261
  %v1332 = vsub.f32 %v99, %v1265
  %v1333 = vsub.f32 %v100, %v1269
  %v1334 = vadd.f32 %v1302, %v784
  %v1335 = vadd.f32 %v1303, %v789
  %v1336 = vadd.f32 %v1304, %v794
  %v1337 = vadd.f32 %v1305, %v799
  %v1338 = vadd.f32 %v1306, %v804
  %v1339 = vadd.f32 %v1307, %v809
  %v1340 = vadd.f32 %v1308, %v814
  %v1341 = vadd.f32 %v1309, %v819
  %v1342 = vadd.f32 %v1310, %v824
  %v1343 = vadd.f32 %v1311, %v829
  %v1344 = vadd.f32 %v1312, %v834
  %v1345 = vadd.f32 %v1313, %v839
  %v1346 = vadd.f32 %v1314, %v844
  %v1347 = vadd.f32 %v1315, %v849
  %v1348 = vadd.f32 %v1316, %v854
  %v1349 = vadd.f32 %v1317, %v859
  %v1350 = vadd.f32 %v1318, %v864
  %v1351 = vadd.f32 %v1319, %v869
  %v1352 = vadd.f32 %v1320, %v874
  %v1353 = vadd.f32 %v1321, %v879
  %v1354 = vadd.f32 %v1322, %v884
  %v1355 = vadd.f32 %v1323, %v889
  %v1356 = vadd.f32 %v1324, %v894
  %v1357 = vadd.f32 %v1325, %v899
  %v1358 = vadd.f32 %v1326, %v904
  %v1359 = vadd.f32 %v1327, %v909
  %v1360 = vadd.f32 %v1328, %v914
  %v1361 = vadd.f32 %v1329, %v919
  %v1362 = vadd.f32 %v1330, %v924
  %v1363 = vadd.f32 %v1331, %v929
  %v1364 = vadd.f32 %v1332, %v934
  %v1365 = vadd.f32 %v1333, %v939
  %v1366 = vld [vmem:[%s11] sm:$0xff]
  %v1367 = vld [vmem:[%s11 + $0x8] sm:$0xff]
  %v1368 = vld [vmem:[%s11 + $0x10] sm:$0xff]
  %v1369 = vld [vmem:[%s11 + $0x18] sm:$0xff]
  %v1370 = vld [vmem:[%s12] sm:$0x1]
  %v1372 = vlaneseq
  %v1373 = vshrl.u32 %v1372, 7
  %v1374 = vsub.s32 0, %v1373
  %v1375 = vrot.slane %v1370, %v1374
  %v1378 = vsel %vm620, %v1334, 0
  %v1381 = vsel %vm620, %v1335, 0
  %v1384 = vsel %vm620, %v1336, 0
  %v1387 = vsel %vm620, %v1337, 0
  %v1390 = vsel %vm620, %v1338, 0
  %v1393 = vsel %vm620, %v1339, 0
  %v1396 = vsel %vm620, %v1340, 0
  %v1399 = vsel %vm620, %v1341, 0
  %v1402 = vsel %vm620, %v1342, 0
  %v1405 = vsel %vm620, %v1343, 0
  %v1408 = vsel %vm620, %v1344, 0
  %v1411 = vsel %vm620, %v1345, 0
  %v1414 = vsel %vm620, %v1346, 0
  %v1417 = vsel %vm620, %v1347, 0
  %v1420 = vsel %vm620, %v1348, 0
  %v1423 = vsel %vm620, %v1349, 0
  %v1426 = vsel %vm620, %v1350, 0
  %v1429 = vsel %vm620, %v1351, 0
  %v1432 = vsel %vm620, %v1352, 0
  %v1435 = vsel %vm620, %v1353, 0
  %v1438 = vsel %vm620, %v1354, 0
  %v1441 = vsel %vm620, %v1355, 0
  %v1444 = vsel %vm620, %v1356, 0
  %v1447 = vsel %vm620, %v1357, 0
  %v1450 = vsel %vm620, %v1358, 0
  %v1453 = vsel %vm620, %v1359, 0
  %v1456 = vsel %vm620, %v1360, 0
  %v1459 = vsel %vm620, %v1361, 0
  %v1462 = vsel %vm620, %v1362, 0
  %v1465 = vsel %vm620, %v1363, 0
  %v1468 = vsel %vm620, %v1364, 0
  %v1471 = vsel %vm620, %v1365, 0
  %1473 = vmatprep.subr.mxu0 0.0
  %1474 = vmatpush1.msra.mxu0 %v1366
  %1475 = vmatprep.subr.mxu0 0.0
  %1476 = vmatpush1.msra.mxu0 %v1367
  %1477 = vmatprep.subr.mxu0 0.0
  %1478 = vmatpush1.msra.mxu0 %v1368
  %1479 = vmatprep.subr.mxu0 0.0
  %1480 = vmatpush1.msra.mxu0 %v1369
  %1481 = vmatprep.subr.mxu0 0.0
  %1482 = vmatpush1.msra.mxu0 0.0
  %1483 = vmatprep.subr.mxu0 0.0
  %1484 = vmatpush1.msra.mxu0 0.0
  %1485 = vmatprep.subr.mxu0 0.0
  %1486 = vmatpush1.msra.mxu0 0.0
  %1487 = vmatprep.subr.mxu0 0.0
  %1488 = vmatpush1.msra.mxu0 0.0
  %1489 = vmatprep.subr.mxu0 0.0
  %1490 = vmatpush1.msra.mxu0 0.0
  %1491 = vmatprep.subr.mxu0 0.0
  %1492 = vmatpush1.msra.mxu0 0.0
  %1493 = vmatprep.subr.mxu0 0.0
  %1494 = vmatpush1.msra.mxu0 0.0
  %1495 = vmatprep.subr.mxu0 0.0
  %1496 = vmatpush1.msra.mxu0 0.0
  %1497 = vmatprep.subr.mxu0 0.0
  %1498 = vmatpush1.msra.mxu0 0.0
  %1499 = vmatprep.subr.mxu0 0.0
  %1500 = vmatpush1.msra.mxu0 0.0
  %1501 = vmatprep.subr.mxu0 0.0
  %1502 = vmatpush1.msra.mxu0 0.0
  %1503 = vmatprep.subr.mxu0 0.0
  %1504 = vmatpush1.msra.mxu0 0.0
  %1505 = vmatprep.subr.mxu0 0.0
  %1506 = vmatpush1.msra.mxu0 0.0
  %1507 = vmatprep.subr.mxu0 0.0
  %1508 = vmatpush1.msra.mxu0 0.0
  %1509 = vmatprep.subr.mxu0 0.0
  %1510 = vmatpush1.msra.mxu0 0.0
  %1511 = vmatprep.subr.mxu0 0.0
  %1512 = vmatpush1.msra.mxu0 0.0
  %1513 = vmatprep.subr.mxu0 0.0
  %1514 = vmatpush1.msra.mxu0 0.0
  %1515 = vmatprep.subr.mxu0 0.0
  %1516 = vmatpush1.msra.mxu0 0.0
  %1517 = vmatprep.subr.mxu0 0.0
  %1518 = vmatpush1.msra.mxu0 0.0
  %1519 = vmatprep.subr.mxu0 0.0
  %1520 = vmatpush1.msra.mxu0 0.0
  %1521 = vmatprep.subr.mxu0 0.0
  %1522 = vmatpush1.msra.mxu0 0.0
  %1523 = vmatprep.subr.mxu0 0.0
  %1524 = vmatpush1.msra.mxu0 0.0
  %1525 = vmatprep.subr.mxu0 0.0
  %1526 = vmatpush1.msra.mxu0 0.0
  %1527 = vmatprep.subr.mxu0 0.0
  %1528 = vmatpush1.msra.mxu0 0.0
  %1529 = vmatprep.subr.mxu0 0.0
  %1530 = vmatpush1.msra.mxu0 0.0
  %1531 = vmatprep.subr.mxu0 0.0
  %1532 = vmatpush1.msra.mxu0 0.0
  %1533 = vmatprep.subr.mxu0 0.0
  %1534 = vmatpush1.msra.mxu0 0.0
  %1535 = vmatprep.subr.mxu0 0.0
  %1536 = vmatpush1.msra.mxu0 0.0
  %1537 = vmatprep.mubr.f32.mxu0 0.0
  %1538 = vmatmul.mubr.f32.gmra.mrb[0].mxu0 %v1378
  %v1539 = vpop.f32.mrb[0].mxu0
  %v1540 = vadd.f32 %v1375, %v1539
  %v1541 = vpop.f32.mrb[0].mxu0
  %1542 = vmatprep.mubr.f32.mxu0 0.0
  %1543 = vmatmul.mubr.f32.gmra.mrb[0].mxu0 %v1381
  %v1544 = vpop.f32.mrb[0].mxu0
  %v1545 = vadd.f32 %v1375, %v1544
  %v1546 = vpop.f32.mrb[0].mxu0
  %1547 = vmatprep.mubr.f32.mxu0 0.0
  %1548 = vmatmul.mubr.f32.gmra.mrb[0].mxu0 %v1384
  %v1549 = vpop.f32.mrb[0].mxu0
  %v1550 = vadd.f32 %v1375, %v1549
  %v1551 = vpop.f32.mrb[0].mxu0
  %1552 = vmatprep.mubr.f32.mxu0 0.0
  %1553 = vmatmul.mubr.f32.gmra.mrb[0].mxu0 %v1387
  %v1554 = vpop.f32.mrb[0].mxu0
  %v1555 = vadd.f32 %v1375, %v1554
  %v1556 = vpop.f32.mrb[0].mxu0
  %1557 = vmatprep.mubr.f32.mxu0 0.0
  %1558 = vmatmul.mubr.f32.gmra.mrb[0].mxu0 %v1390
  %v1559 = vpop.f32.mrb[0].mxu0
  %v1560 = vadd.f32 %v1375, %v1559
  %v1561 = vpop.f32.mrb[0].mxu0
  %1562 = vmatprep.mubr.f32.mxu0 0.0
  %1563 = vmatmul.mubr.f32.gmra.mrb[0].mxu0 %v1393
  %v1564 = vpop.f32.mrb[0].mxu0
  %v1565 = vadd.f32 %v1375, %v1564
  %v1566 = vpop.f32.mrb[0].mxu0
  %1567 = vmatprep.mubr.f32.mxu0 0.0
  %1568 = vmatmul.mubr.f32.gmra.mrb[0].mxu0 %v1396
  %v1569 = vpop.f32.mrb[0].mxu0
  %v1570 = vadd.f32 %v1375, %v1569
  %v1571 = vpop.f32.mrb[0].mxu0
  %1572 = vmatprep.mubr.f32.mxu0 0.0
  %1573 = vmatmul.mubr.f32.gmra.mrb[0].mxu0 %v1399
  %v1574 = vpop.f32.mrb[0].mxu0
  %v1575 = vadd.f32 %v1375, %v1574
  %v1576 = vpop.f32.mrb[0].mxu0
  %1577 = vmatprep.mubr.f32.mxu0 0.0
  %1578 = vmatmul.mubr.f32.gmra.mrb[0].mxu0 %v1402
  %v1579 = vpop.f32.mrb[0].mxu0
  %v1580 = vadd.f32 %v1375, %v1579
  %v1581 = vpop.f32.mrb[0].mxu0
  %1582 = vmatprep.mubr.f32.mxu0 0.0
  %1583 = vmatmul.mubr.f32.gmra.mrb[0].mxu0 %v1405
  %v1584 = vpop.f32.mrb[0].mxu0
  %v1585 = vadd.f32 %v1375, %v1584
  %v1586 = vpop.f32.mrb[0].mxu0
  %1587 = vmatprep.mubr.f32.mxu0 0.0
  %1588 = vmatmul.mubr.f32.gmra.mrb[0].mxu0 %v1408
  %v1589 = vpop.f32.mrb[0].mxu0
  %v1590 = vadd.f32 %v1375, %v1589
  %v1591 = vpop.f32.mrb[0].mxu0
  %1592 = vmatprep.mubr.f32.mxu0 0.0
  %1593 = vmatmul.mubr.f32.gmra.mrb[0].mxu0 %v1411
  %v1594 = vpop.f32.mrb[0].mxu0
  %v1595 = vadd.f32 %v1375, %v1594
  %v1596 = vpop.f32.mrb[0].mxu0
  %1597 = vmatprep.mubr.f32.mxu0 0.0
  %1598 = vmatmul.mubr.f32.gmra.mrb[0].mxu0 %v1414
  %v1599 = vpop.f32.mrb[0].mxu0
  %v1600 = vadd.f32 %v1375, %v1599
  %v1601 = vpop.f32.mrb[0].mxu0
  %1602 = vmatprep.mubr.f32.mxu0 0.0
  %1603 = vmatmul.mubr.f32.gmra.mrb[0].mxu0 %v1417
  %v1604 = vpop.f32.mrb[0].mxu0
  %v1605 = vadd.f32 %v1375, %v1604
  %v1606 = vpop.f32.mrb[0].mxu0
  %1607 = vmatprep.mubr.f32.mxu0 0.0
  %1608 = vmatmul.mubr.f32.gmra.mrb[0].mxu0 %v1420
  %v1609 = vpop.f32.mrb[0].mxu0
  %v1610 = vadd.f32 %v1375, %v1609
  %v1611 = vpop.f32.mrb[0].mxu0
  %1612 = vmatprep.mubr.f32.mxu0 0.0
  %1613 = vmatmul.mubr.f32.gmra.mrb[0].mxu0 %v1423
  %v1614 = vpop.f32.mrb[0].mxu0
  %v1615 = vadd.f32 %v1375, %v1614
  %v1616 = vpop.f32.mrb[0].mxu0
  %1617 = vmatprep.mubr.f32.mxu0 0.0
  %1618 = vmatmul.mubr.f32.gmra.mrb[0].mxu0 %v1426
  %v1619 = vpop.f32.mrb[0].mxu0
  %v1620 = vadd.f32 %v1375, %v1619
  %v1621 = vpop.f32.mrb[0].mxu0
  %1622 = vmatprep.mubr.f32.mxu0 0.0
  %1623 = vmatmul.mubr.f32.gmra.mrb[0].mxu0 %v1429
  %v1624 = vpop.f32.mrb[0].mxu0
  %v1625 = vadd.f32 %v1375, %v1624
  %v1626 = vpop.f32.mrb[0].mxu0
  %1627 = vmatprep.mubr.f32.mxu0 0.0
  %1628 = vmatmul.mubr.f32.gmra.mrb[0].mxu0 %v1432
  %v1629 = vpop.f32.mrb[0].mxu0
  %v1630 = vadd.f32 %v1375, %v1629
  %v1631 = vpop.f32.mrb[0].mxu0
  %1632 = vmatprep.mubr.f32.mxu0 0.0
  %1633 = vmatmul.mubr.f32.gmra.mrb[0].mxu0 %v1435
  %v1634 = vpop.f32.mrb[0].mxu0
  %v1635 = vadd.f32 %v1375, %v1634
  %v1636 = vpop.f32.mrb[0].mxu0
  %1637 = vmatprep.mubr.f32.mxu0 0.0
  %1638 = vmatmul.mubr.f32.gmra.mrb[0].mxu0 %v1438
  %v1639 = vpop.f32.mrb[0].mxu0
  %v1640 = vadd.f32 %v1375, %v1639
  %v1641 = vpop.f32.mrb[0].mxu0
  %1642 = vmatprep.mubr.f32.mxu0 0.0
  %1643 = vmatmul.mubr.f32.gmra.mrb[0].mxu0 %v1441
  %v1644 = vpop.f32.mrb[0].mxu0
  %v1645 = vadd.f32 %v1375, %v1644
  %v1646 = vpop.f32.mrb[0].mxu0
  %1647 = vmatprep.mubr.f32.mxu0 0.0
  %1648 = vmatmul.mubr.f32.gmra.mrb[0].mxu0 %v1444
  %v1649 = vpop.f32.mrb[0].mxu0
  %v1650 = vadd.f32 %v1375, %v1649
  %v1651 = vpop.f32.mrb[0].mxu0
  %1652 = vmatprep.mubr.f32.mxu0 0.0
  %1653 = vmatmul.mubr.f32.gmra.mrb[0].mxu0 %v1447
  %v1654 = vpop.f32.mrb[0].mxu0
  %v1655 = vadd.f32 %v1375, %v1654
  %v1656 = vpop.f32.mrb[0].mxu0
  %1657 = vmatprep.mubr.f32.mxu0 0.0
  %1658 = vmatmul.mubr.f32.gmra.mrb[0].mxu0 %v1450
  %v1659 = vpop.f32.mrb[0].mxu0
  %v1660 = vadd.f32 %v1375, %v1659
  %v1661 = vpop.f32.mrb[0].mxu0
  %1662 = vmatprep.mubr.f32.mxu0 0.0
  %1663 = vmatmul.mubr.f32.gmra.mrb[0].mxu0 %v1453
  %v1664 = vpop.f32.mrb[0].mxu0
  %v1665 = vadd.f32 %v1375, %v1664
  %v1666 = vpop.f32.mrb[0].mxu0
  %1667 = vmatprep.mubr.f32.mxu0 0.0
  %1668 = vmatmul.mubr.f32.gmra.mrb[0].mxu0 %v1456
  %v1669 = vpop.f32.mrb[0].mxu0
  %v1670 = vadd.f32 %v1375, %v1669
  %v1671 = vpop.f32.mrb[0].mxu0
  %1672 = vmatprep.mubr.f32.mxu0 0.0
  %1673 = vmatmul.mubr.f32.gmra.mrb[0].mxu0 %v1459
  %v1674 = vpop.f32.mrb[0].mxu0
  %v1675 = vadd.f32 %v1375, %v1674
  %v1676 = vpop.f32.mrb[0].mxu0
  %1677 = vmatprep.mubr.f32.mxu0 0.0
  %1678 = vmatmul.mubr.f32.gmra.mrb[0].mxu0 %v1462
  %v1679 = vpop.f32.mrb[0].mxu0
  %v1680 = vadd.f32 %v1375, %v1679
  %v1681 = vpop.f32.mrb[0].mxu0
  %1682 = vmatprep.mubr.f32.mxu0 0.0
  %1683 = vmatmul.mubr.f32.gmra.mrb[0].mxu0 %v1465
  %v1684 = vpop.f32.mrb[0].mxu0
  %v1685 = vadd.f32 %v1375, %v1684
  %v1686 = vpop.f32.mrb[0].mxu0
  %1687 = vmatprep.mubr.f32.mxu0 0.0
  %1688 = vmatmul.mubr.f32.gmra.mrb[0].mxu0 %v1468
  %v1689 = vpop.f32.mrb[0].mxu0
  %v1690 = vadd.f32 %v1375, %v1689
  %v1691 = vpop.f32.mrb[0].mxu0
  %1692 = vmatprep.mubr.f32.mxu0 0.0
  %1693 = vmatmul.mubr.f32.gmra.mrb[0].mxu0 %v1471
  %v1694 = vpop.f32.mrb[0].mxu0
  %v1695 = vadd.f32 %v1375, %v1694
  %v1696 = vpop.f32.mrb[0].mxu0
  %1697 = vdwg.mxu0
  %v1698 = vld [vmem:[%s13] sm:$0x1]
  %v1700 = vlaneseq
  %v1701 = vshrl.u32 %v1700, 7
  %v1702 = vsub.s32 0, %v1701
  %v1703 = vrot.slane %v1698, %v1702
  %v1705 = vmul.f32 %v1540, %v1703
  %v1706 = vmul.f32 %v1545, %v1703
  %v1707 = vmul.f32 %v1550, %v1703
  %v1708 = vmul.f32 %v1555, %v1703
  %v1709 = vmul.f32 %v1560, %v1703
  %v1710 = vmul.f32 %v1565, %v1703
  %v1711 = vmul.f32 %v1570, %v1703
  %v1712 = vmul.f32 %v1575, %v1703
  %v1713 = vmul.f32 %v1580, %v1703
  %v1714 = vmul.f32 %v1585, %v1703
  %v1715 = vmul.f32 %v1590, %v1703
  %v1716 = vmul.f32 %v1595, %v1703
  %v1717 = vmul.f32 %v1600, %v1703
  %v1718 = vmul.f32 %v1605, %v1703
  %v1719 = vmul.f32 %v1610, %v1703
  %v1720 = vmul.f32 %v1615, %v1703
  %v1721 = vmul.f32 %v1620, %v1703
  %v1722 = vmul.f32 %v1625, %v1703
  %v1723 = vmul.f32 %v1630, %v1703
  %v1724 = vmul.f32 %v1635, %v1703
  %v1725 = vmul.f32 %v1640, %v1703
  %v1726 = vmul.f32 %v1645, %v1703
  %v1727 = vmul.f32 %v1650, %v1703
  %v1728 = vmul.f32 %v1655, %v1703
  %v1729 = vmul.f32 %v1660, %v1703
  %v1730 = vmul.f32 %v1665, %v1703
  %v1731 = vmul.f32 %v1670, %v1703
  %v1732 = vmul.f32 %v1675, %v1703
  %v1733 = vmul.f32 %v1680, %v1703
  %v1734 = vmul.f32 %v1685, %v1703
  %v1735 = vmul.f32 %v1690, %v1703
  %v1736 = vmul.f32 %v1695, %v1703
  %v1737 = vld [vmem:[%s14] sm:$0x1]
  %v1739 = vlaneseq
  %v1740 = vshrl.u32 %v1739, 7
  %v1741 = vsub.s32 0, %v1740
  %v1742 = vrot.slane %v1737, %v1741
  %v1744 = vadd.f32 %v1705, %v1742
  %v1745 = vadd.f32 %v1706, %v1742
  %v1746 = vadd.f32 %v1707, %v1742
  %v1747 = vadd.f32 %v1708, %v1742
  %v1748 = vadd.f32 %v1709, %v1742
  %v1749 = vadd.f32 %v1710, %v1742
  %v1750 = vadd.f32 %v1711, %v1742
  %v1751 = vadd.f32 %v1712, %v1742
  %v1752 = vadd.f32 %v1713, %v1742
  %v1753 = vadd.f32 %v1714, %v1742
  %v1754 = vadd.f32 %v1715, %v1742
  %v1755 = vadd.f32 %v1716, %v1742
  %v1756 = vadd.f32 %v1717, %v1742
  %v1757 = vadd.f32 %v1718, %v1742
  %v1758 = vadd.f32 %v1719, %v1742
  %v1759 = vadd.f32 %v1720, %v1742
  %v1760 = vadd.f32 %v1721, %v1742
  %v1761 = vadd.f32 %v1722, %v1742
  %v1762 = vadd.f32 %v1723, %v1742
  %v1763 = vadd.f32 %v1724, %v1742
  %v1764 = vadd.f32 %v1725, %v1742
  %v1765 = vadd.f32 %v1726, %v1742
  %v1766 = vadd.f32 %v1727, %v1742
  %v1767 = vadd.f32 %v1728, %v1742
  %v1768 = vadd.f32 %v1729, %v1742
  %v1769 = vadd.f32 %v1730, %v1742
  %v1770 = vadd.f32 %v1731, %v1742
  %v1771 = vadd.f32 %v1732, %v1742
  %v1772 = vadd.f32 %v1733, %v1742
  %v1773 = vadd.f32 %v1734, %v1742
  %v1774 = vadd.f32 %v1735, %v1742
  %v1775 = vadd.f32 %v1736, %v1742
  %v1776 = vmax.f32 %v1744, 0.0
  %v1777 = vmax.f32 %v1745, 0.0
  %v1778 = vmax.f32 %v1746, 0.0
  %v1779 = vmax.f32 %v1747, 0.0
  %v1780 = vmax.f32 %v1748, 0.0
  %v1781 = vmax.f32 %v1749, 0.0
  %v1782 = vmax.f32 %v1750, 0.0
  %v1783 = vmax.f32 %v1751, 0.0
  %v1784 = vmax.f32 %v1752, 0.0
  %v1785 = vmax.f32 %v1753, 0.0
  %v1786 = vmax.f32 %v1754, 0.0
  %v1787 = vmax.f32 %v1755, 0.0
  %v1788 = vmax.f32 %v1756, 0.0
  %v1789 = vmax.f32 %v1757, 0.0
  %v1790 = vmax.f32 %v1758, 0.0
  %v1791 = vmax.f32 %v1759, 0.0
  %v1792 = vmax.f32 %v1760, 0.0
  %v1793 = vmax.f32 %v1761, 0.0
  %v1794 = vmax.f32 %v1762, 0.0
  %v1795 = vmax.f32 %v1763, 0.0
  %v1796 = vmax.f32 %v1764, 0.0
  %v1797 = vmax.f32 %v1765, 0.0
  %v1798 = vmax.f32 %v1766, 0.0
  %v1799 = vmax.f32 %v1767, 0.0
  %v1800 = vmax.f32 %v1768, 0.0
  %v1801 = vmax.f32 %v1769, 0.0
  %v1802 = vmax.f32 %v1770, 0.0
  %v1803 = vmax.f32 %v1771, 0.0
  %v1804 = vmax.f32 %v1772, 0.0
  %v1805 = vmax.f32 %v1773, 0.0
  %v1806 = vmax.f32 %v1774, 0.0
  %v1807 = vmax.f32 %v1775, 0.0
  %v1808 = vld [vmem:[%s15] sm:$0xf]
  %v1809 = vld [vmem:[%s16] sm:$0x1]
  %v1811 = vlaneseq
  %v1812 = vshrl.u32 %v1811, 7
  %v1813 = vsub.s32 0, %v1812
  %v1814 = vrot.slane %v1809, %v1813
  %vm1816 = vcmask 31744
  %v1818 = vsel %vm1816, %v1776, 0
  %v1821 = vsel %vm1816, %v1777, 0
  %v1824 = vsel %vm1816, %v1778, 0
  %v1827 = vsel %vm1816, %v1779, 0
  %v1830 = vsel %vm1816, %v1780, 0
  %v1833 = vsel %vm1816, %v1781, 0
  %v1836 = vsel %vm1816, %v1782, 0
  %v1839 = vsel %vm1816, %v1783, 0
  %v1842 = vsel %vm1816, %v1784, 0
  %v1845 = vsel %vm1816, %v1785, 0
  %v1848 = vsel %vm1816, %v1786, 0
  %v1851 = vsel %vm1816, %v1787, 0
  %v1854 = vsel %vm1816, %v1788, 0
  %v1857 = vsel %vm1816, %v1789, 0
  %v1860 = vsel %vm1816, %v1790, 0
  %v1863 = vsel %vm1816, %v1791, 0
  %v1866 = vsel %vm1816, %v1792, 0
  %v1869 = vsel %vm1816, %v1793, 0
  %v1872 = vsel %vm1816, %v1794, 0
  %v1875 = vsel %vm1816, %v1795, 0
  %v1878 = vsel %vm1816, %v1796, 0
  %v1881 = vsel %vm1816, %v1797, 0
  %v1884 = vsel %vm1816, %v1798, 0
  %v1887 = vsel %vm1816, %v1799, 0
  %v1890 = vsel %vm1816, %v1800, 0
  %v1893 = vsel %vm1816, %v1801, 0
  %v1896 = vsel %vm1816, %v1802, 0
  %v1899 = vsel %vm1816, %v1803, 0
  %v1902 = vsel %vm1816, %v1804, 0
  %v1905 = vsel %vm1816, %v1805, 0
  %v1908 = vsel %vm1816, %v1806, 0
  %v1911 = vsel %vm1816, %v1807, 0
  %vm1913 = vcmask 1043456
  %v1915 = vsel %vm1913, %v1808, 0
  %1917 = vmatprep.subr.mxu0 0.0
  %1918 = vmatpush1.msra.mxu0 %v1915
  %1919 = vmatprep.subr.mxu0 0.0
  %1920 = vmatpush1.msra.mxu0 0.0
  %1921 = vmatprep.subr.mxu0 0.0
  %1922 = vmatpush1.msra.mxu0 0.0
  %1923 = vmatprep.subr.mxu0 0.0
  %1924 = vmatpush1.msra.mxu0 0.0
  %1925 = vmatprep.subr.mxu0 0.0
  %1926 = vmatpush1.msra.mxu0 0.0
  %1927 = vmatprep.subr.mxu0 0.0
  %1928 = vmatpush1.msra.mxu0 0.0
  %1929 = vmatprep.subr.mxu0 0.0
  %1930 = vmatpush1.msra.mxu0 0.0
  %1931 = vmatprep.subr.mxu0 0.0
  %1932 = vmatpush1.msra.mxu0 0.0
  %1933 = vmatprep.subr.mxu0 0.0
  %1934 = vmatpush1.msra.mxu0 0.0
  %1935 = vmatprep.subr.mxu0 0.0
  %1936 = vmatpush1.msra.mxu0 0.0
  %1937 = vmatprep.subr.mxu0 0.0
  %1938 = vmatpush1.msra.mxu0 0.0
  %1939 = vmatprep.subr.mxu0 0.0
  %1940 = vmatpush1.msra.mxu0 0.0
  %1941 = vmatprep.subr.mxu0 0.0
  %1942 = vmatpush1.msra.mxu0 0.0
  %1943 = vmatprep.subr.mxu0 0.0
  %1944 = vmatpush1.msra.mxu0 0.0
  %1945 = vmatprep.subr.mxu0 0.0
  %1946 = vmatpush1.msra.mxu0 0.0
  %1947 = vmatprep.subr.mxu0 0.0
  %1948 = vmatpush1.msra.mxu0 0.0
  %1949 = vmatprep.subr.mxu0 0.0
  %1950 = vmatpush1.msra.mxu0 0.0
  %1951 = vmatprep.subr.mxu0 0.0
  %1952 = vmatpush1.msra.mxu0 0.0
  %1953 = vmatprep.subr.mxu0 0.0
  %1954 = vmatpush1.msra.mxu0 0.0
  %1955 = vmatprep.subr.mxu0 0.0
  %1956 = vmatpush1.msra.mxu0 0.0
  %1957 = vmatprep.subr.mxu0 0.0
  %1958 = vmatpush1.msra.mxu0 0.0
  %1959 = vmatprep.subr.mxu0 0.0
  %1960 = vmatpush1.msra.mxu0 0.0
  %1961 = vmatprep.subr.mxu0 0.0
  %1962 = vmatpush1.msra.mxu0 0.0
  %1963 = vmatprep.subr.mxu0 0.0
  %1964 = vmatpush1.msra.mxu0 0.0
  %1965 = vmatprep.subr.mxu0 0.0
  %1966 = vmatpush1.msra.mxu0 0.0
  %1967 = vmatprep.subr.mxu0 0.0
  %1968 = vmatpush1.msra.mxu0 0.0
  %1969 = vmatprep.subr.mxu0 0.0
  %1970 = vmatpush1.msra.mxu0 0.0
  %1971 = vmatprep.subr.mxu0 0.0
  %1972 = vmatpush1.msra.mxu0 0.0
  %1973 = vmatprep.subr.mxu0 0.0
  %1974 = vmatpush1.msra.mxu0 0.0
  %1975 = vmatprep.subr.mxu0 0.0
  %1976 = vmatpush1.msra.mxu0 0.0
  %1977 = vmatprep.subr.mxu0 0.0
  %1978 = vmatpush1.msra.mxu0 0.0
  %1979 = vmatprep.subr.mxu0 0.0
  %1980 = vmatpush1.msra.mxu0 0.0
  %1981 = vmatprep.mubr.f32.mxu0 0.0
  %1982 = vmatmul.mubr.f32.gmra.mrb[0].mxu0 %v1818
  %v1983 = vpop.f32.mrb[0].mxu0
  %v1984 = vadd.f32 %v1814, %v1983
  %v1985 = vpop.f32.mrb[0].mxu0
  %1986 = vmatprep.mubr.f32.mxu0 0.0
  %1987 = vmatmul.mubr.f32.gmra.mrb[0].mxu0 %v1821
  %v1988 = vpop.f32.mrb[0].mxu0
  %v1989 = vadd.f32 %v1814, %v1988
  %v1990 = vpop.f32.mrb[0].mxu0
  %1991 = vmatprep.mubr.f32.mxu0 0.0
  %1992 = vmatmul.mubr.f32.gmra.mrb[0].mxu0 %v1824
  %v1993 = vpop.f32.mrb[0].mxu0
  %v1994 = vadd.f32 %v1814, %v1993
  %v1995 = vpop.f32.mrb[0].mxu0
  %1996 = vmatprep.mubr.f32.mxu0 0.0
  %1997 = vmatmul.mubr.f32.gmra.mrb[0].mxu0 %v1827
  %v1998 = vpop.f32.mrb[0].mxu0
  %v1999 = vadd.f32 %v1814, %v1998
  %v2000 = vpop.f32.mrb[0].mxu0
  %2001 = vmatprep.mubr.f32.mxu0 0.0
  %2002 = vmatmul.mubr.f32.gmra.mrb[0].mxu0 %v1830
  %v2003 = vpop.f32.mrb[0].mxu0
  %v2004 = vadd.f32 %v1814, %v2003
  %v2005 = vpop.f32.mrb[0].mxu0
  %2006 = vmatprep.mubr.f32.mxu0 0.0
  %2007 = vmatmul.mubr.f32.gmra.mrb[0].mxu0 %v1833
  %v2008 = vpop.f32.mrb[0].mxu0
  %v2009 = vadd.f32 %v1814, %v2008
  %v2010 = vpop.f32.mrb[0].mxu0
  %2011 = vmatprep.mubr.f32.mxu0 0.0
  %2012 = vmatmul.mubr.f32.gmra.mrb[0].mxu0 %v1836
  %v2013 = vpop.f32.mrb[0].mxu0
  %v2014 = vadd.f32 %v1814, %v2013
  %v2015 = vpop.f32.mrb[0].mxu0
  %2016 = vmatprep.mubr.f32.mxu0 0.0
  %2017 = vmatmul.mubr.f32.gmra.mrb[0].mxu0 %v1839
  %v2018 = vpop.f32.mrb[0].mxu0
  %v2019 = vadd.f32 %v1814, %v2018
  %v2020 = vpop.f32.mrb[0].mxu0
  %2021 = vmatprep.mubr.f32.mxu0 0.0
  %2022 = vmatmul.mubr.f32.gmra.mrb[0].mxu0 %v1842
  %v2023 = vpop.f32.mrb[0].mxu0
  %v2024 = vadd.f32 %v1814, %v2023
  %v2025 = vpop.f32.mrb[0].mxu0
  %2026 = vmatprep.mubr.f32.mxu0 0.0
  %2027 = vmatmul.mubr.f32.gmra.mrb[0].mxu0 %v1845
  %v2028 = vpop.f32.mrb[0].mxu0
  %v2029 = vadd.f32 %v1814, %v2028
  %v2030 = vpop.f32.mrb[0].mxu0
  %2031 = vmatprep.mubr.f32.mxu0 0.0
  %2032 = vmatmul.mubr.f32.gmra.mrb[0].mxu0 %v1848
  %v2033 = vpop.f32.mrb[0].mxu0
  %v2034 = vadd.f32 %v1814, %v2033
  %v2035 = vpop.f32.mrb[0].mxu0
  %2036 = vmatprep.mubr.f32.mxu0 0.0
  %2037 = vmatmul.mubr.f32.gmra.mrb[0].mxu0 %v1851
  %v2038 = vpop.f32.mrb[0].mxu0
  %v2039 = vadd.f32 %v1814, %v2038
  %v2040 = vpop.f32.mrb[0].mxu0
  %2041 = vmatprep.mubr.f32.mxu0 0.0
  %2042 = vmatmul.mubr.f32.gmra.mrb[0].mxu0 %v1854
  %v2043 = vpop.f32.mrb[0].mxu0
  %v2044 = vadd.f32 %v1814, %v2043
  %v2045 = vpop.f32.mrb[0].mxu0
  %2046 = vmatprep.mubr.f32.mxu0 0.0
  %2047 = vmatmul.mubr.f32.gmra.mrb[0].mxu0 %v1857
  %v2048 = vpop.f32.mrb[0].mxu0
  %v2049 = vadd.f32 %v1814, %v2048
  %v2050 = vpop.f32.mrb[0].mxu0
  %2051 = vmatprep.mubr.f32.mxu0 0.0
  %2052 = vmatmul.mubr.f32.gmra.mrb[0].mxu0 %v1860
  %v2053 = vpop.f32.mrb[0].mxu0
  %v2054 = vadd.f32 %v1814, %v2053
  %v2055 = vpop.f32.mrb[0].mxu0
  %2056 = vmatprep.mubr.f32.mxu0 0.0
  %2057 = vmatmul.mubr.f32.gmra.mrb[0].mxu0 %v1863
  %v2058 = vpop.f32.mrb[0].mxu0
  %v2059 = vadd.f32 %v1814, %v2058
  %v2060 = vpop.f32.mrb[0].mxu0
  %2061 = vmatprep.mubr.f32.mxu0 0.0
  %2062 = vmatmul.mubr.f32.gmra.mrb[0].mxu0 %v1866
  %v2063 = vpop.f32.mrb[0].mxu0
  %v2064 = vadd.f32 %v1814, %v2063
  %v2065 = vpop.f32.mrb[0].mxu0
  %2066 = vmatprep.mubr.f32.mxu0 0.0
  %2067 = vmatmul.mubr.f32.gmra.mrb[0].mxu0 %v1869
  %v2068 = vpop.f32.mrb[0].mxu0
  %v2069 = vadd.f32 %v1814, %v2068
  %v2070 = vpop.f32.mrb[0].mxu0
  %2071 = vmatprep.mubr.f32.mxu0 0.0
  %2072 = vmatmul.mubr.f32.gmra.mrb[0].mxu0 %v1872
  %v2073 = vpop.f32.mrb[0].mxu0
  %v2074 = vadd.f32 %v1814, %v2073
  %v2075 = vpop.f32.mrb[0].mxu0
  %2076 = vmatprep.mubr.f32.mxu0 0.0
  %2077 = vmatmul.mubr.f32.gmra.mrb[0].mxu0 %v1875
  %v2078 = vpop.f32.mrb[0].mxu0
  %v2079 = vadd.f32 %v1814, %v2078
  %v2080 = vpop.f32.mrb[0].mxu0
  %2081 = vmatprep.mubr.f32.mxu0 0.0
  %2082 = vmatmul.mubr.f32.gmra.mrb[0].mxu0 %v1878
  %v2083 = vpop.f32.mrb[0].mxu0
  %v2084 = vadd.f32 %v1814, %v2083
  %v2085 = vpop.f32.mrb[0].mxu0
  %2086 = vmatprep.mubr.f32.mxu0 0.0
  %2087 = vmatmul.mubr.f32.gmra.mrb[0].mxu0 %v1881
  %v2088 = vpop.f32.mrb[0].mxu0
  %v2089 = vadd.f32 %v1814, %v2088
  %v2090 = vpop.f32.mrb[0].mxu0
  %2091 = vmatprep.mubr.f32.mxu0 0.0
  %2092 = vmatmul.mubr.f32.gmra.mrb[0].mxu0 %v1884
  %v2093 = vpop.f32.mrb[0].mxu0
  %v2094 = vadd.f32 %v1814, %v2093
  %v2095 = vpop.f32.mrb[0].mxu0
  %2096 = vmatprep.mubr.f32.mxu0 0.0
  %2097 = vmatmul.mubr.f32.gmra.mrb[0].mxu0 %v1887
  %v2098 = vpop.f32.mrb[0].mxu0
  %v2099 = vadd.f32 %v1814, %v2098
  %v2100 = vpop.f32.mrb[0].mxu0
  %2101 = vmatprep.mubr.f32.mxu0 0.0
  %2102 = vmatmul.mubr.f32.gmra.mrb[0].mxu0 %v1890
  %v2103 = vpop.f32.mrb[0].mxu0
  %v2104 = vadd.f32 %v1814, %v2103
  %v2105 = vpop.f32.mrb[0].mxu0
  %2106 = vmatprep.mubr.f32.mxu0 0.0
  %2107 = vmatmul.mubr.f32.gmra.mrb[0].mxu0 %v1893
  %v2108 = vpop.f32.mrb[0].mxu0
  %v2109 = vadd.f32 %v1814, %v2108
  %v2110 = vpop.f32.mrb[0].mxu0
  %2111 = vmatprep.mubr.f32.mxu0 0.0
  %2112 = vmatmul.mubr.f32.gmra.mrb[0].mxu0 %v1896
  %v2113 = vpop.f32.mrb[0].mxu0
  %v2114 = vadd.f32 %v1814, %v2113
  %v2115 = vpop.f32.mrb[0].mxu0
  %2116 = vmatprep.mubr.f32.mxu0 0.0
  %2117 = vmatmul.mubr.f32.gmra.mrb[0].mxu0 %v1899
  %v2118 = vpop.f32.mrb[0].mxu0
  %v2119 = vadd.f32 %v1814, %v2118
  %v2120 = vpop.f32.mrb[0].mxu0
  %2121 = vmatprep.mubr.f32.mxu0 0.0
  %2122 = vmatmul.mubr.f32.gmra.mrb[0].mxu0 %v1902
  %v2123 = vpop.f32.mrb[0].mxu0
  %v2124 = vadd.f32 %v1814, %v2123
  %v2125 = vpop.f32.mrb[0].mxu0
  %2126 = vmatprep.mubr.f32.mxu0 0.0
  %2127 = vmatmul.mubr.f32.gmra.mrb[0].mxu0 %v1905
  %v2128 = vpop.f32.mrb[0].mxu0
  %v2129 = vadd.f32 %v1814, %v2128
  %v2130 = vpop.f32.mrb[0].mxu0
  %2131 = vmatprep.mubr.f32.mxu0 0.0
  %2132 = vmatmul.mubr.f32.gmra.mrb[0].mxu0 %v1908
  %v2133 = vpop.f32.mrb[0].mxu0
  %v2134 = vadd.f32 %v1814, %v2133
  %v2135 = vpop.f32.mrb[0].mxu0
  %2136 = vmatprep.mubr.f32.mxu0 0.0
  %2137 = vmatmul.mubr.f32.gmra.mrb[0].mxu0 %v1911
  %v2138 = vpop.f32.mrb[0].mxu0
  %v2139 = vadd.f32 %v1814, %v2138
  %v2140 = vpop.f32.mrb[0].mxu0
  %2141 = vdwg.mxu0
  %v2142 = vsel %vm1816, %v1984, -inf
  %v2143 = vrot.slane %v2142, 4
  %v2144 = vmax.f32 %v2142, %v2143
  %v2145 = vrot.slane %v2144, 2
  %v2146 = vmax.f32 %v2144, %v2145
  %v2147 = vrot.slane %v2146, 1
  %v2148 = vmax.f32 %v2146, %v2147
  %v2149 = vsel %vm1816, %v1989, -inf
  %v2150 = vrot.slane %v2149, 4
  %v2151 = vmax.f32 %v2149, %v2150
  %v2152 = vrot.slane %v2151, 2
  %v2153 = vmax.f32 %v2151, %v2152
  %v2154 = vrot.slane %v2153, 1
  %v2155 = vmax.f32 %v2153, %v2154
  %v2156 = vsel %vm1816, %v1994, -inf
  %v2157 = vrot.slane %v2156, 4
  %v2158 = vmax.f32 %v2156, %v2157
  %v2159 = vrot.slane %v2158, 2
  %v2160 = vmax.f32 %v2158, %v2159
  %v2161 = vrot.slane %v2160, 1
  %v2162 = vmax.f32 %v2160, %v2161
  %v2163 = vsel %vm1816, %v1999, -inf
  %v2164 = vrot.slane %v2163, 4
  %v2165 = vmax.f32 %v2163, %v2164
  %v2166 = vrot.slane %v2165, 2
  %v2167 = vmax.f32 %v2165, %v2166
  %v2168 = vrot.slane %v2167, 1
  %v2169 = vmax.f32 %v2167, %v2168
  %v2170 = vsel %vm1816, %v2004, -inf
  %v2171 = vrot.slane %v2170, 4
  %v2172 = vmax.f32 %v2170, %v2171
  %v2173 = vrot.slane %v2172, 2
  %v2174 = vmax.f32 %v2172, %v2173
  %v2175 = vrot.slane %v2174, 1
  %v2176 = vmax.f32 %v2174, %v2175
  %v2177 = vsel %vm1816, %v2009, -inf
  %v2178 = vrot.slane %v2177, 4
  %v2179 = vmax.f32 %v2177, %v2178
  %v2180 = vrot.slane %v2179, 2
  %v2181 = vmax.f32 %v2179, %v2180
  %v2182 = vrot.slane %v2181, 1
  %v2183 = vmax.f32 %v2181, %v2182
  %v2184 = vsel %vm1816, %v2014, -inf
  %v2185 = vrot.slane %v2184, 4
  %v2186 = vmax.f32 %v2184, %v2185
  %v2187 = vrot.slane %v2186, 2
  %v2188 = vmax.f32 %v2186, %v2187
  %v2189 = vrot.slane %v2188, 1
  %v2190 = vmax.f32 %v2188, %v2189
  %v2191 = vsel %vm1816, %v2019, -inf
  %v2192 = vrot.slane %v2191, 4
  %v2193 = vmax.f32 %v2191, %v2192
  %v2194 = vrot.slane %v2193, 2
  %v2195 = vmax.f32 %v2193, %v2194
  %v2196 = vrot.slane %v2195, 1
  %v2197 = vmax.f32 %v2195, %v2196
  %v2198 = vsel %vm1816, %v2024, -inf
  %v2199 = vrot.slane %v2198, 4
  %v2200 = vmax.f32 %v2198, %v2199
  %v2201 = vrot.slane %v2200, 2
  %v2202 = vmax.f32 %v2200, %v2201
  %v2203 = vrot.slane %v2202, 1
  %v2204 = vmax.f32 %v2202, %v2203
  %v2205 = vsel %vm1816, %v2029, -inf
  %v2206 = vrot.slane %v2205, 4
  %v2207 = vmax.f32 %v2205, %v2206
  %v2208 = vrot.slane %v2207, 2
  %v2209 = vmax.f32 %v2207, %v2208
  %v2210 = vrot.slane %v2209, 1
  %v2211 = vmax.f32 %v2209, %v2210
  %v2212 = vsel %vm1816, %v2034, -inf
  %v2213 = vrot.slane %v2212, 4
  %v2214 = vmax.f32 %v2212, %v2213
  %v2215 = vrot.slane %v2214, 2
  %v2216 = vmax.f32 %v2214, %v2215
  %v2217 = vrot.slane %v2216, 1
  %v2218 = vmax.f32 %v2216, %v2217
  %v2219 = vsel %vm1816, %v2039, -inf
  %v2220 = vrot.slane %v2219, 4
  %v2221 = vmax.f32 %v2219, %v2220
  %v2222 = vrot.slane %v2221, 2
  %v2223 = vmax.f32 %v2221, %v2222
  %v2224 = vrot.slane %v2223, 1
  %v2225 = vmax.f32 %v2223, %v2224
  %v2226 = vsel %vm1816, %v2044, -inf
  %v2227 = vrot.slane %v2226, 4
  %v2228 = vmax.f32 %v2226, %v2227
  %v2229 = vrot.slane %v2228, 2
  %v2230 = vmax.f32 %v2228, %v2229
  %v2231 = vrot.slane %v2230, 1
  %v2232 = vmax.f32 %v2230, %v2231
  %v2233 = vsel %vm1816, %v2049, -inf
  %v2234 = vrot.slane %v2233, 4
  %v2235 = vmax.f32 %v2233, %v2234
  %v2236 = vrot.slane %v2235, 2
  %v2237 = vmax.f32 %v2235, %v2236
  %v2238 = vrot.slane %v2237, 1
  %v2239 = vmax.f32 %v2237, %v2238
  %v2240 = vsel %vm1816, %v2054, -inf
  %v2241 = vrot.slane %v2240, 4
  %v2242 = vmax.f32 %v2240, %v2241
  %v2243 = vrot.slane %v2242, 2
  %v2244 = vmax.f32 %v2242, %v2243
  %v2245 = vrot.slane %v2244, 1
  %v2246 = vmax.f32 %v2244, %v2245
  %v2247 = vsel %vm1816, %v2059, -inf
  %v2248 = vrot.slane %v2247, 4
  %v2249 = vmax.f32 %v2247, %v2248
  %v2250 = vrot.slane %v2249, 2
  %v2251 = vmax.f32 %v2249, %v2250
  %v2252 = vrot.slane %v2251, 1
  %v2253 = vmax.f32 %v2251, %v2252
  %v2254 = vsel %vm1816, %v2064, -inf
  %v2255 = vrot.slane %v2254, 4
  %v2256 = vmax.f32 %v2254, %v2255
  %v2257 = vrot.slane %v2256, 2
  %v2258 = vmax.f32 %v2256, %v2257
  %v2259 = vrot.slane %v2258, 1
  %v2260 = vmax.f32 %v2258, %v2259
  %v2261 = vsel %vm1816, %v2069, -inf
  %v2262 = vrot.slane %v2261, 4
  %v2263 = vmax.f32 %v2261, %v2262
  %v2264 = vrot.slane %v2263, 2
  %v2265 = vmax.f32 %v2263, %v2264
  %v2266 = vrot.slane %v2265, 1
  %v2267 = vmax.f32 %v2265, %v2266
  %v2268 = vsel %vm1816, %v2074, -inf
  %v2269 = vrot.slane %v2268, 4
  %v2270 = vmax.f32 %v2268, %v2269
  %v2271 = vrot.slane %v2270, 2
  %v2272 = vmax.f32 %v2270, %v2271
  %v2273 = vrot.slane %v2272, 1
  %v2274 = vmax.f32 %v2272, %v2273
  %v2275 = vsel %vm1816, %v2079, -inf
  %v2276 = vrot.slane %v2275, 4
  %v2277 = vmax.f32 %v2275, %v2276
  %v2278 = vrot.slane %v2277, 2
  %v2279 = vmax.f32 %v2277, %v2278
  %v2280 = vrot.slane %v2279, 1
  %v2281 = vmax.f32 %v2279, %v2280
  %v2282 = vsel %vm1816, %v2084, -inf
  %v2283 = vrot.slane %v2282, 4
  %v2284 = vmax.f32 %v2282, %v2283
  %v2285 = vrot.slane %v2284, 2
  %v2286 = vmax.f32 %v2284, %v2285
  %v2287 = vrot.slane %v2286, 1
  %v2288 = vmax.f32 %v2286, %v2287
  %v2289 = vsel %vm1816, %v2089, -inf
  %v2290 = vrot.slane %v2289, 4
  %v2291 = vmax.f32 %v2289, %v2290
  %v2292 = vrot.slane %v2291, 2
  %v2293 = vmax.f32 %v2291, %v2292
  %v2294 = vrot.slane %v2293, 1
  %v2295 = vmax.f32 %v2293, %v2294
  %v2296 = vsel %vm1816, %v2094, -inf
  %v2297 = vrot.slane %v2296, 4
  %v2298 = vmax.f32 %v2296, %v2297
  %v2299 = vrot.slane %v2298, 2
  %v2300 = vmax.f32 %v2298, %v2299
  %v2301 = vrot.slane %v2300, 1
  %v2302 = vmax.f32 %v2300, %v2301
  %v2303 = vsel %vm1816, %v2099, -inf
  %v2304 = vrot.slane %v2303, 4
  %v2305 = vmax.f32 %v2303, %v2304
  %v2306 = vrot.slane %v2305, 2
  %v2307 = vmax.f32 %v2305, %v2306
  %v2308 = vrot.slane %v2307, 1
  %v2309 = vmax.f32 %v2307, %v2308
  %v2310 = vsel %vm1816, %v2104, -inf
  %v2311 = vrot.slane %v2310, 4
  %v2312 = vmax.f32 %v2310, %v2311
  %v2313 = vrot.slane %v2312, 2
  %v2314 = vmax.f32 %v2312, %v2313
  %v2315 = vrot.slane %v2314, 1
  %v2316 = vmax.f32 %v2314, %v2315
  %v2317 = vsel %vm1816, %v2109, -inf
  %v2318 = vrot.slane %v2317, 4
  %v2319 = vmax.f32 %v2317, %v2318
  %v2320 = vrot.slane %v2319, 2
  %v2321 = vmax.f32 %v2319, %v2320
  %v2322 = vrot.slane %v2321, 1
  %v2323 = vmax.f32 %v2321, %v2322
  %v2324 = vsel %vm1816, %v2114, -inf
  %v2325 = vrot.slane %v2324, 4
  %v2326 = vmax.f32 %v2324, %v2325
  %v2327 = vrot.slane %v2326, 2
  %v2328 = vmax.f32 %v2326, %v2327
  %v2329 = vrot.slane %v2328, 1
  %v2330 = vmax.f32 %v2328, %v2329
  %v2331 = vsel %vm1816, %v2119, -inf
  %v2332 = vrot.slane %v2331, 4
  %v2333 = vmax.f32 %v2331, %v2332
  %v2334 = vrot.slane %v2333, 2
  %v2335 = vmax.f32 %v2333, %v2334
  %v2336 = vrot.slane %v2335, 1
  %v2337 = vmax.f32 %v2335, %v2336
  %v2338 = vsel %vm1816, %v2124, -inf
  %v2339 = vrot.slane %v2338, 4
  %v2340 = vmax.f32 %v2338, %v2339
  %v2341 = vrot.slane %v2340, 2
  %v2342 = vmax.f32 %v2340, %v2341
  %v2343 = vrot.slane %v2342, 1
  %v2344 = vmax.f32 %v2342, %v2343
  %v2345 = vsel %vm1816, %v2129, -inf
  %v2346 = vrot.slane %v2345, 4
  %v2347 = vmax.f32 %v2345, %v2346
  %v2348 = vrot.slane %v2347, 2
  %v2349 = vmax.f32 %v2347, %v2348
  %v2350 = vrot.slane %v2349, 1
  %v2351 = vmax.f32 %v2349, %v2350
  %v2352 = vsel %vm1816, %v2134, -inf
  %v2353 = vrot.slane %v2352, 4
  %v2354 = vmax.f32 %v2352, %v2353
  %v2355 = vrot.slane %v2354, 2
  %v2356 = vmax.f32 %v2354, %v2355
  %v2357 = vrot.slane %v2356, 1
  %v2358 = vmax.f32 %v2356, %v2357
  %v2359 = vsel %vm1816, %v2139, -inf
  %v2360 = vrot.slane %v2359, 4
  %v2361 = vmax.f32 %v2359, %v2360
  %v2362 = vrot.slane %v2361, 2
  %v2363 = vmax.f32 %v2361, %v2362
  %v2364 = vrot.slane %v2363, 1
  %v2365 = vmax.f32 %v2363, %v2364
  %v2366 = vsub.f32 %v1984, %v2148
  %v2367 = vsub.f32 %v1989, %v2155
  %v2368 = vsub.f32 %v1994, %v2162
  %v2369 = vsub.f32 %v1999, %v2169
  %v2370 = vsub.f32 %v2004, %v2176
  %v2371 = vsub.f32 %v2009, %v2183
  %v2372 = vsub.f32 %v2014, %v2190
  %v2373 = vsub.f32 %v2019, %v2197
  %v2374 = vsub.f32 %v2024, %v2204
  %v2375 = vsub.f32 %v2029, %v2211
  %v2376 = vsub.f32 %v2034, %v2218
  %v2377 = vsub.f32 %v2039, %v2225
  %v2378 = vsub.f32 %v2044, %v2232
  %v2379 = vsub.f32 %v2049, %v2239
  %v2380 = vsub.f32 %v2054, %v2246
  %v2381 = vsub.f32 %v2059, %v2253
  %v2382 = vsub.f32 %v2064, %v2260
  %v2383 = vsub.f32 %v2069, %v2267
  %v2384 = vsub.f32 %v2074, %v2274
  %v2385 = vsub.f32 %v2079, %v2281
  %v2386 = vsub.f32 %v2084, %v2288
  %v2387 = vsub.f32 %v2089, %v2295
  %v2388 = vsub.f32 %v2094, %v2302
  %v2389 = vsub.f32 %v2099, %v2309
  %v2390 = vsub.f32 %v2104, %v2316
  %v2391 = vsub.f32 %v2109, %v2323
  %v2392 = vsub.f32 %v2114, %v2330
  %v2393 = vsub.f32 %v2119, %v2337
  %v2394 = vsub.f32 %v2124, %v2344
  %v2395 = vsub.f32 %v2129, %v2351
  %v2396 = vsub.f32 %v2134, %v2358
  %v2397 = vsub.f32 %v2139, %v2365
  %v2398 = vmul.f32 %v2366, 1.442695
  %v2399 = vpow.pop %v2398
  %v2400 = vmul.f32 %v2367, 1.442695
  %v2401 = vpow.pop %v2400
  %v2402 = vmul.f32 %v2368, 1.442695
  %v2403 = vpow.pop %v2402
  %v2404 = vmul.f32 %v2369, 1.442695
  %v2405 = vpow.pop %v2404
  %v2406 = vmul.f32 %v2370, 1.442695
  %v2407 = vpow.pop %v2406
  %v2408 = vmul.f32 %v2371, 1.442695
  %v2409 = vpow.pop %v2408
  %v2410 = vmul.f32 %v2372, 1.442695
  %v2411 = vpow.pop %v2410
  %v2412 = vmul.f32 %v2373, 1.442695
  %v2413 = vpow.pop %v2412
  %v2414 = vmul.f32 %v2374, 1.442695
  %v2415 = vpow.pop %v2414
  %v2416 = vmul.f32 %v2375, 1.442695
  %v2417 = vpow.pop %v2416
  %v2418 = vmul.f32 %v2376, 1.442695
  %v2419 = vpow.pop %v2418
  %v2420 = vmul.f32 %v2377, 1.442695
  %v2421 = vpow.pop %v2420
  %v2422 = vmul.f32 %v2378, 1.442695
  %v2423 = vpow.pop %v2422
  %v2424 = vmul.f32 %v2379, 1.442695
  %v2425 = vpow.pop %v2424
  %v2426 = vmul.f32 %v2380, 1.442695
  %v2427 = vpow.pop %v2426
  %v2428 = vmul.f32 %v2381, 1.442695
  %v2429 = vpow.pop %v2428
  %v2430 = vmul.f32 %v2382, 1.442695
  %v2431 = vpow.pop %v2430
  %v2432 = vmul.f32 %v2383, 1.442695
  %v2433 = vpow.pop %v2432
  %v2434 = vmul.f32 %v2384, 1.442695
  %v2435 = vpow.pop %v2434
  %v2436 = vmul.f32 %v2385, 1.442695
  %v2437 = vpow.pop %v2436
  %v2438 = vmul.f32 %v2386, 1.442695
  %v2439 = vpow.pop %v2438
  %v2440 = vmul.f32 %v2387, 1.442695
  %v2441 = vpow.pop %v2440
  %v2442 = vmul.f32 %v2388, 1.442695
  %v2443 = vpow.pop %v2442
  %v2444 = vmul.f32 %v2389, 1.442695
  %v2445 = vpow.pop %v2444
  %v2446 = vmul.f32 %v2390, 1.442695
  %v2447 = vpow.pop %v2446
  %v2448 = vmul.f32 %v2391, 1.442695
  %v2449 = vpow.pop %v2448
  %v2450 = vmul.f32 %v2392, 1.442695
  %v2451 = vpow.pop %v2450
  %v2452 = vmul.f32 %v2393, 1.442695
  %v2453 = vpow.pop %v2452
  %v2454 = vmul.f32 %v2394, 1.442695
  %v2455 = vpow.pop %v2454
  %v2456 = vmul.f32 %v2395, 1.442695
  %v2457 = vpow.pop %v2456
  %v2458 = vmul.f32 %v2396, 1.442695
  %v2459 = vpow.pop %v2458
  %v2460 = vmul.f32 %v2397, 1.442695
  %v2461 = vpow.pop %v2460
  %v2462 = vsel %vm1816, %v2399, 0.0
  %v2463 = vrot.slane %v2462, 4
  %v2464 = vadd.f32 %v2462, %v2463
  %v2465 = vrot.slane %v2464, 2
  %v2466 = vadd.f32 %v2464, %v2465
  %v2467 = vrot.slane %v2466, 1
  %v2468 = vadd.f32 %v2466, %v2467
  %v2469 = vsel %vm1816, %v2401, 0.0
  %v2470 = vrot.slane %v2469, 4
  %v2471 = vadd.f32 %v2469, %v2470
  %v2472 = vrot.slane %v2471, 2
  %v2473 = vadd.f32 %v2471, %v2472
  %v2474 = vrot.slane %v2473, 1
  %v2475 = vadd.f32 %v2473, %v2474
  %v2476 = vsel %vm1816, %v2403, 0.0
  %v2477 = vrot.slane %v2476, 4
  %v2478 = vadd.f32 %v2476, %v2477
  %v2479 = vrot.slane %v2478, 2
  %v2480 = vadd.f32 %v2478, %v2479
  %v2481 = vrot.slane %v2480, 1
  %v2482 = vadd.f32 %v2480, %v2481
  %v2483 = vsel %vm1816, %v2405, 0.0
  %v2484 = vrot.slane %v2483, 4
  %v2485 = vadd.f32 %v2483, %v2484
  %v2486 = vrot.slane %v2485, 2
  %v2487 = vadd.f32 %v2485, %v2486
  %v2488 = vrot.slane %v2487, 1
  %v2489 = vadd.f32 %v2487, %v2488
  %v2490 = vsel %vm1816, %v2407, 0.0
  %v2491 = vrot.slane %v2490, 4
  %v2492 = vadd.f32 %v2490, %v2491
  %v2493 = vrot.slane %v2492, 2
  %v2494 = vadd.f32 %v2492, %v2493
  %v2495 = vrot.slane %v2494, 1
  %v2496 = vadd.f32 %v2494, %v2495
  %v2497 = vsel %vm1816, %v2409, 0.0
  %v2498 = vrot.slane %v2497, 4
  %v2499 = vadd.f32 %v2497, %v2498
  %v2500 = vrot.slane %v2499, 2
  %v2501 = vadd.f32 %v2499, %v2500
  %v2502 = vrot.slane %v2501, 1
  %v2503 = vadd.f32 %v2501, %v2502
  %v2504 = vsel %vm1816, %v2411, 0.0
  %v2505 = vrot.slane %v2504, 4
  %v2506 = vadd.f32 %v2504, %v2505
  %v2507 = vrot.slane %v2506, 2
  %v2508 = vadd.f32 %v2506, %v2507
  %v2509 = vrot.slane %v2508, 1
  %v2510 = vadd.f32 %v2508, %v2509
  %v2511 = vsel %vm1816, %v2413, 0.0
  %v2512 = vrot.slane %v2511, 4
  %v2513 = vadd.f32 %v2511, %v2512
  %v2514 = vrot.slane %v2513, 2
  %v2515 = vadd.f32 %v2513, %v2514
  %v2516 = vrot.slane %v2515, 1
  %v2517 = vadd.f32 %v2515, %v2516
  %v2518 = vsel %vm1816, %v2415, 0.0
  %v2519 = vrot.slane %v2518, 4
  %v2520 = vadd.f32 %v2518, %v2519
  %v2521 = vrot.slane %v2520, 2
  %v2522 = vadd.f32 %v2520, %v2521
  %v2523 = vrot.slane %v2522, 1
  %v2524 = vadd.f32 %v2522, %v2523
  %v2525 = vsel %vm1816, %v2417, 0.0
  %v2526 = vrot.slane %v2525, 4
  %v2527 = vadd.f32 %v2525, %v2526
  %v2528 = vrot.slane %v2527, 2
  %v2529 = vadd.f32 %v2527, %v2528
  %v2530 = vrot.slane %v2529, 1
  %v2531 = vadd.f32 %v2529, %v2530
  %v2532 = vsel %vm1816, %v2419, 0.0
  %v2533 = vrot.slane %v2532, 4
  %v2534 = vadd.f32 %v2532, %v2533
  %v2535 = vrot.slane %v2534, 2
  %v2536 = vadd.f32 %v2534, %v2535
  %v2537 = vrot.slane %v2536, 1
  %v2538 = vadd.f32 %v2536, %v2537
  %v2539 = vsel %vm1816, %v2421, 0.0
  %v2540 = vrot.slane %v2539, 4
  %v2541 = vadd.f32 %v2539, %v2540
  %v2542 = vrot.slane %v2541, 2
  %v2543 = vadd.f32 %v2541, %v2542
  %v2544 = vrot.slane %v2543, 1
  %v2545 = vadd.f32 %v2543, %v2544
  %v2546 = vsel %vm1816, %v2423, 0.0
  %v2547 = vrot.slane %v2546, 4
  %v2548 = vadd.f32 %v2546, %v2547
  %v2549 = vrot.slane %v2548, 2
  %v2550 = vadd.f32 %v2548, %v2549
  %v2551 = vrot.slane %v2550, 1
  %v2552 = vadd.f32 %v2550, %v2551
  %v2553 = vsel %vm1816, %v2425, 0.0
  %v2554 = vrot.slane %v2553, 4
  %v2555 = vadd.f32 %v2553, %v2554
  %v2556 = vrot.slane %v2555, 2
  %v2557 = vadd.f32 %v2555, %v2556
  %v2558 = vrot.slane %v2557, 1
  %v2559 = vadd.f32 %v2557, %v2558
  %v2560 = vsel %vm1816, %v2427, 0.0
  %v2561 = vrot.slane %v2560, 4
  %v2562 = vadd.f32 %v2560, %v2561
  %v2563 = vrot.slane %v2562, 2
  %v2564 = vadd.f32 %v2562, %v2563
  %v2565 = vrot.slane %v2564, 1
  %v2566 = vadd.f32 %v2564, %v2565
  %v2567 = vsel %vm1816, %v2429, 0.0
  %v2568 = vrot.slane %v2567, 4
  %v2569 = vadd.f32 %v2567, %v2568
  %v2570 = vrot.slane %v2569, 2
  %v2571 = vadd.f32 %v2569, %v2570
  %v2572 = vrot.slane %v2571, 1
  %v2573 = vadd.f32 %v2571, %v2572
  %v2574 = vsel %vm1816, %v2431, 0.0
  %v2575 = vrot.slane %v2574, 4
  %v2576 = vadd.f32 %v2574, %v2575
  %v2577 = vrot.slane %v2576, 2
  %v2578 = vadd.f32 %v2576, %v2577
  %v2579 = vrot.slane %v2578, 1
  %v2580 = vadd.f32 %v2578, %v2579
  %v2581 = vsel %vm1816, %v2433, 0.0
  %v2582 = vrot.slane %v2581, 4
  %v2583 = vadd.f32 %v2581, %v2582
  %v2584 = vrot.slane %v2583, 2
  %v2585 = vadd.f32 %v2583, %v2584
  %v2586 = vrot.slane %v2585, 1
  %v2587 = vadd.f32 %v2585, %v2586
  %v2588 = vsel %vm1816, %v2435, 0.0
  %v2589 = vrot.slane %v2588, 4
  %v2590 = vadd.f32 %v2588, %v2589
  %v2591 = vrot.slane %v2590, 2
  %v2592 = vadd.f32 %v2590, %v2591
  %v2593 = vrot.slane %v2592, 1
  %v2594 = vadd.f32 %v2592, %v2593
  %v2595 = vsel %vm1816, %v2437, 0.0
  %v2596 = vrot.slane %v2595, 4
  %v2597 = vadd.f32 %v2595, %v2596
  %v2598 = vrot.slane %v2597, 2
  %v2599 = vadd.f32 %v2597, %v2598
  %v2600 = vrot.slane %v2599, 1
  %v2601 = vadd.f32 %v2599, %v2600
  %v2602 = vsel %vm1816, %v2439, 0.0
  %v2603 = vrot.slane %v2602, 4
  %v2604 = vadd.f32 %v2602, %v2603
  %v2605 = vrot.slane %v2604, 2
  %v2606 = vadd.f32 %v2604, %v2605
  %v2607 = vrot.slane %v2606, 1
  %v2608 = vadd.f32 %v2606, %v2607
  %v2609 = vsel %vm1816, %v2441, 0.0
  %v2610 = vrot.slane %v2609, 4
  %v2611 = vadd.f32 %v2609, %v2610
  %v2612 = vrot.slane %v2611, 2
  %v2613 = vadd.f32 %v2611, %v2612
  %v2614 = vrot.slane %v2613, 1
  %v2615 = vadd.f32 %v2613, %v2614
  %v2616 = vsel %vm1816, %v2443, 0.0
  %v2617 = vrot.slane %v2616, 4
  %v2618 = vadd.f32 %v2616, %v2617
  %v2619 = vrot.slane %v2618, 2
  %v2620 = vadd.f32 %v2618, %v2619
  %v2621 = vrot.slane %v2620, 1
  %v2622 = vadd.f32 %v2620, %v2621
  %v2623 = vsel %vm1816, %v2445, 0.0
  %v2624 = vrot.slane %v2623, 4
  %v2625 = vadd.f32 %v2623, %v2624
  %v2626 = vrot.slane %v2625, 2
  %v2627 = vadd.f32 %v2625, %v2626
  %v2628 = vrot.slane %v2627, 1
  %v2629 = vadd.f32 %v2627, %v2628
  %v2630 = vsel %vm1816, %v2447, 0.0
  %v2631 = vrot.slane %v2630, 4
  %v2632 = vadd.f32 %v2630, %v2631
  %v2633 = vrot.slane %v2632, 2
  %v2634 = vadd.f32 %v2632, %v2633
  %v2635 = vrot.slane %v2634, 1
  %v2636 = vadd.f32 %v2634, %v2635
  %v2637 = vsel %vm1816, %v2449, 0.0
  %v2638 = vrot.slane %v2637, 4
  %v2639 = vadd.f32 %v2637, %v2638
  %v2640 = vrot.slane %v2639, 2
  %v2641 = vadd.f32 %v2639, %v2640
  %v2642 = vrot.slane %v2641, 1
  %v2643 = vadd.f32 %v2641, %v2642
  %v2644 = vsel %vm1816, %v2451, 0.0
  %v2645 = vrot.slane %v2644, 4
  %v2646 = vadd.f32 %v2644, %v2645
  %v2647 = vrot.slane %v2646, 2
  %v2648 = vadd.f32 %v2646, %v2647
  %v2649 = vrot.slane %v2648, 1
  %v2650 = vadd.f32 %v2648, %v2649
  %v2651 = vsel %vm1816, %v2453, 0.0
  %v2652 = vrot.slane %v2651, 4
  %v2653 = vadd.f32 %v2651, %v2652
  %v2654 = vrot.slane %v2653, 2
  %v2655 = vadd.f32 %v2653, %v2654
  %v2656 = vrot.slane %v2655, 1
  %v2657 = vadd.f32 %v2655, %v2656
  %v2658 = vsel %vm1816, %v2455, 0.0
  %v2659 = vrot.slane %v2658, 4
  %v2660 = vadd.f32 %v2658, %v2659
  %v2661 = vrot.slane %v2660, 2
  %v2662 = vadd.f32 %v2660, %v2661
  %v2663 = vrot.slane %v2662, 1
  %v2664 = vadd.f32 %v2662, %v2663
  %v2665 = vsel %vm1816, %v2457, 0.0
  %v2666 = vrot.slane %v2665, 4
  %v2667 = vadd.f32 %v2665, %v2666
  %v2668 = vrot.slane %v2667, 2
  %v2669 = vadd.f32 %v2667, %v2668
  %v2670 = vrot.slane %v2669, 1
  %v2671 = vadd.f32 %v2669, %v2670
  %v2672 = vsel %vm1816, %v2459, 0.0
  %v2673 = vrot.slane %v2672, 4
  %v2674 = vadd.f32 %v2672, %v2673
  %v2675 = vrot.slane %v2674, 2
  %v2676 = vadd.f32 %v2674, %v2675
  %v2677 = vrot.slane %v2676, 1
  %v2678 = vadd.f32 %v2676, %v2677
  %v2679 = vsel %vm1816, %v2461, 0.0
  %v2680 = vrot.slane %v2679, 4
  %v2681 = vadd.f32 %v2679, %v2680
  %v2682 = vrot.slane %v2681, 2
  %v2683 = vadd.f32 %v2681, %v2682
  %v2684 = vrot.slane %v2683, 1
  %v2685 = vadd.f32 %v2683, %v2684
  %v2686 = vrcp.pop %v2468
  %v2687 = vmul.f32 %v2399, %v2686
  %v2688 = vrcp.pop %v2475
  %v2689 = vmul.f32 %v2401, %v2688
  %v2690 = vrcp.pop %v2482
  %v2691 = vmul.f32 %v2403, %v2690
  %v2692 = vrcp.pop %v2489
  %v2693 = vmul.f32 %v2405, %v2692
  %v2694 = vrcp.pop %v2496
  %v2695 = vmul.f32 %v2407, %v2694
  %v2696 = vrcp.pop %v2503
  %v2697 = vmul.f32 %v2409, %v2696
  %v2698 = vrcp.pop %v2510
  %v2699 = vmul.f32 %v2411, %v2698
  %v2700 = vrcp.pop %v2517
  %v2701 = vmul.f32 %v2413, %v2700
  %v2702 = vrcp.pop %v2524
  %v2703 = vmul.f32 %v2415, %v2702
  %v2704 = vrcp.pop %v2531
  %v2705 = vmul.f32 %v2417, %v2704
  %v2706 = vrcp.pop %v2538
  %v2707 = vmul.f32 %v2419, %v2706
  %v2708 = vrcp.pop %v2545
  %v2709 = vmul.f32 %v2421, %v2708
  %v2710 = vrcp.pop %v2552
  %v2711 = vmul.f32 %v2423, %v2710
  %v2712 = vrcp.pop %v2559
  %v2713 = vmul.f32 %v2425, %v2712
  %v2714 = vrcp.pop %v2566
  %v2715 = vmul.f32 %v2427, %v2714
  %v2716 = vrcp.pop %v2573
  %v2717 = vmul.f32 %v2429, %v2716
  %v2718 = vrcp.pop %v2580
  %v2719 = vmul.f32 %v2431, %v2718
  %v2720 = vrcp.pop %v2587
  %v2721 = vmul.f32 %v2433, %v2720
  %v2722 = vrcp.pop %v2594
  %v2723 = vmul.f32 %v2435, %v2722
  %v2724 = vrcp.pop %v2601
  %v2725 = vmul.f32 %v2437, %v2724
  %v2726 = vrcp.pop %v2608
  %v2727 = vmul.f32 %v2439, %v2726
  %v2728 = vrcp.pop %v2615
  %v2729 = vmul.f32 %v2441, %v2728
  %v2730 = vrcp.pop %v2622
  %v2731 = vmul.f32 %v2443, %v2730
  %v2732 = vrcp.pop %v2629
  %v2733 = vmul.f32 %v2445, %v2732
  %v2734 = vrcp.pop %v2636
  %v2735 = vmul.f32 %v2447, %v2734
  %v2736 = vrcp.pop %v2643
  %v2737 = vmul.f32 %v2449, %v2736
  %v2738 = vrcp.pop %v2650
  %v2739 = vmul.f32 %v2451, %v2738
  %v2740 = vrcp.pop %v2657
  %v2741 = vmul.f32 %v2453, %v2740
  %v2742 = vrcp.pop %v2664
  %v2743 = vmul.f32 %v2455, %v2742
  %v2744 = vrcp.pop %v2671
  %v2745 = vmul.f32 %v2457, %v2744
  %v2746 = vrcp.pop %v2678
  %v2747 = vmul.f32 %v2459, %v2746
  %v2748 = vrcp.pop %v2685
  %v2749 = vmul.f32 %v2461, %v2748
  %v2750 = vld [vmem:[%s4] sm:$0xff]
  %v2751 = vld [vmem:[%s4 + $0x8] sm:$0xff]
  %v2752 = vld [vmem:[%s4 + $0x10] sm:$0xff]
  %v2753 = vld [vmem:[%s4 + $0x18] sm:$0xff]
  %v2754 = vld [vmem:[%s4 + $0x20] sm:$0xff]
  %v2755 = vld [vmem:[%s4 + $0x28] sm:$0xff]
  %v2756 = vld [vmem:[%s4 + $0x30] sm:$0xff]
  %v2757 = vld [vmem:[%s4 + $0x38] sm:$0xff]
  %v2758 = vld [vmem:[%s4 + $0x40] sm:$0xff]
  %v2759 = vld [vmem:[%s4 + $0x48] sm:$0xff]
  %v2760 = vld [vmem:[%s4 + $0x50] sm:$0xff]
  %v2761 = vld [vmem:[%s4 + $0x58] sm:$0xff]
  %v2762 = vld [vmem:[%s4 + $0x60] sm:$0xff]
  %v2763 = vld [vmem:[%s4 + $0x68] sm:$0xff]
  %v2764 = vld [vmem:[%s4 + $0x70] sm:$0xff]
  %v2765 = vld [vmem:[%s4 + $0x78] sm:$0xff]
  %v2766 = vld [vmem:[%s4 + $0x80] sm:$0xff]
  %v2767 = vld [vmem:[%s4 + $0x88] sm:$0xff]
  %v2768 = vld [vmem:[%s4 + $0x90] sm:$0xff]
  %v2769 = vld [vmem:[%s4 + $0x98] sm:$0xff]
  %v2770 = vld [vmem:[%s4 + $0xa0] sm:$0xff]
  %v2771 = vld [vmem:[%s4 + $0xa8] sm:$0xff]
  %v2772 = vld [vmem:[%s4 + $0xb0] sm:$0xff]
  %v2773 = vld [vmem:[%s4 + $0xb8] sm:$0xff]
  %v2774 = vld [vmem:[%s4 + $0xc0] sm:$0xff]
  %v2775 = vld [vmem:[%s4 + $0xc8] sm:$0xff]
  %v2776 = vld [vmem:[%s4 + $0xd0] sm:$0xff]
  %v2777 = vld [vmem:[%s4 + $0xd8] sm:$0xff]
  %v2778 = vld [vmem:[%s4 + $0xe0] sm:$0xff]
  %v2779 = vld [vmem:[%s4 + $0xe8] sm:$0xff]
  %v2780 = vld [vmem:[%s4 + $0xf0] sm:$0xff]
  %v2781 = vld [vmem:[%s4 + $0xf8] sm:$0xff]
  %2783 = vset.pattern.permute.xlu0 0
  %2784 = vperm.xlu0 %2783, %v2750
  %v2785 = vpop.permute.xlu0 %2784
  %2788 = vset.pattern.permute.xlu0 0
  %2789 = vperm.xlu0 %2788, %v2751
  %v2790 = vpop.permute.xlu0 %2789
  %2793 = vset.pattern.permute.xlu0 0
  %2794 = vperm.xlu0 %2793, %v2752
  %v2795 = vpop.permute.xlu0 %2794
  %2798 = vset.pattern.permute.xlu0 0
  %2799 = vperm.xlu0 %2798, %v2753
  %v2800 = vpop.permute.xlu0 %2799
  %2803 = vset.pattern.permute.xlu0 0
  %2804 = vperm.xlu0 %2803, %v2754
  %v2805 = vpop.permute.xlu0 %2804
  %2808 = vset.pattern.permute.xlu0 0
  %2809 = vperm.xlu0 %2808, %v2755
  %v2810 = vpop.permute.xlu0 %2809
  %2813 = vset.pattern.permute.xlu0 0
  %2814 = vperm.xlu0 %2813, %v2756
  %v2815 = vpop.permute.xlu0 %2814
  %2818 = vset.pattern.permute.xlu0 0
  %2819 = vperm.xlu0 %2818, %v2757
  %v2820 = vpop.permute.xlu0 %2819
  %2823 = vset.pattern.permute.xlu0 0
  %2824 = vperm.xlu0 %2823, %v2758
  %v2825 = vpop.permute.xlu0 %2824
  %2828 = vset.pattern.permute.xlu0 0
  %2829 = vperm.xlu0 %2828, %v2759
  %v2830 = vpop.permute.xlu0 %2829
  %2833 = vset.pattern.permute.xlu0 0
  %2834 = vperm.xlu0 %2833, %v2760
  %v2835 = vpop.permute.xlu0 %2834
  %2838 = vset.pattern.permute.xlu0 0
  %2839 = vperm.xlu0 %2838, %v2761
  %v2840 = vpop.permute.xlu0 %2839
  %2843 = vset.pattern.permute.xlu0 0
  %2844 = vperm.xlu0 %2843, %v2762
  %v2845 = vpop.permute.xlu0 %2844
  %2848 = vset.pattern.permute.xlu0 0
  %2849 = vperm.xlu0 %2848, %v2763
  %v2850 = vpop.permute.xlu0 %2849
  %2853 = vset.pattern.permute.xlu0 0
  %2854 = vperm.xlu0 %2853, %v2764
  %v2855 = vpop.permute.xlu0 %2854
  %2858 = vset.pattern.permute.xlu0 0
  %2859 = vperm.xlu0 %2858, %v2765
  %v2860 = vpop.permute.xlu0 %2859
  %2863 = vset.pattern.permute.xlu0 0
  %2864 = vperm.xlu0 %2863, %v2766
  %v2865 = vpop.permute.xlu0 %2864
  %2868 = vset.pattern.permute.xlu0 0
  %2869 = vperm.xlu0 %2868, %v2767
  %v2870 = vpop.permute.xlu0 %2869
  %2873 = vset.pattern.permute.xlu0 0
  %2874 = vperm.xlu0 %2873, %v2768
  %v2875 = vpop.permute.xlu0 %2874
  %2878 = vset.pattern.permute.xlu0 0
  %2879 = vperm.xlu0 %2878, %v2769
  %v2880 = vpop.permute.xlu0 %2879
  %2883 = vset.pattern.permute.xlu0 0
  %2884 = vperm.xlu0 %2883, %v2770
  %v2885 = vpop.permute.xlu0 %2884
  %2888 = vset.pattern.permute.xlu0 0
  %2889 = vperm.xlu0 %2888, %v2771
  %v2890 = vpop.permute.xlu0 %2889
  %2893 = vset.pattern.permute.xlu0 0
  %2894 = vperm.xlu0 %2893, %v2772
  %v2895 = vpop.permute.xlu0 %2894
  %2898 = vset.pattern.permute.xlu0 0
  %2899 = vperm.xlu0 %2898, %v2773
  %v2900 = vpop.permute.xlu0 %2899
  %2903 = vset.pattern.permute.xlu0 0
  %2904 = vperm.xlu0 %2903, %v2774
  %v2905 = vpop.permute.xlu0 %2904
  %2908 = vset.pattern.permute.xlu0 0
  %2909 = vperm.xlu0 %2908, %v2775
  %v2910 = vpop.permute.xlu0 %2909
  %2913 = vset.pattern.permute.xlu0 0
  %2914 = vperm.xlu0 %2913, %v2776
  %v2915 = vpop.permute.xlu0 %2914
  %2918 = vset.pattern.permute.xlu0 0
  %2919 = vperm.xlu0 %2918, %v2777
  %v2920 = vpop.permute.xlu0 %2919
  %2923 = vset.pattern.permute.xlu0 0
  %2924 = vperm.xlu0 %2923, %v2778
  %v2925 = vpop.permute.xlu0 %2924
  %2928 = vset.pattern.permute.xlu0 0
  %2929 = vperm.xlu0 %2928, %v2779
  %v2930 = vpop.permute.xlu0 %2929
  %2933 = vset.pattern.permute.xlu0 0
  %2934 = vperm.xlu0 %2933, %v2780
  %v2935 = vpop.permute.xlu0 %2934
  %2938 = vset.pattern.permute.xlu0 0
  %2939 = vperm.xlu0 %2938, %v2781
  %v2940 = vpop.permute.xlu0 %2939
  %v2942 = vmul.f32 %v2687, %v2785
  %v2943 = vmul.f32 %v2689, %v2790
  %v2944 = vmul.f32 %v2691, %v2795
  %v2945 = vmul.f32 %v2693, %v2800
  %v2946 = vmul.f32 %v2695, %v2805
  %v2947 = vmul.f32 %v2697, %v2810
  %v2948 = vmul.f32 %v2699, %v2815
  %v2949 = vmul.f32 %v2701, %v2820
  %v2950 = vmul.f32 %v2703, %v2825
  %v2951 = vmul.f32 %v2705, %v2830
  %v2952 = vmul.f32 %v2707, %v2835
  %v2953 = vmul.f32 %v2709, %v2840
  %v2954 = vmul.f32 %v2711, %v2845
  %v2955 = vmul.f32 %v2713, %v2850
  %v2956 = vmul.f32 %v2715, %v2855
  %v2957 = vmul.f32 %v2717, %v2860
  %v2958 = vmul.f32 %v2719, %v2865
  %v2959 = vmul.f32 %v2721, %v2870
  %v2960 = vmul.f32 %v2723, %v2875
  %v2961 = vmul.f32 %v2725, %v2880
  %v2962 = vmul.f32 %v2727, %v2885
  %v2963 = vmul.f32 %v2729, %v2890
  %v2964 = vmul.f32 %v2731, %v2895
  %v2965 = vmul.f32 %v2733, %v2900
  %v2966 = vmul.f32 %v2735, %v2905
  %v2967 = vmul.f32 %v2737, %v2910
  %v2968 = vmul.f32 %v2739, %v2915
  %v2969 = vmul.f32 %v2741, %v2920
  %v2970 = vmul.f32 %v2743, %v2925
  %v2971 = vmul.f32 %v2745, %v2930
  %v2972 = vmul.f32 %v2747, %v2935
  %v2973 = vmul.f32 %v2749, %v2940
  %v2974 = vld [vmem:[%s17] sm:$0xf]
  %v2976 = vsel %vm1816, %v2942, 0
  %v2979 = vsel %vm1816, %v2943, 0
  %v2982 = vsel %vm1816, %v2944, 0
  %v2985 = vsel %vm1816, %v2945, 0
  %v2988 = vsel %vm1816, %v2946, 0
  %v2991 = vsel %vm1816, %v2947, 0
  %v2994 = vsel %vm1816, %v2948, 0
  %v2997 = vsel %vm1816, %v2949, 0
  %v3000 = vsel %vm1816, %v2950, 0
  %v3003 = vsel %vm1816, %v2951, 0
  %v3006 = vsel %vm1816, %v2952, 0
  %v3009 = vsel %vm1816, %v2953, 0
  %v3012 = vsel %vm1816, %v2954, 0
  %v3015 = vsel %vm1816, %v2955, 0
  %v3018 = vsel %vm1816, %v2956, 0
  %v3021 = vsel %vm1816, %v2957, 0
  %v3024 = vsel %vm1816, %v2958, 0
  %v3027 = vsel %vm1816, %v2959, 0
  %v3030 = vsel %vm1816, %v2960, 0
  %v3033 = vsel %vm1816, %v2961, 0
  %v3036 = vsel %vm1816, %v2962, 0
  %v3039 = vsel %vm1816, %v2963, 0
  %v3042 = vsel %vm1816, %v2964, 0
  %v3045 = vsel %vm1816, %v2965, 0
  %v3048 = vsel %vm1816, %v2966, 0
  %v3051 = vsel %vm1816, %v2967, 0
  %v3054 = vsel %vm1816, %v2968, 0
  %v3057 = vsel %vm1816, %v2969, 0
  %v3060 = vsel %vm1816, %v2970, 0
  %v3063 = vsel %vm1816, %v2971, 0
  %v3066 = vsel %vm1816, %v2972, 0
  %v3069 = vsel %vm1816, %v2973, 0
  %v3072 = vsel %vm1913, %v2974, 0
  %3074 = vmatprep.subr.mxu0 0.0
  %3075 = vmatpush1.msra.mxu0 %v3072
  %3076 = vmatprep.subr.mxu0 0.0
  %3077 = vmatpush1.msra.mxu0 0.0
  %3078 = vmatprep.subr.mxu0 0.0
  %3079 = vmatpush1.msra.mxu0 0.0
  %3080 = vmatprep.subr.mxu0 0.0
  %3081 = vmatpush1.msra.mxu0 0.0
  %3082 = vmatprep.subr.mxu0 0.0
  %3083 = vmatpush1.msra.mxu0 0.0
  %3084 = vmatprep.subr.mxu0 0.0
  %3085 = vmatpush1.msra.mxu0 0.0
  %3086 = vmatprep.subr.mxu0 0.0
  %3087 = vmatpush1.msra.mxu0 0.0
  %3088 = vmatprep.subr.mxu0 0.0
  %3089 = vmatpush1.msra.mxu0 0.0
  %3090 = vmatprep.subr.mxu0 0.0
  %3091 = vmatpush1.msra.mxu0 0.0
  %3092 = vmatprep.subr.mxu0 0.0
  %3093 = vmatpush1.msra.mxu0 0.0
  %3094 = vmatprep.subr.mxu0 0.0
  %3095 = vmatpush1.msra.mxu0 0.0
  %3096 = vmatprep.subr.mxu0 0.0
  %3097 = vmatpush1.msra.mxu0 0.0
  %3098 = vmatprep.subr.mxu0 0.0
  %3099 = vmatpush1.msra.mxu0 0.0
  %3100 = vmatprep.subr.mxu0 0.0
  %3101 = vmatpush1.msra.mxu0 0.0
  %3102 = vmatprep.subr.mxu0 0.0
  %3103 = vmatpush1.msra.mxu0 0.0
  %3104 = vmatprep.subr.mxu0 0.0
  %3105 = vmatpush1.msra.mxu0 0.0
  %3106 = vmatprep.subr.mxu0 0.0
  %3107 = vmatpush1.msra.mxu0 0.0
  %3108 = vmatprep.subr.mxu0 0.0
  %3109 = vmatpush1.msra.mxu0 0.0
  %3110 = vmatprep.subr.mxu0 0.0
  %3111 = vmatpush1.msra.mxu0 0.0
  %3112 = vmatprep.subr.mxu0 0.0
  %3113 = vmatpush1.msra.mxu0 0.0
  %3114 = vmatprep.subr.mxu0 0.0
  %3115 = vmatpush1.msra.mxu0 0.0
  %3116 = vmatprep.subr.mxu0 0.0
  %3117 = vmatpush1.msra.mxu0 0.0
  %3118 = vmatprep.subr.mxu0 0.0
  %3119 = vmatpush1.msra.mxu0 0.0
  %3120 = vmatprep.subr.mxu0 0.0
  %3121 = vmatpush1.msra.mxu0 0.0
  %3122 = vmatprep.subr.mxu0 0.0
  %3123 = vmatpush1.msra.mxu0 0.0
  %3124 = vmatprep.subr.mxu0 0.0
  %3125 = vmatpush1.msra.mxu0 0.0
  %3126 = vmatprep.subr.mxu0 0.0
  %3127 = vmatpush1.msra.mxu0 0.0
  %3128 = vmatprep.subr.mxu0 0.0
  %3129 = vmatpush1.msra.mxu0 0.0
  %3130 = vmatprep.subr.mxu0 0.0
  %3131 = vmatpush1.msra.mxu0 0.0
  %3132 = vmatprep.subr.mxu0 0.0
  %3133 = vmatpush1.msra.mxu0 0.0
  %3134 = vmatprep.subr.mxu0 0.0
  %3135 = vmatpush1.msra.mxu0 0.0
  %3136 = vmatprep.subr.mxu0 0.0
  %3137 = vmatpush1.msra.mxu0 0.0
  %3138 = vmatprep.mubr.f32.mxu0 0.0
  %3139 = vmatmul.mubr.f32.gmra.mrb[0].mxu0 %v2976
  %v3140 = vpop.f32.mrb[0].mxu0
  %v3141 = vadd.f32 0.0, %v3140
  %v3142 = vpop.f32.mrb[0].mxu0
  %3143 = vmatprep.mubr.f32.mxu0 0.0
  %3144 = vmatmul.mubr.f32.gmra.mrb[0].mxu0 %v2979
  %v3145 = vpop.f32.mrb[0].mxu0
  %v3146 = vadd.f32 0.0, %v3145
  %v3147 = vpop.f32.mrb[0].mxu0
  %3148 = vmatprep.mubr.f32.mxu0 0.0
  %3149 = vmatmul.mubr.f32.gmra.mrb[0].mxu0 %v2982
  %v3150 = vpop.f32.mrb[0].mxu0
  %v3151 = vadd.f32 0.0, %v3150
  %v3152 = vpop.f32.mrb[0].mxu0
  %3153 = vmatprep.mubr.f32.mxu0 0.0
  %3154 = vmatmul.mubr.f32.gmra.mrb[0].mxu0 %v2985
  %v3155 = vpop.f32.mrb[0].mxu0
  %v3156 = vadd.f32 0.0, %v3155
  %v3157 = vpop.f32.mrb[0].mxu0
  %3158 = vmatprep.mubr.f32.mxu0 0.0
  %3159 = vmatmul.mubr.f32.gmra.mrb[0].mxu0 %v2988
  %v3160 = vpop.f32.mrb[0].mxu0
  %v3161 = vadd.f32 0.0, %v3160
  %v3162 = vpop.f32.mrb[0].mxu0
  %3163 = vmatprep.mubr.f32.mxu0 0.0
  %3164 = vmatmul.mubr.f32.gmra.mrb[0].mxu0 %v2991
  %v3165 = vpop.f32.mrb[0].mxu0
  %v3166 = vadd.f32 0.0, %v3165
  %v3167 = vpop.f32.mrb[0].mxu0
  %3168 = vmatprep.mubr.f32.mxu0 0.0
  %3169 = vmatmul.mubr.f32.gmra.mrb[0].mxu0 %v2994
  %v3170 = vpop.f32.mrb[0].mxu0
  %v3171 = vadd.f32 0.0, %v3170
  %v3172 = vpop.f32.mrb[0].mxu0
  %3173 = vmatprep.mubr.f32.mxu0 0.0
  %3174 = vmatmul.mubr.f32.gmra.mrb[0].mxu0 %v2997
  %v3175 = vpop.f32.mrb[0].mxu0
  %v3176 = vadd.f32 0.0, %v3175
  %v3177 = vpop.f32.mrb[0].mxu0
  %3178 = vmatprep.mubr.f32.mxu0 0.0
  %3179 = vmatmul.mubr.f32.gmra.mrb[0].mxu0 %v3000
  %v3180 = vpop.f32.mrb[0].mxu0
  %v3181 = vadd.f32 0.0, %v3180
  %v3182 = vpop.f32.mrb[0].mxu0
  %3183 = vmatprep.mubr.f32.mxu0 0.0
  %3184 = vmatmul.mubr.f32.gmra.mrb[0].mxu0 %v3003
  %v3185 = vpop.f32.mrb[0].mxu0
  %v3186 = vadd.f32 0.0, %v3185
  %v3187 = vpop.f32.mrb[0].mxu0
  %3188 = vmatprep.mubr.f32.mxu0 0.0
  %3189 = vmatmul.mubr.f32.gmra.mrb[0].mxu0 %v3006
  %v3190 = vpop.f32.mrb[0].mxu0
  %v3191 = vadd.f32 0.0, %v3190
  %v3192 = vpop.f32.mrb[0].mxu0
  %3193 = vmatprep.mubr.f32.mxu0 0.0
  %3194 = vmatmul.mubr.f32.gmra.mrb[0].mxu0 %v3009
  %v3195 = vpop.f32.mrb[0].mxu0
  %v3196 = vadd.f32 0.0, %v3195
  %v3197 = vpop.f32.mrb[0].mxu0
  %3198 = vmatprep.mubr.f32.mxu0 0.0
  %3199 = vmatmul.mubr.f32.gmra.mrb[0].mxu0 %v3012
  %v3200 = vpop.f32.mrb[0].mxu0
  %v3201 = vadd.f32 0.0, %v3200
  %v3202 = vpop.f32.mrb[0].mxu0
  %3203 = vmatprep.mubr.f32.mxu0 0.0
  %3204 = vmatmul.mubr.f32.gmra.mrb[0].mxu0 %v3015
  %v3205 = vpop.f32.mrb[0].mxu0
  %v3206 = vadd.f32 0.0, %v3205
  %v3207 = vpop.f32.mrb[0].mxu0
  %3208 = vmatprep.mubr.f32.mxu0 0.0
  %3209 = vmatmul.mubr.f32.gmra.mrb[0].mxu0 %v3018
  %v3210 = vpop.f32.mrb[0].mxu0
  %v3211 = vadd.f32 0.0, %v3210
  %v3212 = vpop.f32.mrb[0].mxu0
  %3213 = vmatprep.mubr.f32.mxu0 0.0
  %3214 = vmatmul.mubr.f32.gmra.mrb[0].mxu0 %v3021
  %v3215 = vpop.f32.mrb[0].mxu0
  %v3216 = vadd.f32 0.0, %v3215
  %v3217 = vpop.f32.mrb[0].mxu0
  %3218 = vmatprep.mubr.f32.mxu0 0.0
  %3219 = vmatmul.mubr.f32.gmra.mrb[0].mxu0 %v3024
  %v3220 = vpop.f32.mrb[0].mxu0
  %v3221 = vadd.f32 0.0, %v3220
  %v3222 = vpop.f32.mrb[0].mxu0
  %3223 = vmatprep.mubr.f32.mxu0 0.0
  %3224 = vmatmul.mubr.f32.gmra.mrb[0].mxu0 %v3027
  %v3225 = vpop.f32.mrb[0].mxu0
  %v3226 = vadd.f32 0.0, %v3225
  %v3227 = vpop.f32.mrb[0].mxu0
  %3228 = vmatprep.mubr.f32.mxu0 0.0
  %3229 = vmatmul.mubr.f32.gmra.mrb[0].mxu0 %v3030
  %v3230 = vpop.f32.mrb[0].mxu0
  %v3231 = vadd.f32 0.0, %v3230
  %v3232 = vpop.f32.mrb[0].mxu0
  %3233 = vmatprep.mubr.f32.mxu0 0.0
  %3234 = vmatmul.mubr.f32.gmra.mrb[0].mxu0 %v3033
  %v3235 = vpop.f32.mrb[0].mxu0
  %v3236 = vadd.f32 0.0, %v3235
  %v3237 = vpop.f32.mrb[0].mxu0
  %3238 = vmatprep.mubr.f32.mxu0 0.0
  %3239 = vmatmul.mubr.f32.gmra.mrb[0].mxu0 %v3036
  %v3240 = vpop.f32.mrb[0].mxu0
  %v3241 = vadd.f32 0.0, %v3240
  %v3242 = vpop.f32.mrb[0].mxu0
  %3243 = vmatprep.mubr.f32.mxu0 0.0
  %3244 = vmatmul.mubr.f32.gmra.mrb[0].mxu0 %v3039
  %v3245 = vpop.f32.mrb[0].mxu0
  %v3246 = vadd.f32 0.0, %v3245
  %v3247 = vpop.f32.mrb[0].mxu0
  %3248 = vmatprep.mubr.f32.mxu0 0.0
  %3249 = vmatmul.mubr.f32.gmra.mrb[0].mxu0 %v3042
  %v3250 = vpop.f32.mrb[0].mxu0
  %v3251 = vadd.f32 0.0, %v3250
  %v3252 = vpop.f32.mrb[0].mxu0
  %3253 = vmatprep.mubr.f32.mxu0 0.0
  %3254 = vmatmul.mubr.f32.gmra.mrb[0].mxu0 %v3045
  %v3255 = vpop.f32.mrb[0].mxu0
  %v3256 = vadd.f32 0.0, %v3255
  %v3257 = vpop.f32.mrb[0].mxu0
  %3258 = vmatprep.mubr.f32.mxu0 0.0
  %3259 = vmatmul.mubr.f32.gmra.mrb[0].mxu0 %v3048
  %v3260 = vpop.f32.mrb[0].mxu0
  %v3261 = vadd.f32 0.0, %v3260
  %v3262 = vpop.f32.mrb[0].mxu0
  %3263 = vmatprep.mubr.f32.mxu0 0.0
  %3264 = vmatmul.mubr.f32.gmra.mrb[0].mxu0 %v3051
  %v3265 = vpop.f32.mrb[0].mxu0
  %v3266 = vadd.f32 0.0, %v3265
  %v3267 = vpop.f32.mrb[0].mxu0
  %3268 = vmatprep.mubr.f32.mxu0 0.0
  %3269 = vmatmul.mubr.f32.gmra.mrb[0].mxu0 %v3054
  %v3270 = vpop.f32.mrb[0].mxu0
  %v3271 = vadd.f32 0.0, %v3270
  %v3272 = vpop.f32.mrb[0].mxu0
  %3273 = vmatprep.mubr.f32.mxu0 0.0
  %3274 = vmatmul.mubr.f32.gmra.mrb[0].mxu0 %v3057
  %v3275 = vpop.f32.mrb[0].mxu0
  %v3276 = vadd.f32 0.0, %v3275
  %v3277 = vpop.f32.mrb[0].mxu0
  %3278 = vmatprep.mubr.f32.mxu0 0.0
  %3279 = vmatmul.mubr.f32.gmra.mrb[0].mxu0 %v3060
  %v3280 = vpop.f32.mrb[0].mxu0
  %v3281 = vadd.f32 0.0, %v3280
  %v3282 = vpop.f32.mrb[0].mxu0
  %3283 = vmatprep.mubr.f32.mxu0 0.0
  %3284 = vmatmul.mubr.f32.gmra.mrb[0].mxu0 %v3063
  %v3285 = vpop.f32.mrb[0].mxu0
  %v3286 = vadd.f32 0.0, %v3285
  %v3287 = vpop.f32.mrb[0].mxu0
  %3288 = vmatprep.mubr.f32.mxu0 0.0
  %3289 = vmatmul.mubr.f32.gmra.mrb[0].mxu0 %v3066
  %v3290 = vpop.f32.mrb[0].mxu0
  %v3291 = vadd.f32 0.0, %v3290
  %v3292 = vpop.f32.mrb[0].mxu0
  %3293 = vmatprep.mubr.f32.mxu0 0.0
  %3294 = vmatmul.mubr.f32.gmra.mrb[0].mxu0 %v3069
  %v3295 = vpop.f32.mrb[0].mxu0
  %v3296 = vadd.f32 0.0, %v3295
  %v3297 = vpop.f32.mrb[0].mxu0
  %3298 = vdwg.mxu0
  %v3299 = vadd.f32 %v101, %v784
  %v3300 = vadd.f32 %v102, %v789
  %v3301 = vadd.f32 %v103, %v794
  %v3302 = vadd.f32 %v104, %v799
  %v3303 = vadd.f32 %v105, %v804
  %v3304 = vadd.f32 %v106, %v809
  %v3305 = vadd.f32 %v107, %v814
  %v3306 = vadd.f32 %v108, %v819
  %v3307 = vadd.f32 %v109, %v824
  %v3308 = vadd.f32 %v110, %v829
  %v3309 = vadd.f32 %v111, %v834
  %v3310 = vadd.f32 %v112, %v839
  %v3311 = vadd.f32 %v113, %v844
  %v3312 = vadd.f32 %v114, %v849
  %v3313 = vadd.f32 %v115, %v854
  %v3314 = vadd.f32 %v116, %v859
  %v3315 = vadd.f32 %v117, %v864
  %v3316 = vadd.f32 %v118, %v869
  %v3317 = vadd.f32 %v119, %v874
  %v3318 = vadd.f32 %v120, %v879
  %v3319 = vadd.f32 %v121, %v884
  %v3320 = vadd.f32 %v122, %v889
  %v3321 = vadd.f32 %v123, %v894
  %v3322 = vadd.f32 %v124, %v899
  %v3323 = vadd.f32 %v125, %v904
  %v3324 = vadd.f32 %v126, %v909
  %v3325 = vadd.f32 %v127, %v914
  %v3326 = vadd.f32 %v128, %v919
  %v3327 = vadd.f32 %v129, %v924
  %v3328 = vadd.f32 %v130, %v929
  %v3329 = vadd.f32 %v131, %v934
  %v3330 = vadd.f32 %v132, %v939
  %v3331 = vmul.f32 %v3299, %v3141
  %v3332 = vmul.f32 %v3300, %v3146
  %v3333 = vmul.f32 %v3301, %v3151
  %v3334 = vmul.f32 %v3302, %v3156
  %v3335 = vmul.f32 %v3303, %v3161
  %v3336 = vmul.f32 %v3304, %v3166
  %v3337 = vmul.f32 %v3305, %v3171
  %v3338 = vmul.f32 %v3306, %v3176
  %v3339 = vmul.f32 %v3307, %v3181
  %v3340 = vmul.f32 %v3308, %v3186
  %v3341 = vmul.f32 %v3309, %v3191
  %v3342 = vmul.f32 %v3310, %v3196
  %v3343 = vmul.f32 %v3311, %v3201
  %v3344 = vmul.f32 %v3312, %v3206
  %v3345 = vmul.f32 %v3313, %v3211
  %v3346 = vmul.f32 %v3314, %v3216
  %v3347 = vmul.f32 %v3315, %v3221
  %v3348 = vmul.f32 %v3316, %v3226
  %v3349 = vmul.f32 %v3317, %v3231
  %v3350 = vmul.f32 %v3318, %v3236
  %v3351 = vmul.f32 %v3319, %v3241
  %v3352 = vmul.f32 %v3320, %v3246
  %v3353 = vmul.f32 %v3321, %v3251
  %v3354 = vmul.f32 %v3322, %v3256
  %v3355 = vmul.f32 %v3323, %v3261
  %v3356 = vmul.f32 %v3324, %v3266
  %v3357 = vmul.f32 %v3325, %v3271
  %v3358 = vmul.f32 %v3326, %v3276
  %v3359 = vmul.f32 %v3327, %v3281
  %v3360 = vmul.f32 %v3328, %v3286
  %v3361 = vmul.f32 %v3329, %v3291
  %v3362 = vmul.f32 %v3330, %v3296
  %v3363 = vsel %vm620, %v3331, 0.0
  %v3364 = vrot.slane %v3363, 4
  %v3365 = vadd.f32 %v3363, %v3364
  %v3366 = vrot.slane %v3365, 2
  %v3367 = vadd.f32 %v3365, %v3366
  %v3368 = vrot.slane %v3367, 1
  %v3369 = vadd.f32 %v3367, %v3368
  %v3370 = vsel %vm620, %v3332, 0.0
  %v3371 = vrot.slane %v3370, 4
  %v3372 = vadd.f32 %v3370, %v3371
  %v3373 = vrot.slane %v3372, 2
  %v3374 = vadd.f32 %v3372, %v3373
  %v3375 = vrot.slane %v3374, 1
  %v3376 = vadd.f32 %v3374, %v3375
  %v3377 = vsel %vm620, %v3333, 0.0
  %v3378 = vrot.slane %v3377, 4
  %v3379 = vadd.f32 %v3377, %v3378
  %v3380 = vrot.slane %v3379, 2
  %v3381 = vadd.f32 %v3379, %v3380
  %v3382 = vrot.slane %v3381, 1
  %v3383 = vadd.f32 %v3381, %v3382
  %v3384 = vsel %vm620, %v3334, 0.0
  %v3385 = vrot.slane %v3384, 4
  %v3386 = vadd.f32 %v3384, %v3385
  %v3387 = vrot.slane %v3386, 2
  %v3388 = vadd.f32 %v3386, %v3387
  %v3389 = vrot.slane %v3388, 1
  %v3390 = vadd.f32 %v3388, %v3389
  %v3391 = vsel %vm620, %v3335, 0.0
  %v3392 = vrot.slane %v3391, 4
  %v3393 = vadd.f32 %v3391, %v3392
  %v3394 = vrot.slane %v3393, 2
  %v3395 = vadd.f32 %v3393, %v3394
  %v3396 = vrot.slane %v3395, 1
  %v3397 = vadd.f32 %v3395, %v3396
  %v3398 = vsel %vm620, %v3336, 0.0
  %v3399 = vrot.slane %v3398, 4
  %v3400 = vadd.f32 %v3398, %v3399
  %v3401 = vrot.slane %v3400, 2
  %v3402 = vadd.f32 %v3400, %v3401
  %v3403 = vrot.slane %v3402, 1
  %v3404 = vadd.f32 %v3402, %v3403
  %v3405 = vsel %vm620, %v3337, 0.0
  %v3406 = vrot.slane %v3405, 4
  %v3407 = vadd.f32 %v3405, %v3406
  %v3408 = vrot.slane %v3407, 2
  %v3409 = vadd.f32 %v3407, %v3408
  %v3410 = vrot.slane %v3409, 1
  %v3411 = vadd.f32 %v3409, %v3410
  %v3412 = vsel %vm620, %v3338, 0.0
  %v3413 = vrot.slane %v3412, 4
  %v3414 = vadd.f32 %v3412, %v3413
  %v3415 = vrot.slane %v3414, 2
  %v3416 = vadd.f32 %v3414, %v3415
  %v3417 = vrot.slane %v3416, 1
  %v3418 = vadd.f32 %v3416, %v3417
  %v3419 = vsel %vm620, %v3339, 0.0
  %v3420 = vrot.slane %v3419, 4
  %v3421 = vadd.f32 %v3419, %v3420
  %v3422 = vrot.slane %v3421, 2
  %v3423 = vadd.f32 %v3421, %v3422
  %v3424 = vrot.slane %v3423, 1
  %v3425 = vadd.f32 %v3423, %v3424
  %v3426 = vsel %vm620, %v3340, 0.0
  %v3427 = vrot.slane %v3426, 4
  %v3428 = vadd.f32 %v3426, %v3427
  %v3429 = vrot.slane %v3428, 2
  %v3430 = vadd.f32 %v3428, %v3429
  %v3431 = vrot.slane %v3430, 1
  %v3432 = vadd.f32 %v3430, %v3431
  %v3433 = vsel %vm620, %v3341, 0.0
  %v3434 = vrot.slane %v3433, 4
  %v3435 = vadd.f32 %v3433, %v3434
  %v3436 = vrot.slane %v3435, 2
  %v3437 = vadd.f32 %v3435, %v3436
  %v3438 = vrot.slane %v3437, 1
  %v3439 = vadd.f32 %v3437, %v3438
  %v3440 = vsel %vm620, %v3342, 0.0
  %v3441 = vrot.slane %v3440, 4
  %v3442 = vadd.f32 %v3440, %v3441
  %v3443 = vrot.slane %v3442, 2
  %v3444 = vadd.f32 %v3442, %v3443
  %v3445 = vrot.slane %v3444, 1
  %v3446 = vadd.f32 %v3444, %v3445
  %v3447 = vsel %vm620, %v3343, 0.0
  %v3448 = vrot.slane %v3447, 4
  %v3449 = vadd.f32 %v3447, %v3448
  %v3450 = vrot.slane %v3449, 2
  %v3451 = vadd.f32 %v3449, %v3450
  %v3452 = vrot.slane %v3451, 1
  %v3453 = vadd.f32 %v3451, %v3452
  %v3454 = vsel %vm620, %v3344, 0.0
  %v3455 = vrot.slane %v3454, 4
  %v3456 = vadd.f32 %v3454, %v3455
  %v3457 = vrot.slane %v3456, 2
  %v3458 = vadd.f32 %v3456, %v3457
  %v3459 = vrot.slane %v3458, 1
  %v3460 = vadd.f32 %v3458, %v3459
  %v3461 = vsel %vm620, %v3345, 0.0
  %v3462 = vrot.slane %v3461, 4
  %v3463 = vadd.f32 %v3461, %v3462
  %v3464 = vrot.slane %v3463, 2
  %v3465 = vadd.f32 %v3463, %v3464
  %v3466 = vrot.slane %v3465, 1
  %v3467 = vadd.f32 %v3465, %v3466
  %v3468 = vsel %vm620, %v3346, 0.0
  %v3469 = vrot.slane %v3468, 4
  %v3470 = vadd.f32 %v3468, %v3469
  %v3471 = vrot.slane %v3470, 2
  %v3472 = vadd.f32 %v3470, %v3471
  %v3473 = vrot.slane %v3472, 1
  %v3474 = vadd.f32 %v3472, %v3473
  %v3475 = vsel %vm620, %v3347, 0.0
  %v3476 = vrot.slane %v3475, 4
  %v3477 = vadd.f32 %v3475, %v3476
  %v3478 = vrot.slane %v3477, 2
  %v3479 = vadd.f32 %v3477, %v3478
  %v3480 = vrot.slane %v3479, 1
  %v3481 = vadd.f32 %v3479, %v3480
  %v3482 = vsel %vm620, %v3348, 0.0
  %v3483 = vrot.slane %v3482, 4
  %v3484 = vadd.f32 %v3482, %v3483
  %v3485 = vrot.slane %v3484, 2
  %v3486 = vadd.f32 %v3484, %v3485
  %v3487 = vrot.slane %v3486, 1
  %v3488 = vadd.f32 %v3486, %v3487
  %v3489 = vsel %vm620, %v3349, 0.0
  %v3490 = vrot.slane %v3489, 4
  %v3491 = vadd.f32 %v3489, %v3490
  %v3492 = vrot.slane %v3491, 2
  %v3493 = vadd.f32 %v3491, %v3492
  %v3494 = vrot.slane %v3493, 1
  %v3495 = vadd.f32 %v3493, %v3494
  %v3496 = vsel %vm620, %v3350, 0.0
  %v3497 = vrot.slane %v3496, 4
  %v3498 = vadd.f32 %v3496, %v3497
  %v3499 = vrot.slane %v3498, 2
  %v3500 = vadd.f32 %v3498, %v3499
  %v3501 = vrot.slane %v3500, 1
  %v3502 = vadd.f32 %v3500, %v3501
  %v3503 = vsel %vm620, %v3351, 0.0
  %v3504 = vrot.slane %v3503, 4
  %v3505 = vadd.f32 %v3503, %v3504
  %v3506 = vrot.slane %v3505, 2
  %v3507 = vadd.f32 %v3505, %v3506
  %v3508 = vrot.slane %v3507, 1
  %v3509 = vadd.f32 %v3507, %v3508
  %v3510 = vsel %vm620, %v3352, 0.0
  %v3511 = vrot.slane %v3510, 4
  %v3512 = vadd.f32 %v3510, %v3511
  %v3513 = vrot.slane %v3512, 2
  %v3514 = vadd.f32 %v3512, %v3513
  %v3515 = vrot.slane %v3514, 1
  %v3516 = vadd.f32 %v3514, %v3515
  %v3517 = vsel %vm620, %v3353, 0.0
  %v3518 = vrot.slane %v3517, 4
  %v3519 = vadd.f32 %v3517, %v3518
  %v3520 = vrot.slane %v3519, 2
  %v3521 = vadd.f32 %v3519, %v3520
  %v3522 = vrot.slane %v3521, 1
  %v3523 = vadd.f32 %v3521, %v3522
  %v3524 = vsel %vm620, %v3354, 0.0
  %v3525 = vrot.slane %v3524, 4
  %v3526 = vadd.f32 %v3524, %v3525
  %v3527 = vrot.slane %v3526, 2
  %v3528 = vadd.f32 %v3526, %v3527
  %v3529 = vrot.slane %v3528, 1
  %v3530 = vadd.f32 %v3528, %v3529
  %v3531 = vsel %vm620, %v3355, 0.0
  %v3532 = vrot.slane %v3531, 4
  %v3533 = vadd.f32 %v3531, %v3532
  %v3534 = vrot.slane %v3533, 2
  %v3535 = vadd.f32 %v3533, %v3534
  %v3536 = vrot.slane %v3535, 1
  %v3537 = vadd.f32 %v3535, %v3536
  %v3538 = vsel %vm620, %v3356, 0.0
  %v3539 = vrot.slane %v3538, 4
  %v3540 = vadd.f32 %v3538, %v3539
  %v3541 = vrot.slane %v3540, 2
  %v3542 = vadd.f32 %v3540, %v3541
  %v3543 = vrot.slane %v3542, 1
  %v3544 = vadd.f32 %v3542, %v3543
  %v3545 = vsel %vm620, %v3357, 0.0
  %v3546 = vrot.slane %v3545, 4
  %v3547 = vadd.f32 %v3545, %v3546
  %v3548 = vrot.slane %v3547, 2
  %v3549 = vadd.f32 %v3547, %v3548
  %v3550 = vrot.slane %v3549, 1
  %v3551 = vadd.f32 %v3549, %v3550
  %v3552 = vsel %vm620, %v3358, 0.0
  %v3553 = vrot.slane %v3552, 4
  %v3554 = vadd.f32 %v3552, %v3553
  %v3555 = vrot.slane %v3554, 2
  %v3556 = vadd.f32 %v3554, %v3555
  %v3557 = vrot.slane %v3556, 1
  %v3558 = vadd.f32 %v3556, %v3557
  %v3559 = vsel %vm620, %v3359, 0.0
  %v3560 = vrot.slane %v3559, 4
  %v3561 = vadd.f32 %v3559, %v3560
  %v3562 = vrot.slane %v3561, 2
  %v3563 = vadd.f32 %v3561, %v3562
  %v3564 = vrot.slane %v3563, 1
  %v3565 = vadd.f32 %v3563, %v3564
  %v3566 = vsel %vm620, %v3360, 0.0
  %v3567 = vrot.slane %v3566, 4
  %v3568 = vadd.f32 %v3566, %v3567
  %v3569 = vrot.slane %v3568, 2
  %v3570 = vadd.f32 %v3568, %v3569
  %v3571 = vrot.slane %v3570, 1
  %v3572 = vadd.f32 %v3570, %v3571
  %v3573 = vsel %vm620, %v3361, 0.0
  %v3574 = vrot.slane %v3573, 4
  %v3575 = vadd.f32 %v3573, %v3574
  %v3576 = vrot.slane %v3575, 2
  %v3577 = vadd.f32 %v3575, %v3576
  %v3578 = vrot.slane %v3577, 1
  %v3579 = vadd.f32 %v3577, %v3578
  %v3580 = vsel %vm620, %v3362, 0.0
  %v3581 = vrot.slane %v3580, 4
  %v3582 = vadd.f32 %v3580, %v3581
  %v3583 = vrot.slane %v3582, 2
  %v3584 = vadd.f32 %v3582, %v3583
  %v3585 = vrot.slane %v3584, 1
  %v3586 = vadd.f32 %v3584, %v3585
  %v3587 = vld [vmem:[%s18] sm:$0x1]
  %v3589 = vlaneseq
  %v3590 = vshrl.u32 %v3589, 7
  %v3591 = vsub.s32 0, %v3590
  %v3592 = vrot.slane %v3587, %v3591
  %v3594 = vmul.f32 %v3369, %v3592
  %v3595 = vmul.f32 %v3376, %v3592
  %v3596 = vmul.f32 %v3383, %v3592
  %v3597 = vmul.f32 %v3390, %v3592
  %v3598 = vmul.f32 %v3397, %v3592
  %v3599 = vmul.f32 %v3404, %v3592
  %v3600 = vmul.f32 %v3411, %v3592
  %v3601 = vmul.f32 %v3418, %v3592
  %v3602 = vmul.f32 %v3425, %v3592
  %v3603 = vmul.f32 %v3432, %v3592
  %v3604 = vmul.f32 %v3439, %v3592
  %v3605 = vmul.f32 %v3446, %v3592
  %v3606 = vmul.f32 %v3453, %v3592
  %v3607 = vmul.f32 %v3460, %v3592
  %v3608 = vmul.f32 %v3467, %v3592
  %v3609 = vmul.f32 %v3474, %v3592
  %v3610 = vmul.f32 %v3481, %v3592
  %v3611 = vmul.f32 %v3488, %v3592
  %v3612 = vmul.f32 %v3495, %v3592
  %v3613 = vmul.f32 %v3502, %v3592
  %v3614 = vmul.f32 %v3509, %v3592
  %v3615 = vmul.f32 %v3516, %v3592
  %v3616 = vmul.f32 %v3523, %v3592
  %v3617 = vmul.f32 %v3530, %v3592
  %v3618 = vmul.f32 %v3537, %v3592
  %v3619 = vmul.f32 %v3544, %v3592
  %v3620 = vmul.f32 %v3551, %v3592
  %v3621 = vmul.f32 %v3558, %v3592
  %v3622 = vmul.f32 %v3565, %v3592
  %v3623 = vmul.f32 %v3572, %v3592
  %v3624 = vmul.f32 %v3579, %v3592
  %v3625 = vmul.f32 %v3586, %v3592
  %v3626 = vld [vmem:[%s19] sm:$0x1]
  %v3628 = vlaneseq
  %v3629 = vshrl.u32 %v3628, 7
  %v3630 = vsub.s32 0, %v3629
  %v3631 = vrot.slane %v3626, %v3630
  %v3633 = vadd.f32 %v3594, %v3631
  %v3634 = vadd.f32 %v3595, %v3631
  %v3635 = vadd.f32 %v3596, %v3631
  %v3636 = vadd.f32 %v3597, %v3631
  %v3637 = vadd.f32 %v3598, %v3631
  %v3638 = vadd.f32 %v3599, %v3631
  %v3639 = vadd.f32 %v3600, %v3631
  %v3640 = vadd.f32 %v3601, %v3631
  %v3641 = vadd.f32 %v3602, %v3631
  %v3642 = vadd.f32 %v3603, %v3631
  %v3643 = vadd.f32 %v3604, %v3631
  %v3644 = vadd.f32 %v3605, %v3631
  %v3645 = vadd.f32 %v3606, %v3631
  %v3646 = vadd.f32 %v3607, %v3631
  %v3647 = vadd.f32 %v3608, %v3631
  %v3648 = vadd.f32 %v3609, %v3631
  %v3649 = vadd.f32 %v3610, %v3631
  %v3650 = vadd.f32 %v3611, %v3631
  %v3651 = vadd.f32 %v3612, %v3631
  %v3652 = vadd.f32 %v3613, %v3631
  %v3653 = vadd.f32 %v3614, %v3631
  %v3654 = vadd.f32 %v3615, %v3631
  %v3655 = vadd.f32 %v3616, %v3631
  %v3656 = vadd.f32 %v3617, %v3631
  %v3657 = vadd.f32 %v3618, %v3631
  %v3658 = vadd.f32 %v3619, %v3631
  %v3659 = vadd.f32 %v3620, %v3631
  %v3660 = vadd.f32 %v3621, %v3631
  %v3661 = vadd.f32 %v3622, %v3631
  %v3662 = vadd.f32 %v3623, %v3631
  %v3663 = vadd.f32 %v3624, %v3631
  %v3664 = vadd.f32 %v3625, %v3631
  %v3665 = vmax.f32 %v3633, 0.0
  %v3666 = vmax.f32 %v3634, 0.0
  %v3667 = vmax.f32 %v3635, 0.0
  %v3668 = vmax.f32 %v3636, 0.0
  %v3669 = vmax.f32 %v3637, 0.0
  %v3670 = vmax.f32 %v3638, 0.0
  %v3671 = vmax.f32 %v3639, 0.0
  %v3672 = vmax.f32 %v3640, 0.0
  %v3673 = vmax.f32 %v3641, 0.0
  %v3674 = vmax.f32 %v3642, 0.0
  %v3675 = vmax.f32 %v3643, 0.0
  %v3676 = vmax.f32 %v3644, 0.0
  %v3677 = vmax.f32 %v3645, 0.0
  %v3678 = vmax.f32 %v3646, 0.0
  %v3679 = vmax.f32 %v3647, 0.0
  %v3680 = vmax.f32 %v3648, 0.0
  %v3681 = vmax.f32 %v3649, 0.0
  %v3682 = vmax.f32 %v3650, 0.0
  %v3683 = vmax.f32 %v3651, 0.0
  %v3684 = vmax.f32 %v3652, 0.0
  %v3685 = vmax.f32 %v3653, 0.0
  %v3686 = vmax.f32 %v3654, 0.0
  %v3687 = vmax.f32 %v3655, 0.0
  %v3688 = vmax.f32 %v3656, 0.0
  %v3689 = vmax.f32 %v3657, 0.0
  %v3690 = vmax.f32 %v3658, 0.0
  %v3691 = vmax.f32 %v3659, 0.0
  %v3692 = vmax.f32 %v3660, 0.0
  %v3693 = vmax.f32 %v3661, 0.0
  %v3694 = vmax.f32 %v3662, 0.0
  %v3695 = vmax.f32 %v3663, 0.0
  %v3696 = vmax.f32 %v3664, 0.0
  %v3729 = vrot.slane %v3666, 7
  %vm3730 = vcmask 1041409
  %v3731 = vsel %vm3730, %v3729, %v3665
  %v3732 = vrot.slane %v3667, 6
  %vm3733 = vcmask 1042434
  %v3734 = vsel %vm3733, %v3732, %v3731
  %v3735 = vrot.slane %v3668, 5
  %vm3736 = vcmask 1043459
  %v3737 = vsel %vm3736, %v3735, %v3734
  %v3738 = vrot.slane %v3669, 4
  %vm3739 = vcmask 1044484
  %v3740 = vsel %vm3739, %v3738, %v3737
  %v3741 = vrot.slane %v3670, 3
  %vm3742 = vcmask 1045509
  %v3743 = vsel %vm3742, %v3741, %v3740
  %v3744 = vrot.slane %v3671, 2
  %vm3745 = vcmask 1046534
  %v3746 = vsel %vm3745, %v3744, %v3743
  %v3747 = vrot.slane %v3672, 1
  %vm3748 = vcmask 1047559
  %v3749 = vsel %vm3748, %v3747, %v3746
  %v3750 = vrot.slane %v3674, 7
  %v3751 = vsel %vm3730, %v3750, %v3673
  %v3752 = vrot.slane %v3675, 6
  %v3753 = vsel %vm3733, %v3752, %v3751
  %v3754 = vrot.slane %v3676, 5
  %v3755 = vsel %vm3736, %v3754, %v3753
  %v3756 = vrot.slane %v3677, 4
  %v3757 = vsel %vm3739, %v3756, %v3755
  %v3758 = vrot.slane %v3678, 3
  %v3759 = vsel %vm3742, %v3758, %v3757
  %v3760 = vrot.slane %v3679, 2
  %v3761 = vsel %vm3745, %v3760, %v3759
  %v3762 = vrot.slane %v3680, 1
  %v3763 = vsel %vm3748, %v3762, %v3761
  %v3764 = vrot.slane %v3682, 7
  %v3765 = vsel %vm3730, %v3764, %v3681
  %v3766 = vrot.slane %v3683, 6
  %v3767 = vsel %vm3733, %v3766, %v3765
  %v3768 = vrot.slane %v3684, 5
  %v3769 = vsel %vm3736, %v3768, %v3767
  %v3770 = vrot.slane %v3685, 4
  %v3771 = vsel %vm3739, %v3770, %v3769
  %v3772 = vrot.slane %v3686, 3
  %v3773 = vsel %vm3742, %v3772, %v3771
  %v3774 = vrot.slane %v3687, 2
  %v3775 = vsel %vm3745, %v3774, %v3773
  %v3776 = vrot.slane %v3688, 1
  %v3777 = vsel %vm3748, %v3776, %v3775
  %v3778 = vrot.slane %v3690, 7
  %v3779 = vsel %vm3730, %v3778, %v3689
  %v3780 = vrot.slane %v3691, 6
  %v3781 = vsel %vm3733, %v3780, %v3779
  %v3782 = vrot.slane %v3692, 5
  %v3783 = vsel %vm3736, %v3782, %v3781
  %v3784 = vrot.slane %v3693, 4
  %v3785 = vsel %vm3739, %v3784, %v3783
  %v3786 = vrot.slane %v3694, 3
  %v3787 = vsel %vm3742, %v3786, %v3785
  %v3788 = vrot.slane %v3695, 2
  %v3789 = vsel %vm3745, %v3788, %v3787
  %v3790 = vrot.slane %v3696, 1
  %v3791 = vsel %vm3748, %v3790, %v3789
  %3796 = vst.msk [vmem:[%s20] sm:$0xff] %vm620, %v3749
  %3797 = vst.msk [vmem:[%s20 + $0x8] sm:$0xff] %vm620, %v3763
  %3798 = vst.msk [vmem:[%s20 + $0x10] sm:$0xff] %vm620, %v3777
  %3799 = vst.msk [vmem:[%s20 + $0x18] sm:$0xff] %vm620, %v3791
  // Predicated region
  $region82: #{decoder_forward.10} parent=0 // pred_check
    _
  $region83: #{decoder_forward.10} parent=0 // pred_check_branch
    %3801 = sbr.rel (0) target = $region85
  $region84: #{decoder_forward.10} parent=0 // pred_region
    _
  $region85: #{decoder_forward.10} parent=0 // pred_fallthru
    _
  // Predicated region
  $region86: #{decoder_forward.10} parent=0 // pred_check
    _
  $region87: #{decoder_forward.10} parent=0 // pred_check_branch
    %3803 = sbr.rel (0) target = $region89
  $region88: #{decoder_forward.10} parent=0 // pred_region
    _
  $region89: #{decoder_forward.10} parent=0 // pred_fallthru
    _

</llo_original>
